<compile_context>
chip_gen: v7x
topology: tpu7x:2x2x1
jax: 0.10.0
libtpu: 0.0.40
codegen_flags: <defaults>
</compile_context>

<pallas_src>
from functools import partial

import jax
import jax.numpy as jnp
from jax.experimental import pallas as pl
from jax.experimental.pallas import tpu as pltpu

# --- static configuration (small demo sizes, consistent with the module) ----------
LEN_EXPAND = 256                 # module default is 1500; must be > 49
KH, KW = 50, 4                   # Conv2d kernel
C_OUT = 20                       # Conv2d out channels
H_OUT = LEN_EXPAND - (KH - 1)    # 207
W_OUT = 8 - (KW - 1)             # 5
FC_IN = H_OUT * W_OUT * C_OUT    # torch fc input features

# padded / tiled sizes
OC_PAD = 32                                  # conv channels 20 -> 32 (was 128)
KH_PAD = 64                                  # conv taps 50 -> 64
H_PAD = ((H_OUT + 15) // 16) * 16            # 208 (bf16 sublane multiple)
N_PAD = ((LEN_EXPAND + 127) // 128) * 128    # 256
K2 = OC_PAD * H_PAD                          # 6656 = flat (oc, h) FC contraction dim

# N tile: keep the "parallel" tile count even (v7x has 2 TensorCores).
TN = 256 if (N_PAD > 512 and N_PAD % 256 == 0) else 128     # demo: 128 -> 2 N tiles


def _pick_tk(k2, tn, budget_bytes=4 * 1024 * 1024):
    """Largest divisor of k2 that is a multiple of 128 and keeps a bf16 weight
    tile (tk x tn) under budget_bytes (double-buffered this stays well inside the
    v7x 32 MiB scoped-VMEM default; v5e/v6e have more)."""
    cap = max(128, budget_bytes // (tn * 2))
    best, d = 128, 128
    while d <= k2:
        if k2 % d == 0 and d <= cap:
            best = d
        d += 128
    return best


TK = _pick_tk(K2, TN)                        # demo: 6656 (whole K in one tile)
assert K2 % TK == 0 and N_PAD % TN == 0 and TK % 128 == 0


# ------------------------------ Pallas kernels ------------------------------------
def _conv_kernel(p_ref, w_ref, b_ref, o_ref):
    # p_ref [1, KH_PAD, H_PAD] bf16 (patchesT of one batch element),
    # w_ref [OC_PAD, KH_PAD] bf16, b_ref [OC_PAD, H_PAD] f32 (bias plane, zero at
    # padded oc/h), o_ref [1, OC_PAD, H_PAD] bf16.
    acc = jnp.dot(w_ref[...], p_ref[0], preferred_element_type=jnp.float32)
    o_ref[0] = (acc + b_ref[...]).astype(o_ref.dtype)


def _fc_kernel(act_ref, w_ref, b_ref, x_ref, o_ref):
    # grid = (N tiles, K tiles); K is the reduction axis (last, "arbitrary").
    # act_ref [B, K2] bf16 (invariant, VMEM-resident), w_ref [TK, TN] bf16,
    # b_ref [1, TN] f32, x_ref [B, 1, TN] f32 (original input tile),
    # o_ref [B, 1, TN] f32 (aliased with x; resident across the K axis).
    n = pl.program_id(0)
    k = pl.program_id(1)
    start = pl.multiple_of(k * TK, 128)
    part = jnp.dot(act_ref[:, pl.ds(start, TK)], w_ref[...],
                   preferred_element_type=jnp.float32)

    @pl.when(k == 0)
    def _():
        o_ref[:, 0, :] = part

    @pl.when(k > 0)
    def _():
        o_ref[:, 0, :] += part

    @pl.when(k == pl.num_programs(1) - 1)
    def _():
        # bias epilogue + preserve original input values in columns >= LEN_EXPAND
        col = n * TN + jax.lax.broadcasted_iota(jnp.int32, part.shape, 1)
        val = o_ref[:, 0, :] + b_ref[...]
        o_ref[:, 0, :] = jnp.where(col < LEN_EXPAND, val, x_ref[:, 0, :])


def conv_matmul(patches_t, w1t_p, cb_plane):
    # patches_t [B, KH_PAD, H_PAD] bf16 -> conv out [B, OC_PAD, H_PAD] bf16
    B = patches_t.shape[0]
    return pl.pallas_call(
        _conv_kernel,
        out_shape=jax.ShapeDtypeStruct((B, OC_PAD, H_PAD), jnp.bfloat16),
        grid=(B,),
        in_specs=[
            pl.BlockSpec((1, KH_PAD, H_PAD), lambda b: (b, 0, 0)),
            pl.BlockSpec((OC_PAD, KH_PAD), lambda b: (0, 0)),
            pl.BlockSpec((OC_PAD, H_PAD), lambda b: (0, 0)),
        ],
        out_specs=pl.BlockSpec((1, OC_PAD, H_PAD), lambda b: (b, 0, 0)),
        compiler_params=pltpu.CompilerParams(dimension_semantics=("parallel",)),
    )(patches_t, w1t_p, cb_plane)


def fc_matmul(act, wfc_p, fb_p, x_in):
    # act [B, K2] bf16, wfc_p [K2, N_PAD] bf16, fb_p [1, N_PAD] f32,
    # x_in [B, 1, L] f32 (donated; aliased with the output -> in-place update).
    B = act.shape[0]
    return pl.pallas_call(
        _fc_kernel,
        out_shape=jax.ShapeDtypeStruct(x_in.shape, x_in.dtype),
        grid=(N_PAD // TN, K2 // TK),
        in_specs=[
            pl.BlockSpec((B, K2), lambda n, k: (0, 0)),        # invariant activation
            pl.BlockSpec((TK, TN), lambda n, k: (k, n)),       # streamed weight tiles
            pl.BlockSpec((1, TN), lambda n, k: (0, n)),
            pl.BlockSpec((B, 1, TN), lambda n, k: (0, 0, n)),  # original x (blend)
        ],
        out_specs=pl.BlockSpec((B, 1, TN), lambda n, k: (0, 0, n)),
        input_output_aliases={3: 0},
        compiler_params=pltpu.CompilerParams(
            dimension_semantics=("parallel", "arbitrary")),
    )(act, wfc_p, fb_p, x_in)


# ------------------------------ JAX glue -------------------------------------------
def col_values(x2d):
    # Net effect of the torch expand + in-place apply_ loop, per sequence position.
    # (Assumes non-negative integer byte values, as the torch code itself requires.)
    r = jnp.arange(LEN_EXPAND)[None, :]
    lsb = jnp.mod(jnp.floor(x2d), 2.0)
    return jnp.where(r < 7, 0.0, jnp.where(r == 7, lsb, x2d)).astype(jnp.float32)


def prepare_params(conv_w, conv_b, fc_w, fc_b):
    # One-time host-side prep: algebraic collapse + padding to MXU-friendly tiles.
    # 1-D conv kernel (transposed): w1t[oc, kh] = sum_kw conv_w[oc, 0, kh, kw]
    w1t = conv_w.reshape(C_OUT, KH, KW).sum(axis=-1)                      # [oc, kh]
    w1t_p = (jnp.zeros((OC_PAD, KH_PAD), jnp.float32)
             .at[:C_OUT, :KH].set(w1t).astype(jnp.bfloat16))
    # bias plane, zero at padded oc / h positions (padded activations stay exactly 0)
    cb_plane = (jnp.zeros((OC_PAD, H_PAD), jnp.float32)
                .at[:C_OUT, :H_OUT]
                .set(jnp.broadcast_to(conv_b[:, None], (C_OUT, H_OUT))))
    # FC weight: collapse the (identical) W_OUT columns, lay K out as (oc, h) so the
    # conv output flattens into it with NO activation transpose, compact oc to 32.
    wfc = fc_w.reshape(LEN_EXPAND, C_OUT, H_OUT, W_OUT).sum(axis=-1)      # [N, oc, h]
    wfc = wfc.transpose(1, 2, 0)                                          # [oc, h, N]
    wfc_p = (jnp.zeros((OC_PAD, H_PAD, N_PAD), jnp.float32)
             .at[:C_OUT, :H_OUT, :LEN_EXPAND].set(wfc)
             .reshape(K2, N_PAD).astype(jnp.bfloat16))
    fb_p = jnp.zeros((1, N_PAD), jnp.float32).at[0, :LEN_EXPAND].set(fc_b)
    return w1t_p, cb_plane, wfc_p, fb_p


@partial(jax.jit, donate_argnums=(0,))
def expand_bitpackets_forward(x_in, w1t_p, cb_plane, wfc_p, fb_p):
    # x_in: [B, 1, L] float32 with L >= LEN_EXPAND (donated: the result aliases it)
    B = x_in.shape[0]
    col = col_values(x_in[:, 0, :LEN_EXPAND]).astype(jnp.bfloat16)       # [B, LEN]
    # im2col (transposed layout): patchesT[b, kh, h] = col[b, h + kh]
    patches_t = jnp.stack([col[:, kh:kh + H_OUT] for kh in range(KH)], axis=1)
    patches_t = jnp.pad(patches_t, ((0, 0), (0, KH_PAD - KH), (0, H_PAD - H_OUT)))
    conv_out = conv_matmul(patches_t, w1t_p, cb_plane)                   # [B,32,H_PAD]
    act = conv_out.reshape(B, K2)                                        # free reshape
    return fc_matmul(act, wfc_p, fb_p, x_in)                             # [B, 1, L]


def init_params(key):
    # Synthetic params matching nn.Conv2d(1,20,(50,4)) + nn.Linear(FC_IN, LEN_EXPAND)
    k1, k2, k3, k4 = jax.random.split(key, 4)
    cb = 1.0 / (float(1 * KH * KW) ** 0.5)
    conv_w = jax.random.uniform(k1, (C_OUT, 1, KH, KW), jnp.float32, -cb, cb)
    conv_b = jax.random.uniform(k2, (C_OUT,), jnp.float32, -cb, cb)
    fb = 1.0 / (float(FC_IN) ** 0.5)
    fc_w = jax.random.uniform(k3, (LEN_EXPAND, FC_IN), jnp.float32, -fb, fb)
    fc_b = jax.random.uniform(k4, (LEN_EXPAND,), jnp.float32, -fb, fb)
    return conv_w, conv_b, fc_w, fc_b


def reference_forward(x_in, conv_w, conv_b, fc_w, fc_b):
    # Pure-JAX reference (full 2-D conv + full FC, NO algebraic collapse, f32).
    B = x_in.shape[0]
    to_mod = x_in[:, 0, :LEN_EXPAND]
    r = jnp.arange(LEN_EXPAND)[None, :, None]
    base = jnp.broadcast_to(to_mod[:, :, None], (B, LEN_EXPAND, 8))
    lsb = jnp.broadcast_to(jnp.mod(jnp.floor(to_mod), 2.0)[:, :, None],
                           (B, LEN_EXPAND, 8))
    bitmat = jnp.where(r < 7, 0.0, jnp.where(r == 7, lsb, base))[:, None]  # NCHW
    conv = jax.lax.conv_general_dilated(
        bitmat, conv_w, (1, 1), "VALID",
        dimension_numbers=("NCHW", "OIHW", "NCHW"),
        precision=jax.lax.Precision.HIGHEST,
    ) + conv_b[None, :, None, None]
    flat = conv.reshape(B, FC_IN)                     # torch flatten order (oc, h, w)
    fc_out = jnp.dot(flat, fc_w.T, precision=jax.lax.Precision.HIGHEST) + fc_b
    return x_in.at[:, :, :LEN_EXPAND].set(fc_out[:, None, :])


if __name__ == "__main__":
    key = jax.random.PRNGKey(0)
    kx, kp = jax.random.split(key)
    B, C, L = 2, 1, 300  # packets of bytes; sequence longer than LEN_EXPAND
    x = jax.random.randint(kx, (B, C, L), 0, 256).astype(jnp.float32)
    conv_w, conv_b, fc_w, fc_b = init_params(kp)
    prepped = prepare_params(conv_w, conv_b, fc_w, fc_b)

    # reference first: x is donated into (and aliased with) the kernel call below
    ref = jax.block_until_ready(reference_forward(x, conv_w, conv_b, fc_w, fc_b))
    out = jax.block_until_ready(expand_bitpackets_forward(x, *prepped))

    assert out.shape == ref.shape and out.dtype == ref.dtype
    # tolerance covers bf16 weight/activation rounding only (outputs are O(50-150))
    assert bool(jnp.allclose(out[:, :, :LEN_EXPAND], ref[:, :, :LEN_EXPAND],
                             rtol=2e-2, atol=3.0)), "mismatch vs reference"
    # untouched tail of the sequence must be preserved exactly
    assert bool(jnp.array_equal(out[:, :, LEN_EXPAND:], ref[:, :, LEN_EXPAND:]))

    print("KERNEL_OK")
</pallas_src>

<mosaic_0001>
module attributes {stable_mosaic.version = 11 : i64} {
  func.func @_conv_kernel(%arg0: i32, %arg1: memref<1x64x208xbf16, #tpu.memory_space<vmem>>, %arg2: memref<32x64xbf16, #tpu.memory_space<vmem>>, %arg3: memref<32x208xf32, #tpu.memory_space<vmem>>, %arg4: memref<1x32x208xbf16, #tpu.memory_space<vmem>>) attributes {dimension_semantics = [#tpu.dimension_semantics<parallel>], iteration_bounds = array<i64: 2>, scalar_prefetch = 0 : i64, scratch_operands = 0 : i64, tpu.core_type = #tpu.core_type<tc>, window_params = [{transform_indices = @transform_0, window_bounds = array<i64: 1, 64, 208>}, {pipeline_mode = #tpu.pipeline_mode<synchronous>, transform_indices = @transform_1, window_bounds = array<i64: 32, 64>}, {pipeline_mode = #tpu.pipeline_mode<synchronous>, transform_indices = @transform_2, window_bounds = array<i64: 32, 208>}, {transform_indices = @transform_3, window_bounds = array<i64: 1, 32, 208>}]} {
    %c0 = arith.constant 0 : index
    %c0_0 = arith.constant 0 : index
    %0 = vector.load %arg2[%c0, %c0_0] : memref<32x64xbf16, #tpu.memory_space<vmem>>, vector<32x64xbf16>
    %c0_1 = arith.constant 0 : index
    %c0_2 = arith.constant 0 : index
    %c0_3 = arith.constant 0 : index
    %1 = vector.load %arg1[%c0_1, %c0_2, %c0_3] : memref<1x64x208xbf16, #tpu.memory_space<vmem>>, vector<1x64x208xbf16>
    %2 = vector.shape_cast %1 : vector<1x64x208xbf16> to vector<64x208xbf16>
    %cst = arith.constant dense<0.000000e+00> : vector<32x208xf32>
    %3 = tpu.matmul %0, %2, %cst {dimension_numbers = #tpu.dot_dimension_numbers<[1], [0], [0], [1], [0, 0, 1, 1], [], []>} : vector<32x64xbf16>, vector<64x208xbf16>, vector<32x208xf32> -> vector<32x208xf32>
    %c0_4 = arith.constant 0 : index
    %c0_5 = arith.constant 0 : index
    %4 = vector.load %arg3[%c0_4, %c0_5] : memref<32x208xf32, #tpu.memory_space<vmem>>, vector<32x208xf32>
    %5 = arith.addf %3, %4 : vector<32x208xf32>
    %6 = arith.truncf %5 : vector<32x208xf32> to vector<32x208xbf16>
    %c0_6 = arith.constant 0 : index
    %c0_7 = arith.constant 0 : index
    %c0_8 = arith.constant 0 : index
    %7 = vector.load %arg4[%c0_6, %c0_7, %c0_8] : memref<1x32x208xbf16, #tpu.memory_space<vmem>>, vector<1x32x208xbf16>
    %8 = vector.shape_cast %7 : vector<1x32x208xbf16> to vector<32x208xbf16>
    %9 = vector.shape_cast %6 : vector<32x208xbf16> to vector<1x32x208xbf16>
    tpu.vector_store %arg4[%c0_6, %c0_7, %c0_8], %9 {strides = array<i32>} : memref<1x32x208xbf16, #tpu.memory_space<vmem>>, vector<1x32x208xbf16>,
    return
  }
  func.func @transform_0(%arg0: i32) -> (i32, i32, i32) {
    %c0_i32 = arith.constant 0 : i32
    %c0_i32_0 = arith.constant 0 : i32
    %c0_i32_1 = arith.constant 0 : i32
    return %arg0, %c0_i32, %c0_i32_0 : i32, i32, i32
  }
  func.func @transform_1(%arg0: i32) -> (i32, i32) {
    %c0_i32 = arith.constant 0 : i32
    %c0_i32_0 = arith.constant 0 : i32
    %c0_i32_1 = arith.constant 0 : i32
    return %c0_i32, %c0_i32_0 : i32, i32
  }
  func.func @transform_2(%arg0: i32) -> (i32, i32) {
    %c0_i32 = arith.constant 0 : i32
    %c0_i32_0 = arith.constant 0 : i32
    %c0_i32_1 = arith.constant 0 : i32
    return %c0_i32, %c0_i32_0 : i32, i32
  }
  func.func @transform_3(%arg0: i32) -> (i32, i32, i32) {
    %c0_i32 = arith.constant 0 : i32
    %c0_i32_0 = arith.constant 0 : i32
    %c0_i32_1 = arith.constant 0 : i32
    return %arg0, %c0_i32, %c0_i32_0 : i32, i32, i32
  }
}

module attributes {stable_mosaic.version = 11 : i64} {
  func.func @_fc_kernel(%arg0: i32, %arg1: i32, %arg2: memref<2x6656xbf16, #tpu.memory_space<vmem>>, %arg3: memref<6656x128xbf16, #tpu.memory_space<vmem>>, %arg4: memref<1x128xf32, #tpu.memory_space<vmem>>, %arg5: memref<2x1x128xf32, #tpu.memory_space<vmem>>, %arg6: memref<2x1x128xf32, #tpu.memory_space<vmem>>) attributes {dimension_semantics = [#tpu.dimension_semantics<parallel>, #tpu.dimension_semantics<arbitrary>], iteration_bounds = array<i64: 2, 1>, scalar_prefetch = 0 : i64, scratch_operands = 0 : i64, tpu.core_type = #tpu.core_type<tc>, window_params = [{pipeline_mode = #tpu.pipeline_mode<synchronous>, transform_indices = @transform_0, window_bounds = array<i64: 2, 6656>}, {transform_indices = @transform_1, window_bounds = array<i64: 6656, 128>}, {transform_indices = @transform_2, window_bounds = array<i64: 1, 128>}, {transform_indices = @transform_3, window_bounds = array<i64: 2, 1, 128>}, {transform_indices = @transform_4, window_bounds = array<i64: 2, 1, 128>}]} {
    %c6656_i32 = arith.constant 6656 : i32
    %0 = arith.muli %arg1, %c6656_i32 : i32
    %1 = tpu.assume_multiple %0, 128 : i32
    %c0 = arith.constant 0 : index
    %2 = arith.index_cast %1 : i32 to index
    %3 = vector.load %arg2[%c0, %2] : memref<2x6656xbf16, #tpu.memory_space<vmem>>, vector<2x6656xbf16>
    %c0_0 = arith.constant 0 : index
    %c0_1 = arith.constant 0 : index
    %4 = vector.load %arg3[%c0_0, %c0_1] : memref<6656x128xbf16, #tpu.memory_space<vmem>>, vector<6656x128xbf16>
    %cst = arith.constant dense<0.000000e+00> : vector<2x128xf32>
    %5 = tpu.matmul %3, %4, %cst {dimension_numbers = #tpu.dot_dimension_numbers<[1], [0], [0], [1], [0, 0, 1, 1], [], []>} : vector<2x6656xbf16>, vector<6656x128xbf16>, vector<2x128xf32> -> vector<2x128xf32>
    %c0_i32 = arith.constant 0 : i32
    %6 = arith.cmpi eq, %arg1, %c0_i32 : i32
    %7 = arith.extui %6 : i1 to i32
    %c0_i32_2 = arith.constant 0 : i32
    %8 = arith.cmpi ne, %7, %c0_i32_2 : i32
    scf.if %8 {
      %c0_7 = arith.constant 0 : index
      %c0_8 = arith.constant 0 : index
      %c0_9 = arith.constant 0 : index
      %15 = vector.load %arg6[%c0_7, %c0_8, %c0_9] : memref<2x1x128xf32, #tpu.memory_space<vmem>>, vector<2x1x128xf32>
      %16 = vector.shape_cast %15 : vector<2x1x128xf32> to vector<2x128xf32>
      %17 = vector.shape_cast %5 : vector<2x128xf32> to vector<2x1x128xf32>
      tpu.vector_store %arg6[%c0_7, %c0_8, %c0_9], %17 {strides = array<i32>} : memref<2x1x128xf32, #tpu.memory_space<vmem>>, vector<2x1x128xf32>,
    } else {
    }
    %c0_i32_3 = arith.constant 0 : i32
    %9 = arith.cmpi sgt, %arg1, %c0_i32_3 : i32
    %10 = arith.extui %9 : i1 to i32
    %c0_i32_4 = arith.constant 0 : i32
    %11 = arith.cmpi ne, %10, %c0_i32_4 : i32
    scf.if %11 {
      %c0_7 = arith.constant 0 : index
      %c0_8 = arith.constant 0 : index
      %c0_9 = arith.constant 0 : index
      %15 = vector.load %arg6[%c0_7, %c0_8, %c0_9] : memref<2x1x128xf32, #tpu.memory_space<vmem>>, vector<2x1x128xf32>
      %16 = vector.shape_cast %15 : vector<2x1x128xf32> to vector<2x128xf32>
      %17 = arith.addf %16, %5 : vector<2x128xf32>
      %c0_10 = arith.constant 0 : index
      %c0_11 = arith.constant 0 : index
      %c0_12 = arith.constant 0 : index
      %18 = vector.load %arg6[%c0_10, %c0_11, %c0_12] : memref<2x1x128xf32, #tpu.memory_space<vmem>>, vector<2x1x128xf32>
      %19 = vector.shape_cast %18 : vector<2x1x128xf32> to vector<2x128xf32>
      %20 = vector.shape_cast %17 : vector<2x128xf32> to vector<2x1x128xf32>
      tpu.vector_store %arg6[%c0_10, %c0_11, %c0_12], %20 {strides = array<i32>} : memref<2x1x128xf32, #tpu.memory_space<vmem>>, vector<2x1x128xf32>,
    } else {
    }
    %c0_i32_5 = arith.constant 0 : i32
    %12 = arith.cmpi eq, %arg1, %c0_i32_5 : i32
    %13 = arith.extui %12 : i1 to i32
    %c0_i32_6 = arith.constant 0 : i32
    %14 = arith.cmpi ne, %13, %c0_i32_6 : i32
    scf.if %14 {
      %c128_i32 = arith.constant 128 : i32
      %15 = arith.muli %arg0, %c128_i32 : i32
      %16 = tpu.iota {dimensions = array<i32: 1>} : vector<2x128xi32>
      %17 = vector.broadcast %15 : i32 to vector<2x128xi32>
      %18 = arith.addi %17, %16 : vector<2x128xi32>
      %c0_7 = arith.constant 0 : index
      %c0_8 = arith.constant 0 : index
      %c0_9 = arith.constant 0 : index
      %19 = vector.load %arg6[%c0_7, %c0_8, %c0_9] : memref<2x1x128xf32, #tpu.memory_space<vmem>>, vector<2x1x128xf32>
      %20 = vector.shape_cast %19 : vector<2x1x128xf32> to vector<2x128xf32>
      %c0_10 = arith.constant 0 : index
      %c0_11 = arith.constant 0 : index
      %21 = vector.load %arg4[%c0_10, %c0_11] : memref<1x128xf32, #tpu.memory_space<vmem>>, vector<1x128xf32>
      %22 = vector.broadcast %21 : vector<1x128xf32> to vector<2x128xf32>
      %23 = arith.addf %20, %22 : vector<2x128xf32>
      %c256_i32 = arith.constant 256 : i32
      %24 = vector.broadcast %c256_i32 : i32 to vector<2x128xi32>
      %25 = arith.cmpi slt, %18, %24 : vector<2x128xi32>
      %c0_12 = arith.constant 0 : index
      %c0_13 = arith.constant 0 : index
      %c0_14 = arith.constant 0 : index
      %26 = vector.load %arg5[%c0_12, %c0_13, %c0_14] : memref<2x1x128xf32, #tpu.memory_space<vmem>>, vector<2x1x128xf32>
      %27 = vector.shape_cast %26 : vector<2x1x128xf32> to vector<2x128xf32>
      %28 = arith.select %25, %23, %27 : vector<2x128xi1>, vector<2x128xf32>
      %c0_15 = arith.constant 0 : index
      %c0_16 = arith.constant 0 : index
      %c0_17 = arith.constant 0 : index
      %29 = vector.load %arg6[%c0_15, %c0_16, %c0_17] : memref<2x1x128xf32, #tpu.memory_space<vmem>>, vector<2x1x128xf32>
      %30 = vector.shape_cast %29 : vector<2x1x128xf32> to vector<2x128xf32>
      %31 = vector.shape_cast %28 : vector<2x128xf32> to vector<2x1x128xf32>
      tpu.vector_store %arg6[%c0_15, %c0_16, %c0_17], %31 {strides = array<i32>} : memref<2x1x128xf32, #tpu.memory_space<vmem>>, vector<2x1x128xf32>,
    } else {
    }
    return
  }
  func.func @transform_0(%arg0: i32, %arg1: i32) -> (i32, i32) {
    %c0_i32 = arith.constant 0 : i32
    %c0_i32_0 = arith.constant 0 : i32
    %c0_i32_1 = arith.constant 0 : i32
    return %c0_i32, %c0_i32_0 : i32, i32
  }
  func.func @transform_1(%arg0: i32, %arg1: i32) -> (i32, i32) {
    %c0_i32 = arith.constant 0 : i32
    return %arg1, %arg0 : i32, i32
  }
  func.func @transform_2(%arg0: i32, %arg1: i32) -> (i32, i32) {
    %c0_i32 = arith.constant 0 : i32
    %c0_i32_0 = arith.constant 0 : i32
    return %c0_i32, %arg0 : i32, i32
  }
  func.func @transform_3(%arg0: i32, %arg1: i32) -> (i32, i32, i32) {
    %c0_i32 = arith.constant 0 : i32
    %c0_i32_0 = arith.constant 0 : i32
    %c0_i32_1 = arith.constant 0 : i32
    return %c0_i32, %c0_i32_0, %arg0 : i32, i32, i32
  }
  func.func @transform_4(%arg0: i32, %arg1: i32) -> (i32, i32, i32) {
    %c0_i32 = arith.constant 0 : i32
    %c0_i32_0 = arith.constant 0 : i32
    %c0_i32_1 = arith.constant 0 : i32
    return %c0_i32, %c0_i32_0, %arg0 : i32, i32, i32
  }
}

</mosaic_0001>

<llo_original>
// kernel: expand_bitpackets_forward.2
$region0: #{expand_bitpackets_forward.2}
  #allocation0 [shape = 'u32[]', space=smem, size = 0x4, offset = 0x4, fixed_abs, tag = 'smem constant byte address 0x4 - core index']
  #allocation1 [shape = 'u32[144,128]{1,0:T(1,128)}', space=vmem, size = 0x12000, scoped, tag = 'internal scratch']
  %s0 = inlined_call_operand.vmem [shape: bf16[2,64,208], index: 0, kind: input, shape index: {}]
  %s1 = inlined_call_operand.hbm [shape: bf16[32,64], index: 1, kind: input, shape index: {}]
  %s2 = inlined_call_operand.hbm [shape: f32[32,208], index: 2, kind: input, shape index: {}]
  %s3 = inlined_call_operand.vmem [shape: bf16[2,32,208], index: 3, kind: output, shape index: {}]
  %s4 = sld [smem:[#allocation0]]
  $region53: #{expand_bitpackets_forward.2} parent=0
    _
  %s6 = ssub.s32 1, %s4
  %s7 = scalar_select 0, %s6, %s4
  $region1: #{expand_bitpackets_forward.2} parent=0
    #allocation2 [shape = 'u8[8192]{0}', space=vmem, size = 0x2000, scoped, tag = 'input window, operand 1, single buffered']
    #allocation3 [shape = 's32[2]{0}', space=sflag, size = 0x8, scoped, tag = 'scoped memory for expand_bitpackets_forward.2']
    #allocation4 [shape = 'u8[32768]{0}', space=vmem, size = 0x8000, scoped, tag = 'input window, operand 2, single buffered']
    #allocation5 [shape = 's32[1]{0}', space=sflag, size = 0x4, scoped, tag = 'scoped memory for expand_bitpackets_forward.2']
    %8 = vsyncpa [#allocation3], 0
    %9 = vsyncpa [#allocation5], 0
    loop: start=0, step=1, limit=4
    $region2: #{expand_bitpackets_forward.2} parent=1 // loop_pre_header
      _
    $region3: #{expand_bitpackets_forward.2} parent=1 // loop_header
      %s11 = sphi 0, %s15
      %p12 = scmp.ge.s32.totalorder %s11, 4
      %s21 = sphi 0, %s23
      %s24 = sphi 0, %s21
      %s25 = sphi 0, %s24
      %s41 = sphi 0, %s25
      %s45 = sphi 0, %s45
      %s47 = sphi 0, %s45
      %s48 = sphi 0, %s47
      %s62 = sphi 0, %s48
      %s66 = sphi 0, %s66
      %s68 = sphi 0, %s66
      %s69 = sphi 0, %s68
      %s83 = sphi 0, %s69
      %s89 = sphi 0, %s91
      %s92 = sphi 0, %s89
      %s93 = sphi 0, %s92
      %s109 = sphi 0, %s93
    $region4: #{expand_bitpackets_forward.2} parent=1 // loop_header_branch
      %14 = sbr.rel (%p12) target = $region8
    $region5: #{expand_bitpackets_forward.2} parent=1 // loop_body
      %s16 = ssub.s32 %s11, 1
      %s17 = ssub.s32 %s11, 2
      %s18 = sadd.s32 %s11, 1
      %s19 = ssub.s32 %s11, %s18
      %p20 = scmp.eq.s32.totalorder %s19, 0
      %s22 = sadd.s32 %s21, 1
      %s23 = scalar_select %p20, %s21, %s22
      %p26 = pneg %p20
      %p27 = scmp.eq.s32.totalorder %s11, 1
      %p28 = por %p26, %p27
      %p29 = scmp.ne.s32.totalorder %s21, %s24
      %p30 = scmp.eq.s32.totalorder %s11, 0
      %p31 = por %p29, %p30
      %p32 = scmp.ne.s32.totalorder %s21, %s24
      %p33 = scmp.eq.s32.totalorder %s16, 1
      %p34 = por %p32, %p33
      %p35 = scmp.ne.s32.totalorder %s24, %s25
      %p36 = scmp.eq.s32.totalorder %s16, 0
      %p37 = por %p35, %p36
      %p38 = scmp.ne.s32.totalorder %s24, %s25
      %p39 = scmp.eq.s32.totalorder %s17, 1
      %p40 = por %p38, %p39
      %p42 = scmp.ne.s32.totalorder %s25, %s41
      %p43 = scmp.eq.s32.totalorder %s17, 0
      %p44 = por %p42, %p43
      %s46 = sadd.s32 %s45, 1
      %p49 = scmp.eq.s32.totalorder %s11, 1
      %p50 = scmp.ne.s32.totalorder %s45, %s47
      %p51 = scmp.eq.s32.totalorder %s11, 0
      %p52 = por %p50, %p51
      %p53 = scmp.ne.s32.totalorder %s45, %s47
      %p54 = scmp.eq.s32.totalorder %s16, 1
      %p55 = por %p53, %p54
      %p56 = scmp.ne.s32.totalorder %s47, %s48
      %p57 = scmp.eq.s32.totalorder %s16, 0
      %p58 = por %p56, %p57
      %p59 = scmp.ne.s32.totalorder %s47, %s48
      %p60 = scmp.eq.s32.totalorder %s17, 1
      %p61 = por %p59, %p60
      %p63 = scmp.ne.s32.totalorder %s48, %s62
      %p64 = scmp.eq.s32.totalorder %s17, 0
      %p65 = por %p63, %p64
      %s67 = sadd.s32 %s66, 1
      %p70 = scmp.eq.s32.totalorder %s11, 1
      %p71 = scmp.ne.s32.totalorder %s66, %s68
      %p72 = scmp.eq.s32.totalorder %s11, 0
      %p73 = por %p71, %p72
      %p74 = scmp.ne.s32.totalorder %s66, %s68
      %p75 = scmp.eq.s32.totalorder %s16, 1
      %p76 = por %p74, %p75
      %p77 = scmp.ne.s32.totalorder %s68, %s69
      %p78 = scmp.eq.s32.totalorder %s16, 0
      %p79 = por %p77, %p78
      %p80 = scmp.ne.s32.totalorder %s68, %s69
      %p81 = scmp.eq.s32.totalorder %s17, 1
      %p82 = por %p80, %p81
      %p84 = scmp.ne.s32.totalorder %s69, %s83
      %p85 = scmp.eq.s32.totalorder %s17, 0
      %p86 = por %p84, %p85
      %s87 = ssub.s32 %s11, %s18
      %p88 = scmp.eq.s32.totalorder %s87, 0
      %s90 = sadd.s32 %s89, 1
      %s91 = scalar_select %p88, %s89, %s90
      %p94 = pneg %p88
      %p95 = scmp.eq.s32.totalorder %s11, 1
      %p96 = por %p94, %p95
      %p97 = scmp.ne.s32.totalorder %s89, %s92
      %p98 = scmp.eq.s32.totalorder %s11, 0
      %p99 = por %p97, %p98
      %p100 = scmp.ne.s32.totalorder %s89, %s92
      %p101 = scmp.eq.s32.totalorder %s16, 1
      %p102 = por %p100, %p101
      %p103 = scmp.ne.s32.totalorder %s92, %s93
      %p104 = scmp.eq.s32.totalorder %s16, 0
      %p105 = por %p103, %p104
      %p106 = scmp.ne.s32.totalorder %s92, %s93
      %p107 = scmp.eq.s32.totalorder %s17, 1
      %p108 = por %p106, %p107
      %p110 = scmp.ne.s32.totalorder %s93, %s109
      %p111 = scmp.eq.s32.totalorder %s17, 0
      %p112 = por %p110, %p111
      %p113 = scmp.le.s32.totalorder 1, %s11
      %p114 = scmp.lt.s32.totalorder %s11, 3
      %p115 = pnand %p113, %p114
      %p116 = pneg %p115
      // Predicated region
      $region9: #{expand_bitpackets_forward.2} parent=5 // pred_check
        _
      $region10: #{expand_bitpackets_forward.2} parent=5 // pred_check_branch
        %118 = sbr.rel (%p115) target = $region12
      $region11: #{expand_bitpackets_forward.2} parent=5 // pred_region
        %s119 = ssub.s32 %s11, 1
        // Predicated region
        $region13: #{expand_bitpackets_forward.2} parent=11 // pred_check
          %p120 = pneg %p58
        $region14: #{expand_bitpackets_forward.2} parent=11 // pred_check_branch
          %122 = sbr.rel (%p120) target = $region16
        $region15: #{expand_bitpackets_forward.2} parent=11 // pred_region
          %s124 = ssub.s32 256, 256
          %125 = vsyncadd [#allocation3], %s124
          %s126 = sshll.u32 [#allocation2], 4
          %s127 = int_to_ptr.vmem [resolvable:$true] %s126
          %132 = dma.hbm_to_vmem [thread:$0]  %s1, 256, %s127, [#allocation3], 64, 64, 4
        $region16: #{expand_bitpackets_forward.2} parent=11 // pred_fallthru
          _
        // Predicated region
        $region17: #{expand_bitpackets_forward.2} parent=11 // pred_check
          %p133 = pneg %p79
        $region18: #{expand_bitpackets_forward.2} parent=11 // pred_check_branch
          %135 = sbr.rel (%p133) target = $region20
        $region19: #{expand_bitpackets_forward.2} parent=11 // pred_region
          %s137 = ssub.s32 1024, 1024
          %138 = vsyncadd [#allocation5], %s137
          %s139 = sshll.u32 [#allocation4], 4
          %s140 = int_to_ptr.vmem [resolvable:$true] %s139
          %145 = dma.hbm_to_vmem [thread:$0]  %s2, 1024, %s140, [#allocation5], 256, 256, 16
        $region20: #{expand_bitpackets_forward.2} parent=11 // pred_fallthru
          _
      $region12: #{expand_bitpackets_forward.2} parent=5 // pred_fallthru
        _
      %p146 = scmp.lt.s32.totalorder %s11, 2
      // Predicated region
      $region21: #{expand_bitpackets_forward.2} parent=5 // pred_check
        %p147 = pneg %p146
      $region22: #{expand_bitpackets_forward.2} parent=5 // pred_check_branch
        %149 = sbr.rel (%p147) target = $region24
      $region23: #{expand_bitpackets_forward.2} parent=5 // pred_region
        // Predicated region
        $region25: #{expand_bitpackets_forward.2} parent=23 // pred_check
          %p150 = pneg %p31
        $region26: #{expand_bitpackets_forward.2} parent=23 // pred_check_branch
          %152 = sbr.rel (%p150) target = $region28
        $region27: #{expand_bitpackets_forward.2} parent=23 // pred_region
          %p153 = scmp.lt.s32.totalorder %s11, 1
          %s154 = scalar_select %p153, %s11, 1
          %s155 = smul.addr %s154, 16
          %s156 = smul.addr %s155, 4
          %s157 = scalar_lea.vmem %s0, %s156
        $region28: #{expand_bitpackets_forward.2} parent=23 // pred_fallthru
          _
      $region24: #{expand_bitpackets_forward.2} parent=5 // pred_fallthru
        _
      %p158 = scmp.le.s32.totalorder 1, %s11
      %p159 = scmp.lt.s32.totalorder %s11, 3
      %p160 = pnand %p158, %p159
      %p161 = pneg %p160
      // Predicated region
      $region29: #{expand_bitpackets_forward.2} parent=5 // pred_check
        _
      $region30: #{expand_bitpackets_forward.2} parent=5 // pred_check_branch
        %163 = sbr.rel (%p160) target = $region32
      $region31: #{expand_bitpackets_forward.2} parent=5 // pred_region
        %s164 = ssub.s32 %s11, 1
        // Predicated region
        $region33: #{expand_bitpackets_forward.2} parent=31 // pred_check
          %p165 = pneg %p58
        $region34: #{expand_bitpackets_forward.2} parent=31 // pred_check_branch
          %167 = sbr.rel (%p165) target = $region36
        $region35: #{expand_bitpackets_forward.2} parent=31 // pred_region
          %168 = dma.done [#allocation3], 256
        $region36: #{expand_bitpackets_forward.2} parent=31 // pred_fallthru
          _
        // Predicated region
        $region37: #{expand_bitpackets_forward.2} parent=31 // pred_check
          %p169 = pneg %p79
        $region38: #{expand_bitpackets_forward.2} parent=31 // pred_check_branch
          %171 = sbr.rel (%p169) target = $region40
        $region39: #{expand_bitpackets_forward.2} parent=31 // pred_region
          %172 = dma.done [#allocation5], 1024
        $region40: #{expand_bitpackets_forward.2} parent=31 // pred_fallthru
          _
        %p173 = scmp.lt.s32.totalorder %s16, 1
        %s174 = scalar_select %p173, %s16, 1
        %s175 = smul.addr %s174, 16
        %s176 = smul.addr %s175, 4
        %s177 = scalar_lea.vmem %s0, %s176
        %p178 = pneg %p37
        %p179 = pneg %p34
        %p180 = pneg %p58
        %p181 = pneg %p55
        %p182 = pneg %p79
        %p183 = pneg %p76
        %p184 = pneg %p105
        %p185 = pneg %p102
        %p186 = scmp.lt.s32.totalorder %s16, 1
        %s187 = scalar_select %p186, %s16, 1
        %s188 = smul.addr %s187, 8
        %s189 = smul.addr %s188, 4
        %s190 = scalar_lea.vmem %s3, %s189
        %p191 = scmp.lt.s32.totalorder %s16, 1
        %s192 = scalar_select %p191, %s16, 1
        %s193 = smul.addr %s192, 16
        %s194 = smul.addr %s193, 4
        %s195 = scalar_lea.vmem %s0, %s194
        %p196 = scmp.lt.s32.totalorder %s16, 1
        %s197 = scalar_select %p196, %s16, 1
        %s198 = smul.addr %s197, 8
        %s199 = smul.addr %s198, 4
        %s200 = scalar_lea.vmem %s3, %s199
        %v202 = vld [vmem:[#allocation2] sm:$0xf]
        %v203 = vld [vmem:[#allocation2 + $0x4] sm:$0xf]
        %v204 = vld [vmem:[#allocation2 + $0x8] sm:$0xf]
        %v205 = vld [vmem:[#allocation2 + $0xc] sm:$0xf]
        %v206 = vld [vmem:[%s195] sm:$0xff]
        %v207 = vld [vmem:[%s195 + $0x8] sm:$0xff]
        %v208 = vld [vmem:[%s195 + $0x10] sm:$0xff]
        %v209 = vld [vmem:[%s195 + $0x18] sm:$0xff]
        %v210 = vld [vmem:[%s195 + $0x20] sm:$0xff]
        %v211 = vld [vmem:[%s195 + $0x28] sm:$0xff]
        %v212 = vld [vmem:[%s195 + $0x30] sm:$0xff]
        %v213 = vld [vmem:[%s195 + $0x38] sm:$0xff]
        %v214 = vld [vmem:[#allocation4] sm:$0xff]
        %v215 = vld [vmem:[#allocation4 + $0x8] sm:$0xff]
        %v216 = vld [vmem:[#allocation4 + $0x10] sm:$0xff]
        %v217 = vld [vmem:[#allocation4 + $0x18] sm:$0xff]
        %v218 = vld [vmem:[#allocation4 + $0x20] sm:$0xff]
        %v219 = vld [vmem:[#allocation4 + $0x28] sm:$0xff]
        %v220 = vld [vmem:[#allocation4 + $0x30] sm:$0xff]
        %v221 = vld [vmem:[#allocation4 + $0x38] sm:$0xff]
        %v226 = vunpack.c.l.b16 %v202
        %v227 = vunpack.c.l.b16 %v203
        %v228 = vunpack.c.l.b16 %v204
        %v229 = vunpack.c.l.b16 %v205
        %v230 = vpack.c.b16 %v227, %v226
        %v231 = vpack.c.b16 %v229, %v228
        %v240 = vunpack.c.l.b16 %v206
        %v241 = vunpack.c.h.b16 %v206
        %v242 = vunpack.c.l.b16 %v207
        %v243 = vunpack.c.h.b16 %v207
        %v244 = vunpack.c.l.b16 %v208
        %v245 = vunpack.c.h.b16 %v208
        %v246 = vunpack.c.l.b16 %v209
        %v247 = vunpack.c.h.b16 %v209
        %v248 = vunpack.c.l.b16 %v210
        %v249 = vunpack.c.h.b16 %v210
        %v250 = vunpack.c.l.b16 %v211
        %v251 = vunpack.c.h.b16 %v211
        %v252 = vunpack.c.l.b16 %v212
        %v253 = vunpack.c.h.b16 %v212
        %v254 = vunpack.c.l.b16 %v213
        %v255 = vunpack.c.h.b16 %v213
        %v256 = vpack.c.b16 %v242, %v240
        %v257 = vpack.c.b16 %v243, %v241
        %v258 = vpack.c.b16 %v246, %v244
        %v259 = vpack.c.b16 %v247, %v245
        %v260 = vpack.c.b16 %v250, %v248
        %v261 = vpack.c.b16 %v251, %v249
        %v262 = vpack.c.b16 %v254, %v252
        %v263 = vpack.c.b16 %v255, %v253
        %vm272 = vcmask 523264
        %v274 = vsel %vm272, %v230, 0
        %v277 = vsel %vm272, %v231, 0
        %279 = vmatprep.subr.bf16.mxu0 %v257
        %280 = vmatpush1.bf16.msra.mxu0 %v256
        %281 = vmatprep.subr.bf16.mxu0 %v259
        %282 = vmatpush1.bf16.msra.mxu0 %v258
        %283 = vmatprep.subr.bf16.mxu0 %v261
        %284 = vmatpush1.bf16.msra.mxu0 %v260
        %285 = vmatprep.subr.bf16.mxu0 %v263
        %286 = vmatpush1.bf16.msra.mxu0 %v262
        %287 = vmatprep.subr.bf16.mxu0 0
        %288 = vmatpush1.bf16.msra.mxu0 0
        %289 = vmatprep.subr.bf16.mxu0 0
        %290 = vmatpush1.bf16.msra.mxu0 0
        %291 = vmatprep.subr.bf16.mxu0 0
        %292 = vmatpush1.bf16.msra.mxu0 0
        %293 = vmatprep.subr.bf16.mxu0 0
        %294 = vmatpush1.bf16.msra.mxu0 0
        %295 = vmatprep.subr.bf16.mxu0 0
        %296 = vmatpush1.bf16.msra.mxu0 0
        %297 = vmatprep.subr.bf16.mxu0 0
        %298 = vmatpush1.bf16.msra.mxu0 0
        %299 = vmatprep.subr.bf16.mxu0 0
        %300 = vmatpush1.bf16.msra.mxu0 0
        %301 = vmatprep.subr.bf16.mxu0 0
        %302 = vmatpush1.bf16.msra.mxu0 0
        %303 = vmatprep.subr.bf16.mxu0 0
        %304 = vmatpush1.bf16.msra.mxu0 0
        %305 = vmatprep.subr.bf16.mxu0 0
        %306 = vmatpush1.bf16.msra.mxu0 0
        %307 = vmatprep.subr.bf16.mxu0 0
        %308 = vmatpush1.bf16.msra.mxu0 0
        %309 = vmatprep.subr.bf16.mxu0 0
        %310 = vmatpush1.bf16.msra.mxu0 0
        %311 = vmatprep.mubr.bf16.mxu0 0
        %312 = vmatmul.mubr.bf16.gmra.mrb[0].mxu0 %v274
        %v313 = vpop.f32.mrb[0].mxu0
        %v314 = vadd.f32 %v214, %v313
        %v315 = vpop.f32.mrb[0].mxu0
        %v316 = vadd.f32 %v215, %v315
        %v317 = vpop.f32.mrb[0].mxu0
        %v318 = vadd.f32 %v216, %v317
        %v319 = vpop.f32.mrb[0].mxu0
        %v320 = vadd.f32 %v217, %v319
        %321 = vmatprep.mubr.bf16.mxu0 0
        %322 = vmatmul.mubr.bf16.gmra.mrb[0].mxu0 %v277
        %v323 = vpop.f32.mrb[0].mxu0
        %v324 = vadd.f32 %v218, %v323
        %v325 = vpop.f32.mrb[0].mxu0
        %v326 = vadd.f32 %v219, %v325
        %v327 = vpop.f32.mrb[0].mxu0
        %v328 = vadd.f32 %v220, %v327
        %v329 = vpop.f32.mrb[0].mxu0
        %v330 = vadd.f32 %v221, %v329
        %331 = vdwg.mxu0
        %v332 = vpack.c.bf16 %v318, %v314
        %v333 = vpack.c.bf16 %v320, %v316
        %v334 = vpack.c.bf16 %v328, %v324
        %v335 = vpack.c.bf16 %v330, %v326
        %v340 = vunpack.c.l.b16 %v332
        %v341 = vunpack.c.l.b16 %v333
        %v342 = vunpack.c.h.b16 %v332
        %v343 = vunpack.c.h.b16 %v333
        %v344 = vunpack.c.l.b16 %v334
        %v345 = vunpack.c.l.b16 %v335
        %v346 = vunpack.c.h.b16 %v334
        %v347 = vunpack.c.h.b16 %v335
        %v348 = vpack.c.b16 %v341, %v340
        %v349 = vpack.c.b16 %v343, %v342
        %v350 = vpack.c.b16 %v345, %v344
        %v351 = vpack.c.b16 %v347, %v346
        %vm356 = vcmask 1043456
        %vm357 = vcmask 654340
        %vm358 = vmor %vm357, %vm356
        %359 = vst.msk [vmem:[%s200] sm:$0xff] %vm358, %v348
        %360 = vst.msk [vmem:[%s200 + $0x8] sm:$0xff] %vm358, %v349
        %361 = vst.msk [vmem:[%s200 + $0x10] sm:$0xff] %vm358, %v350
        %362 = vst.msk [vmem:[%s200 + $0x18] sm:$0xff] %vm358, %v351
        %p363 = scmp.lt.s32.totalorder %s16, 1
        %s364 = scalar_select %p363, %s16, 1
        %s365 = smul.addr %s364, 8
        %s366 = smul.addr %s365, 4
        %s367 = scalar_lea.vmem %s3, %s366
        // Predicated region
        $region41: #{expand_bitpackets_forward.2} parent=31 // pred_check
          %p368 = pneg %p102
        $region42: #{expand_bitpackets_forward.2} parent=31 // pred_check_branch
          %370 = sbr.rel (%p368) target = $region44
        $region43: #{expand_bitpackets_forward.2} parent=31 // pred_region
          _
        $region44: #{expand_bitpackets_forward.2} parent=31 // pred_fallthru
          _
      $region32: #{expand_bitpackets_forward.2} parent=5 // pred_fallthru
        _
      %p371 = scmp.le.s32.totalorder 2, %s11
      // Predicated region
      $region45: #{expand_bitpackets_forward.2} parent=5 // pred_check
        %p372 = pneg %p371
      $region46: #{expand_bitpackets_forward.2} parent=5 // pred_check_branch
        %374 = sbr.rel (%p372) target = $region48
      $region47: #{expand_bitpackets_forward.2} parent=5 // pred_region
        %s375 = ssub.s32 %s11, 2
        // Predicated region
        $region49: #{expand_bitpackets_forward.2} parent=47 // pred_check
          %p376 = pneg %p108
        $region50: #{expand_bitpackets_forward.2} parent=47 // pred_check_branch
          %378 = sbr.rel (%p376) target = $region52
        $region51: #{expand_bitpackets_forward.2} parent=47 // pred_region
          %p379 = scmp.lt.s32.totalorder %s17, 1
          %s380 = scalar_select %p379, %s17, 1
          %s381 = smul.addr %s380, 8
          %s382 = smul.addr %s381, 4
          %s383 = scalar_lea.vmem %s3, %s382
        $region52: #{expand_bitpackets_forward.2} parent=47 // pred_fallthru
          _
      $region48: #{expand_bitpackets_forward.2} parent=5 // pred_fallthru
        _
    $region6: #{expand_bitpackets_forward.2} parent=1 // loop_footer
      %s15 = sadd.s32 1, %s11
    $region7: #{expand_bitpackets_forward.2} parent=1 // loop_footer_branch
      %10 = sbr.rel target = $region3
    $region8: #{expand_bitpackets_forward.2} parent=1 // loop_exit
      _
    %384 = vsyncpa [#allocation3], 1
    %s385 = scalar_lea.sflag [#allocation3], 1
    %386 = vsyncpa %s385, 1
    %387 = vsyncpa [#allocation5], 1

// kernel: expand_bitpackets_forward.3
$region0: #{expand_bitpackets_forward.3}
  #allocation0 [shape = 'u32[]', space=smem, size = 0x4, offset = 0x4, fixed_abs, tag = 'smem constant byte address 0x4 - core index']
  #allocation1 [shape = 'u32[144,128]{1,0:T(1,128)}', space=vmem, size = 0x12000, scoped, tag = 'internal scratch']
  %s0 = inlined_call_operand.vmem [shape: bf16[2,6656], index: 0, kind: input, shape index: {}]
  %s1 = inlined_call_operand.hbm [shape: bf16[6656,256], index: 1, kind: input, shape index: {}]
  %s2 = inlined_call_operand.hbm [shape: f32[1,256], index: 2, kind: input, shape index: {}]
  %s3 = inlined_call_operand.hbm [shape: f32[2,1,300], index: 3, kind: input, shape index: {}, may-alias: {3,4}]
  %s4 = inlined_call_operand.hbm [shape: f32[2,1,300], index: 4, kind: output, shape index: {}, may-alias: {3,4}]
  %s5 = sld [smem:[#allocation0]]
  $region73: #{expand_bitpackets_forward.3} parent=0
    _
  %s7 = ssub.s32 1, %s5
  %s8 = scalar_select 0, %s7, %s5
  $region1: #{expand_bitpackets_forward.3} parent=0
    #allocation2 [shape = 'u8[3407872]{0}', space=vmem, size = 0x340000, scoped, tag = 'input window, operand 1']
    #allocation3 [shape = 's32[2]{0}', space=sflag, size = 0x8, scoped, tag = 'scoped memory for expand_bitpackets_forward.3']
    #allocation4 [shape = 's32[2]{0}', space=sflag, size = 0x8, scoped, tag = 'scoped memory for expand_bitpackets_forward.3']
    #allocation5 [shape = 'u8[1024]{0}', space=vmem, size = 0x400, scoped, tag = 'input window, operand 2']
    #allocation6 [shape = 's32[2]{0}', space=sflag, size = 0x8, scoped, tag = 'scoped memory for expand_bitpackets_forward.3']
    #allocation7 [shape = 'u8[2048]{0}', space=vmem, size = 0x800, scoped, tag = 'input window, operand 3']
    #allocation8 [shape = 'u8[2048]{0}', space=vmem, size = 0x800, scoped, tag = 'output window, operand 0']
    %9 = vsyncpa [#allocation3], 0
    %s10 = scalar_lea.sflag [#allocation3], 1
    %11 = vsyncpa %s10, 0
    %12 = vsyncpa [#allocation6], 0
    %s13 = scalar_lea.sflag [#allocation6], 1
    %14 = vsyncpa %s13, 0
    %15 = vsyncpa [#allocation4], 0
    %s16 = scalar_lea.sflag [#allocation4], 1
    %17 = vsyncpa %s16, 0
    loop: start=0, step=1, limit=4
    $region2: #{expand_bitpackets_forward.3} parent=1 // loop_pre_header
      _
    $region3: #{expand_bitpackets_forward.3} parent=1 // loop_header
      %s19 = sphi 0, %s23
      %p20 = scmp.ge.s32.totalorder %s19, 4
      %s26 = sphi 0, %s38
      %s27 = sphi 0, %s34
      %s28 = sphi 0, %s26
      %s29 = sphi 0, %s27
      %s30 = sphi 0, %s28
      %s31 = sphi 0, %s29
      %s39 = sphi 0, %s39
      %s41 = sphi 0, %s39
      %s42 = sphi 0, %s41
      %s56 = sphi 0, %s42
      %s64 = sphi 0, %s66
      %s67 = sphi 0, %s64
      %s68 = sphi 0, %s67
      %s84 = sphi 0, %s68
      %s90 = sphi 0, %s92
      %s93 = sphi 0, %s90
      %s94 = sphi 0, %s93
      %s110 = sphi 0, %s94
      %s116 = sphi 0, %s118
      %s119 = sphi 0, %s116
      %s120 = sphi 0, %s119
      %s136 = sphi 0, %s120
      %s142 = sphi 0, %s144
      %s145 = sphi 0, %s142
      %s146 = sphi 0, %s145
      %s162 = sphi 0, %s146
    $region4: #{expand_bitpackets_forward.3} parent=1 // loop_header_branch
      %22 = sbr.rel (%p20) target = $region8
    $region5: #{expand_bitpackets_forward.3} parent=1 // loop_body
      %s24 = ssub.s32 %s19, 1
      %s25 = ssub.s32 %s19, 2
      %s32 = sadd.s32 1, %s27
      %p33 = scmp.ge.s32.totalorder %s32, 1
      %s34 = scalar_select %p33, 0, %s32
      %s35 = sadd.s32 1, %s26
      %s36 = scalar_select %p33, %s35, %s26
      %p37 = scmp.ge.s32.totalorder %s36, 2
      %s38 = scalar_select %p37, 0, %s36
      %s40 = sadd.s32 %s39, 1
      %p43 = scmp.eq.s32.totalorder %s19, 1
      %p44 = scmp.ne.s32.totalorder %s39, %s41
      %p45 = scmp.eq.s32.totalorder %s19, 0
      %p46 = por %p44, %p45
      %p47 = scmp.ne.s32.totalorder %s39, %s41
      %p48 = scmp.eq.s32.totalorder %s24, 1
      %p49 = por %p47, %p48
      %p50 = scmp.ne.s32.totalorder %s41, %s42
      %p51 = scmp.eq.s32.totalorder %s24, 0
      %p52 = por %p50, %p51
      %p53 = scmp.ne.s32.totalorder %s41, %s42
      %p54 = scmp.eq.s32.totalorder %s25, 1
      %p55 = por %p53, %p54
      %p57 = scmp.ne.s32.totalorder %s42, %s56
      %p58 = scmp.eq.s32.totalorder %s25, 0
      %p59 = por %p57, %p58
      %s60 = ssub.s32 %s27, %s34
      %s61 = ssub.s32 %s26, %s38
      %s62 = sor.u32 %s60, %s61
      %p63 = scmp.eq.s32.totalorder %s62, 0
      %s65 = sadd.s32 %s64, 1
      %s66 = scalar_select %p63, %s64, %s65
      %p69 = pneg %p63
      %p70 = scmp.eq.s32.totalorder %s19, 1
      %p71 = por %p69, %p70
      %p72 = scmp.ne.s32.totalorder %s64, %s67
      %p73 = scmp.eq.s32.totalorder %s19, 0
      %p74 = por %p72, %p73
      %p75 = scmp.ne.s32.totalorder %s64, %s67
      %p76 = scmp.eq.s32.totalorder %s24, 1
      %p77 = por %p75, %p76
      %p78 = scmp.ne.s32.totalorder %s67, %s68
      %p79 = scmp.eq.s32.totalorder %s24, 0
      %p80 = por %p78, %p79
      %p81 = scmp.ne.s32.totalorder %s67, %s68
      %p82 = scmp.eq.s32.totalorder %s25, 1
      %p83 = por %p81, %p82
      %p85 = scmp.ne.s32.totalorder %s68, %s84
      %p86 = scmp.eq.s32.totalorder %s25, 0
      %p87 = por %p85, %p86
      %s88 = ssub.s32 %s26, %s38
      %p89 = scmp.eq.s32.totalorder %s88, 0
      %s91 = sadd.s32 %s90, 1
      %s92 = scalar_select %p89, %s90, %s91
      %p95 = pneg %p89
      %p96 = scmp.eq.s32.totalorder %s19, 1
      %p97 = por %p95, %p96
      %p98 = scmp.ne.s32.totalorder %s90, %s93
      %p99 = scmp.eq.s32.totalorder %s19, 0
      %p100 = por %p98, %p99
      %p101 = scmp.ne.s32.totalorder %s90, %s93
      %p102 = scmp.eq.s32.totalorder %s24, 1
      %p103 = por %p101, %p102
      %p104 = scmp.ne.s32.totalorder %s93, %s94
      %p105 = scmp.eq.s32.totalorder %s24, 0
      %p106 = por %p104, %p105
      %p107 = scmp.ne.s32.totalorder %s93, %s94
      %p108 = scmp.eq.s32.totalorder %s25, 1
      %p109 = por %p107, %p108
      %p111 = scmp.ne.s32.totalorder %s94, %s110
      %p112 = scmp.eq.s32.totalorder %s25, 0
      %p113 = por %p111, %p112
      %s114 = ssub.s32 %s26, %s38
      %p115 = scmp.eq.s32.totalorder %s114, 0
      %s117 = sadd.s32 %s116, 1
      %s118 = scalar_select %p115, %s116, %s117
      %p121 = pneg %p115
      %p122 = scmp.eq.s32.totalorder %s19, 1
      %p123 = por %p121, %p122
      %p124 = scmp.ne.s32.totalorder %s116, %s119
      %p125 = scmp.eq.s32.totalorder %s19, 0
      %p126 = por %p124, %p125
      %p127 = scmp.ne.s32.totalorder %s116, %s119
      %p128 = scmp.eq.s32.totalorder %s24, 1
      %p129 = por %p127, %p128
      %p130 = scmp.ne.s32.totalorder %s119, %s120
      %p131 = scmp.eq.s32.totalorder %s24, 0
      %p132 = por %p130, %p131
      %p133 = scmp.ne.s32.totalorder %s119, %s120
      %p134 = scmp.eq.s32.totalorder %s25, 1
      %p135 = por %p133, %p134
      %p137 = scmp.ne.s32.totalorder %s120, %s136
      %p138 = scmp.eq.s32.totalorder %s25, 0
      %p139 = por %p137, %p138
      %s140 = ssub.s32 %s26, %s38
      %p141 = scmp.eq.s32.totalorder %s140, 0
      %s143 = sadd.s32 %s142, 1
      %s144 = scalar_select %p141, %s142, %s143
      %p147 = pneg %p141
      %p148 = scmp.eq.s32.totalorder %s19, 1
      %p149 = por %p147, %p148
      %p150 = scmp.ne.s32.totalorder %s142, %s145
      %p151 = scmp.eq.s32.totalorder %s19, 0
      %p152 = por %p150, %p151
      %p153 = scmp.ne.s32.totalorder %s142, %s145
      %p154 = scmp.eq.s32.totalorder %s24, 1
      %p155 = por %p153, %p154
      %p156 = scmp.ne.s32.totalorder %s145, %s146
      %p157 = scmp.eq.s32.totalorder %s24, 0
      %p158 = por %p156, %p157
      %p159 = scmp.ne.s32.totalorder %s145, %s146
      %p160 = scmp.eq.s32.totalorder %s25, 1
      %p161 = por %p159, %p160
      %p163 = scmp.ne.s32.totalorder %s146, %s162
      %p164 = scmp.eq.s32.totalorder %s25, 0
      %p165 = por %p163, %p164
      %p166 = scmp.le.s32.totalorder 1, %s19
      %p167 = scmp.lt.s32.totalorder %s19, 3
      %p168 = pnand %p166, %p167
      %p169 = pneg %p168
      // Predicated region
      $region9: #{expand_bitpackets_forward.3} parent=5 // pred_check
        _
      $region10: #{expand_bitpackets_forward.3} parent=5 // pred_check_branch
        %171 = sbr.rel (%p168) target = $region12
      $region11: #{expand_bitpackets_forward.3} parent=5 // pred_region
        %s172 = ssub.s32 %s19, 1
        // Predicated region
        $region13: #{expand_bitpackets_forward.3} parent=11 // pred_check
          %p173 = pneg %p52
        $region14: #{expand_bitpackets_forward.3} parent=11 // pred_check_branch
          %175 = sbr.rel (%p173) target = $region16
        $region15: #{expand_bitpackets_forward.3} parent=11 // pred_region
          _
        $region16: #{expand_bitpackets_forward.3} parent=11 // pred_fallthru
          _
      $region12: #{expand_bitpackets_forward.3} parent=5 // pred_fallthru
        _
      %p176 = scmp.lt.s32.totalorder %s19, 2
      // Predicated region
      $region17: #{expand_bitpackets_forward.3} parent=5 // pred_check
        %p177 = pneg %p176
      $region18: #{expand_bitpackets_forward.3} parent=5 // pred_check_branch
        %179 = sbr.rel (%p177) target = $region20
      $region19: #{expand_bitpackets_forward.3} parent=5 // pred_region
        // Predicated region
        $region21: #{expand_bitpackets_forward.3} parent=19 // pred_check
          %p180 = pneg %p74
        $region22: #{expand_bitpackets_forward.3} parent=19 // pred_check_branch
          %182 = sbr.rel (%p180) target = $region24
        $region23: #{expand_bitpackets_forward.3} parent=19 // pred_region
          %s183 = sand.u32 %s64, 1
          %s184 = scalar_lea.sflag [#allocation3], %s183
          %s185 = sand.u32 %s64, 1
          %s186 = smul.addr %s185, 3328
          %s187 = scalar_lea.vmem [#allocation2], %s186
          %s188 = smul.u32 832, %s27
          %s190 = ssub.s32 53248, 53248
          %191 = vsyncadd %s184, %s190
          %s192 = smul.addr %s188, 2
          %s193 = sadd.s32 %s26, %s192
          %s194 = smul.addr %s193, 64
          %s195 = scalar_lea.hbm %s1, %s194
          %s196 = sshll.u32 %s187, 4
          %s197 = int_to_ptr.vmem [resolvable:$true] %s196
          %202 = dma.hbm_to_vmem [thread:$0]  %s195, 53248, %s197, %s184, 128, 64, 4
        $region24: #{expand_bitpackets_forward.3} parent=19 // pred_fallthru
          _
        // Predicated region
        $region25: #{expand_bitpackets_forward.3} parent=19 // pred_check
          %p203 = pneg %p100
        $region26: #{expand_bitpackets_forward.3} parent=19 // pred_check_branch
          %205 = sbr.rel (%p203) target = $region28
        $region27: #{expand_bitpackets_forward.3} parent=19 // pred_region
          %s206 = sand.u32 %s19, 1
          %s207 = scalar_lea.sflag [#allocation6], %s206
          %s208 = sand.u32 %s90, 1
          %s209 = scalar_lea.vmem [#allocation5], %s208
          %s211 = ssub.s32 16, 16
          %212 = vsyncadd %s207, %s211
          %s213 = smul.addr %s26, 16
          %s214 = scalar_lea.hbm %s2, %s213
          %s216 = sshll.u32 %s209, 4
          %s217 = int_to_ptr.vmem [resolvable:$true] %s216
          %219 = dma.hbm_to_vmem [thread:$0]  %s214, 16, %s217, %s207
        $region28: #{expand_bitpackets_forward.3} parent=19 // pred_fallthru
          _
        // Predicated region
        $region29: #{expand_bitpackets_forward.3} parent=19 // pred_check
          %p220 = pneg %p126
        $region30: #{expand_bitpackets_forward.3} parent=19 // pred_check_branch
          %222 = sbr.rel (%p220) target = $region32
        $region31: #{expand_bitpackets_forward.3} parent=19 // pred_region
          %s223 = sand.u32 %s19, 1
          %s224 = scalar_lea.sflag [#allocation6], %s223
          %s225 = sand.u32 %s116, 1
          %s226 = smul.addr %s225, 2
          %s227 = scalar_lea.vmem [#allocation7], %s226
          %s229 = ssub.s32 32, 32
          %230 = vsyncadd %s224, %s229
          %s231 = smul.addr %s26, 16
          %s232 = scalar_lea.hbm %s3, %s231
          %s233 = sshll.u32 %s227, 4
          %s234 = int_to_ptr.vmem [resolvable:$true] %s233
          %239 = dma.hbm_to_vmem [thread:$0]  %s232, 32, %s234, %s224, 48, 16, 1
        $region32: #{expand_bitpackets_forward.3} parent=19 // pred_fallthru
          _
      $region20: #{expand_bitpackets_forward.3} parent=5 // pred_fallthru
        _
      %p240 = scmp.le.s32.totalorder 1, %s19
      %p241 = scmp.lt.s32.totalorder %s19, 3
      %p242 = pnand %p240, %p241
      %p243 = pneg %p242
      // Predicated region
      $region33: #{expand_bitpackets_forward.3} parent=5 // pred_check
        _
      $region34: #{expand_bitpackets_forward.3} parent=5 // pred_check_branch
        %245 = sbr.rel (%p242) target = $region36
      $region35: #{expand_bitpackets_forward.3} parent=5 // pred_region
        %s246 = ssub.s32 %s19, 1
        %s247 = sand.u32 %s67, 1
        %s248 = scalar_lea.sflag [#allocation3], %s247
        %s249 = sand.u32 %s67, 1
        %s250 = smul.addr %s249, 3328
        %s251 = scalar_lea.vmem [#allocation2], %s250
        // Predicated region
        $region37: #{expand_bitpackets_forward.3} parent=35 // pred_check
          %p252 = pneg %p80
        $region38: #{expand_bitpackets_forward.3} parent=35 // pred_check_branch
          %254 = sbr.rel (%p252) target = $region40
        $region39: #{expand_bitpackets_forward.3} parent=35 // pred_region
          %255 = dma.done %s248, 53248
        $region40: #{expand_bitpackets_forward.3} parent=35 // pred_fallthru
          _
        %s256 = sand.u32 %s24, 1
        %s257 = scalar_lea.sflag [#allocation6], %s256
        %s258 = sand.u32 %s93, 1
        %s259 = scalar_lea.vmem [#allocation5], %s258
        // Predicated region
        $region41: #{expand_bitpackets_forward.3} parent=35 // pred_check
          %p260 = pneg %p106
        $region42: #{expand_bitpackets_forward.3} parent=35 // pred_check_branch
          %262 = sbr.rel (%p260) target = $region44
        $region43: #{expand_bitpackets_forward.3} parent=35 // pred_region
          %263 = dma.done %s257, 16
        $region44: #{expand_bitpackets_forward.3} parent=35 // pred_fallthru
          _
        %s264 = sand.u32 %s24, 1
        %s265 = scalar_lea.sflag [#allocation6], %s264
        %s266 = sand.u32 %s119, 1
        %s267 = smul.addr %s266, 2
        %s268 = scalar_lea.vmem [#allocation7], %s267
        // Predicated region
        $region45: #{expand_bitpackets_forward.3} parent=35 // pred_check
          %p269 = pneg %p132
        $region46: #{expand_bitpackets_forward.3} parent=35 // pred_check_branch
          %271 = sbr.rel (%p269) target = $region48
        $region47: #{expand_bitpackets_forward.3} parent=35 // pred_region
          %272 = dma.done %s265, 32
        $region48: #{expand_bitpackets_forward.3} parent=35 // pred_fallthru
          _
        %p273 = pneg %p52
        %p274 = pneg %p49
        %s275 = sand.u32 %s67, 1
        %s276 = scalar_lea.sflag [#allocation3], %s275
        %s277 = sand.u32 %s67, 1
        %s278 = smul.addr %s277, 3328
        %s279 = scalar_lea.vmem [#allocation2], %s278
        %p280 = pneg %p80
        %p281 = pneg %p77
        %s282 = sand.u32 %s24, 1
        %s283 = scalar_lea.sflag [#allocation6], %s282
        %s284 = sand.u32 %s93, 1
        %s285 = scalar_lea.vmem [#allocation5], %s284
        %p286 = pneg %p106
        %p287 = pneg %p103
        %s288 = sand.u32 %s24, 1
        %s289 = scalar_lea.sflag [#allocation6], %s288
        %s290 = sand.u32 %s119, 1
        %s291 = smul.addr %s290, 2
        %s292 = scalar_lea.vmem [#allocation7], %s291
        %p293 = pneg %p132
        %p294 = pneg %p129
        %p295 = pneg %p158
        %p296 = pneg %p155
        %s297 = sand.u32 %s145, 1
        %s298 = scalar_lea.sflag [#allocation4], %s297
        %s299 = sand.u32 %s145, 1
        %s300 = smul.addr %s299, 2
        %s301 = scalar_lea.vmem [#allocation8], %s300
        %s302 = smul.u32 832, %s29
        %s304 = smul.u32 %s29, 6656
        %s305 = sshra.s32 %s304, 7
        %s306 = sand.u32 %s304, 127
        %s307 = scalar_lea.vmem %s0, %s305
        %v308 = vld [vmem:[%s307] sm:$0xff]
        %v309 = vld [vmem:[%s307 + $0x8] sm:$0xff]
        %v310 = vld [vmem:[%s307 + $0x10] sm:$0xff]
        %v311 = vld [vmem:[%s307 + $0x18] sm:$0xff]
        %v312 = vld [vmem:[%s307 + $0x20] sm:$0xff]
        %v313 = vld [vmem:[%s307 + $0x28] sm:$0xff]
        %v314 = vld [vmem:[%s307 + $0x30] sm:$0xf]
        %v315 = vld [vmem:[%s251] sm:$0xf]
        %v316 = vld [vmem:[%s251 + $0x4] sm:$0xf]
        %v317 = vld [vmem:[%s251 + $0x8] sm:$0xf]
        %v318 = vld [vmem:[%s251 + $0xc] sm:$0xf]
        %v319 = vld [vmem:[%s251 + $0x10] sm:$0xf]
        %v320 = vld [vmem:[%s251 + $0x14] sm:$0xf]
        %v321 = vld [vmem:[%s251 + $0x18] sm:$0xf]
        %v322 = vld [vmem:[%s251 + $0x1c] sm:$0xf]
        %v323 = vld [vmem:[%s251 + $0x20] sm:$0xf]
        %v324 = vld [vmem:[%s251 + $0x24] sm:$0xf]
        %v325 = vld [vmem:[%s251 + $0x28] sm:$0xf]
        %v326 = vld [vmem:[%s251 + $0x2c] sm:$0xf]
        %v327 = vld [vmem:[%s251 + $0x30] sm:$0xf]
        %v328 = vld [vmem:[%s251 + $0x34] sm:$0xf]
        %v329 = vld [vmem:[%s251 + $0x38] sm:$0xf]
        %v330 = vld [vmem:[%s251 + $0x3c] sm:$0xf]
        %v331 = vld [vmem:[%s251 + $0x40] sm:$0xf]
        %v332 = vld [vmem:[%s251 + $0x44] sm:$0xf]
        %v333 = vld [vmem:[%s251 + $0x48] sm:$0xf]
        %v334 = vld [vmem:[%s251 + $0x4c] sm:$0xf]
        %v335 = vld [vmem:[%s251 + $0x50] sm:$0xf]
        %v336 = vld [vmem:[%s251 + $0x54] sm:$0xf]
        %v337 = vld [vmem:[%s251 + $0x58] sm:$0xf]
        %v338 = vld [vmem:[%s251 + $0x5c] sm:$0xf]
        %v339 = vld [vmem:[%s251 + $0x60] sm:$0xf]
        %v340 = vld [vmem:[%s251 + $0x64] sm:$0xf]
        %v341 = vld [vmem:[%s251 + $0x68] sm:$0xf]
        %v342 = vld [vmem:[%s251 + $0x6c] sm:$0xf]
        %v343 = vld [vmem:[%s251 + $0x70] sm:$0xf]
        %v344 = vld [vmem:[%s251 + $0x74] sm:$0xf]
        %v345 = vld [vmem:[%s251 + $0x78] sm:$0xf]
        %v346 = vld [vmem:[%s251 + $0x7c] sm:$0xf]
        %v347 = vld [vmem:[%s251 + $0x80] sm:$0xf]
        %v348 = vld [vmem:[%s251 + $0x84] sm:$0xf]
        %v349 = vld [vmem:[%s251 + $0x88] sm:$0xf]
        %v350 = vld [vmem:[%s251 + $0x8c] sm:$0xf]
        %v351 = vld [vmem:[%s251 + $0x90] sm:$0xf]
        %v352 = vld [vmem:[%s251 + $0x94] sm:$0xf]
        %v353 = vld [vmem:[%s251 + $0x98] sm:$0xf]
        %v354 = vld [vmem:[%s251 + $0x9c] sm:$0xf]
        %v355 = vld [vmem:[%s251 + $0xa0] sm:$0xf]
        %v356 = vld [vmem:[%s251 + $0xa4] sm:$0xf]
        %v357 = vld [vmem:[%s251 + $0xa8] sm:$0xf]
        %v358 = vld [vmem:[%s251 + $0xac] sm:$0xf]
        %v359 = vld [vmem:[%s251 + $0xb0] sm:$0xf]
        %v360 = vld [vmem:[%s251 + $0xb4] sm:$0xf]
        %v361 = vld [vmem:[%s251 + $0xb8] sm:$0xf]
        %v362 = vld [vmem:[%s251 + $0xbc] sm:$0xf]
        %v363 = vld [vmem:[%s251 + $0xc0] sm:$0xf]
        %v364 = vld [vmem:[%s251 + $0xc4] sm:$0xf]
        %v365 = vld [vmem:[%s251 + $0xc8] sm:$0xf]
        %v366 = vld [vmem:[%s251 + $0xcc] sm:$0xf]
        %v367 = vld [vmem:[%s251 + $0xd0] sm:$0xf]
        %v368 = vld [vmem:[%s251 + $0xd4] sm:$0xf]
        %v369 = vld [vmem:[%s251 + $0xd8] sm:$0xf]
        %v370 = vld [vmem:[%s251 + $0xdc] sm:$0xf]
        %v371 = vld [vmem:[%s251 + $0xe0] sm:$0xf]
        %v372 = vld [vmem:[%s251 + $0xe4] sm:$0xf]
        %v373 = vld [vmem:[%s251 + $0xe8] sm:$0xf]
        %v374 = vld [vmem:[%s251 + $0xec] sm:$0xf]
        %v375 = vld [vmem:[%s251 + $0xf0] sm:$0xf]
        %v376 = vld [vmem:[%s251 + $0xf4] sm:$0xf]
        %v377 = vld [vmem:[%s251 + $0xf8] sm:$0xf]
        %v378 = vld [vmem:[%s251 + $0xfc] sm:$0xf]
        %v379 = vld [vmem:[%s251 + $0x100] sm:$0xf]
        %v380 = vld [vmem:[%s251 + $0x104] sm:$0xf]
        %v381 = vld [vmem:[%s251 + $0x108] sm:$0xf]
        %v382 = vld [vmem:[%s251 + $0x10c] sm:$0xf]
        %v383 = vld [vmem:[%s251 + $0x110] sm:$0xf]
        %v384 = vld [vmem:[%s251 + $0x114] sm:$0xf]
        %v385 = vld [vmem:[%s251 + $0x118] sm:$0xf]
        %v386 = vld [vmem:[%s251 + $0x11c] sm:$0xf]
        %v387 = vld [vmem:[%s251 + $0x120] sm:$0xf]
        %v388 = vld [vmem:[%s251 + $0x124] sm:$0xf]
        %v389 = vld [vmem:[%s251 + $0x128] sm:$0xf]
        %v390 = vld [vmem:[%s251 + $0x12c] sm:$0xf]
        %v391 = vld [vmem:[%s251 + $0x130] sm:$0xf]
        %v392 = vld [vmem:[%s251 + $0x134] sm:$0xf]
        %v393 = vld [vmem:[%s251 + $0x138] sm:$0xf]
        %v394 = vld [vmem:[%s251 + $0x13c] sm:$0xf]
        %v395 = vld [vmem:[%s251 + $0x140] sm:$0xf]
        %v396 = vld [vmem:[%s251 + $0x144] sm:$0xf]
        %v397 = vld [vmem:[%s251 + $0x148] sm:$0xf]
        %v398 = vld [vmem:[%s251 + $0x14c] sm:$0xf]
        %v399 = vld [vmem:[%s251 + $0x150] sm:$0xf]
        %v400 = vld [vmem:[%s251 + $0x154] sm:$0xf]
        %v401 = vld [vmem:[%s251 + $0x158] sm:$0xf]
        %v402 = vld [vmem:[%s251 + $0x15c] sm:$0xf]
        %v403 = vld [vmem:[%s251 + $0x160] sm:$0xf]
        %v404 = vld [vmem:[%s251 + $0x164] sm:$0xf]
        %v405 = vld [vmem:[%s251 + $0x168] sm:$0xf]
        %v406 = vld [vmem:[%s251 + $0x16c] sm:$0xf]
        %v407 = vld [vmem:[%s251 + $0x170] sm:$0xf]
        %v408 = vld [vmem:[%s251 + $0x174] sm:$0xf]
        %v409 = vld [vmem:[%s251 + $0x178] sm:$0xf]
        %v410 = vld [vmem:[%s251 + $0x17c] sm:$0xf]
        %v411 = vld [vmem:[%s251 + $0x180] sm:$0xf]
        %v412 = vld [vmem:[%s251 + $0x184] sm:$0xf]
        %v413 = vld [vmem:[%s251 + $0x188] sm:$0xf]
        %v414 = vld [vmem:[%s251 + $0x18c] sm:$0xf]
        %v415 = vld [vmem:[%s251 + $0x190] sm:$0xf]
        %v416 = vld [vmem:[%s251 + $0x194] sm:$0xf]
        %v417 = vld [vmem:[%s251 + $0x198] sm:$0xf]
        %v418 = vld [vmem:[%s251 + $0x19c] sm:$0xf]
        %v419 = vld [vmem:[%s251 + $0x1a0] sm:$0xf]
        %v420 = vld [vmem:[%s251 + $0x1a4] sm:$0xf]
        %v421 = vld [vmem:[%s251 + $0x1a8] sm:$0xf]
        %v422 = vld [vmem:[%s251 + $0x1ac] sm:$0xf]
        %v423 = vld [vmem:[%s251 + $0x1b0] sm:$0xf]
        %v424 = vld [vmem:[%s251 + $0x1b4] sm:$0xf]
        %v425 = vld [vmem:[%s251 + $0x1b8] sm:$0xf]
        %v426 = vld [vmem:[%s251 + $0x1bc] sm:$0xf]
        %v427 = vld [vmem:[%s251 + $0x1c0] sm:$0xf]
        %v428 = vld [vmem:[%s251 + $0x1c4] sm:$0xf]
        %v429 = vld [vmem:[%s251 + $0x1c8] sm:$0xf]
        %v430 = vld [vmem:[%s251 + $0x1cc] sm:$0xf]
        %v431 = vld [vmem:[%s251 + $0x1d0] sm:$0xf]
        %v432 = vld [vmem:[%s251 + $0x1d4] sm:$0xf]
        %v433 = vld [vmem:[%s251 + $0x1d8] sm:$0xf]
        %v434 = vld [vmem:[%s251 + $0x1dc] sm:$0xf]
        %v435 = vld [vmem:[%s251 + $0x1e0] sm:$0xf]
        %v436 = vld [vmem:[%s251 + $0x1e4] sm:$0xf]
        %v437 = vld [vmem:[%s251 + $0x1e8] sm:$0xf]
        %v438 = vld [vmem:[%s251 + $0x1ec] sm:$0xf]
        %v439 = vld [vmem:[%s251 + $0x1f0] sm:$0xf]
        %v440 = vld [vmem:[%s251 + $0x1f4] sm:$0xf]
        %v441 = vld [vmem:[%s251 + $0x1f8] sm:$0xf]
        %v442 = vld [vmem:[%s251 + $0x1fc] sm:$0xf]
        %v443 = vld [vmem:[%s251 + $0x200] sm:$0xf]
        %v444 = vld [vmem:[%s251 + $0x204] sm:$0xf]
        %v445 = vld [vmem:[%s251 + $0x208] sm:$0xf]
        %v446 = vld [vmem:[%s251 + $0x20c] sm:$0xf]
        %v447 = vld [vmem:[%s251 + $0x210] sm:$0xf]
        %v448 = vld [vmem:[%s251 + $0x214] sm:$0xf]
        %v449 = vld [vmem:[%s251 + $0x218] sm:$0xf]
        %v450 = vld [vmem:[%s251 + $0x21c] sm:$0xf]
        %v451 = vld [vmem:[%s251 + $0x220] sm:$0xf]
        %v452 = vld [vmem:[%s251 + $0x224] sm:$0xf]
        %v453 = vld [vmem:[%s251 + $0x228] sm:$0xf]
        %v454 = vld [vmem:[%s251 + $0x22c] sm:$0xf]
        %v455 = vld [vmem:[%s251 + $0x230] sm:$0xf]
        %v456 = vld [vmem:[%s251 + $0x234] sm:$0xf]
        %v457 = vld [vmem:[%s251 + $0x238] sm:$0xf]
        %v458 = vld [vmem:[%s251 + $0x23c] sm:$0xf]
        %v459 = vld [vmem:[%s251 + $0x240] sm:$0xf]
        %v460 = vld [vmem:[%s251 + $0x244] sm:$0xf]
        %v461 = vld [vmem:[%s251 + $0x248] sm:$0xf]
        %v462 = vld [vmem:[%s251 + $0x24c] sm:$0xf]
        %v463 = vld [vmem:[%s251 + $0x250] sm:$0xf]
        %v464 = vld [vmem:[%s251 + $0x254] sm:$0xf]
        %v465 = vld [vmem:[%s251 + $0x258] sm:$0xf]
        %v466 = vld [vmem:[%s251 + $0x25c] sm:$0xf]
        %v467 = vld [vmem:[%s251 + $0x260] sm:$0xf]
        %v468 = vld [vmem:[%s251 + $0x264] sm:$0xf]
        %v469 = vld [vmem:[%s251 + $0x268] sm:$0xf]
        %v470 = vld [vmem:[%s251 + $0x26c] sm:$0xf]
        %v471 = vld [vmem:[%s251 + $0x270] sm:$0xf]
        %v472 = vld [vmem:[%s251 + $0x274] sm:$0xf]
        %v473 = vld [vmem:[%s251 + $0x278] sm:$0xf]
        %v474 = vld [vmem:[%s251 + $0x27c] sm:$0xf]
        %v475 = vld [vmem:[%s251 + $0x280] sm:$0xf]
        %v476 = vld [vmem:[%s251 + $0x284] sm:$0xf]
        %v477 = vld [vmem:[%s251 + $0x288] sm:$0xf]
        %v478 = vld [vmem:[%s251 + $0x28c] sm:$0xf]
        %v479 = vld [vmem:[%s251 + $0x290] sm:$0xf]
        %v480 = vld [vmem:[%s251 + $0x294] sm:$0xf]
        %v481 = vld [vmem:[%s251 + $0x298] sm:$0xf]
        %v482 = vld [vmem:[%s251 + $0x29c] sm:$0xf]
        %v483 = vld [vmem:[%s251 + $0x2a0] sm:$0xf]
        %v484 = vld [vmem:[%s251 + $0x2a4] sm:$0xf]
        %v485 = vld [vmem:[%s251 + $0x2a8] sm:$0xf]
        %v486 = vld [vmem:[%s251 + $0x2ac] sm:$0xf]
        %v487 = vld [vmem:[%s251 + $0x2b0] sm:$0xf]
        %v488 = vld [vmem:[%s251 + $0x2b4] sm:$0xf]
        %v489 = vld [vmem:[%s251 + $0x2b8] sm:$0xf]
        %v490 = vld [vmem:[%s251 + $0x2bc] sm:$0xf]
        %v491 = vld [vmem:[%s251 + $0x2c0] sm:$0xf]
        %v492 = vld [vmem:[%s251 + $0x2c4] sm:$0xf]
        %v493 = vld [vmem:[%s251 + $0x2c8] sm:$0xf]
        %v494 = vld [vmem:[%s251 + $0x2cc] sm:$0xf]
        %v495 = vld [vmem:[%s251 + $0x2d0] sm:$0xf]
        %v496 = vld [vmem:[%s251 + $0x2d4] sm:$0xf]
        %v497 = vld [vmem:[%s251 + $0x2d8] sm:$0xf]
        %v498 = vld [vmem:[%s251 + $0x2dc] sm:$0xf]
        %v499 = vld [vmem:[%s251 + $0x2e0] sm:$0xf]
        %v500 = vld [vmem:[%s251 + $0x2e4] sm:$0xf]
        %v501 = vld [vmem:[%s251 + $0x2e8] sm:$0xf]
        %v502 = vld [vmem:[%s251 + $0x2ec] sm:$0xf]
        %v503 = vld [vmem:[%s251 + $0x2f0] sm:$0xf]
        %v504 = vld [vmem:[%s251 + $0x2f4] sm:$0xf]
        %v505 = vld [vmem:[%s251 + $0x2f8] sm:$0xf]
        %v506 = vld [vmem:[%s251 + $0x2fc] sm:$0xf]
        %v507 = vld [vmem:[%s251 + $0x300] sm:$0xf]
        %v508 = vld [vmem:[%s251 + $0x304] sm:$0xf]
        %v509 = vld [vmem:[%s251 + $0x308] sm:$0xf]
        %v510 = vld [vmem:[%s251 + $0x30c] sm:$0xf]
        %v511 = vld [vmem:[%s251 + $0x310] sm:$0xf]
        %v512 = vld [vmem:[%s251 + $0x314] sm:$0xf]
        %v513 = vld [vmem:[%s251 + $0x318] sm:$0xf]
        %v514 = vld [vmem:[%s251 + $0x31c] sm:$0xf]
        %v515 = vld [vmem:[%s251 + $0x320] sm:$0xf]
        %v516 = vld [vmem:[%s251 + $0x324] sm:$0xf]
        %v517 = vld [vmem:[%s251 + $0x328] sm:$0xf]
        %v518 = vld [vmem:[%s251 + $0x32c] sm:$0xf]
        %v519 = vld [vmem:[%s251 + $0x330] sm:$0xf]
        %v520 = vld [vmem:[%s251 + $0x334] sm:$0xf]
        %v521 = vld [vmem:[%s251 + $0x338] sm:$0xf]
        %v522 = vld [vmem:[%s251 + $0x33c] sm:$0xf]
        %v523 = vld [vmem:[%s251 + $0x340] sm:$0xf]
        %v524 = vld [vmem:[%s251 + $0x344] sm:$0xf]
        %v525 = vld [vmem:[%s251 + $0x348] sm:$0xf]
        %v526 = vld [vmem:[%s251 + $0x34c] sm:$0xf]
        %v527 = vld [vmem:[%s251 + $0x350] sm:$0xf]
        %v528 = vld [vmem:[%s251 + $0x354] sm:$0xf]
        %v529 = vld [vmem:[%s251 + $0x358] sm:$0xf]
        %v530 = vld [vmem:[%s251 + $0x35c] sm:$0xf]
        %v531 = vld [vmem:[%s251 + $0x360] sm:$0xf]
        %v532 = vld [vmem:[%s251 + $0x364] sm:$0xf]
        %v533 = vld [vmem:[%s251 + $0x368] sm:$0xf]
        %v534 = vld [vmem:[%s251 + $0x36c] sm:$0xf]
        %v535 = vld [vmem:[%s251 + $0x370] sm:$0xf]
        %v536 = vld [vmem:[%s251 + $0x374] sm:$0xf]
        %v537 = vld [vmem:[%s251 + $0x378] sm:$0xf]
        %v538 = vld [vmem:[%s251 + $0x37c] sm:$0xf]
        %v539 = vld [vmem:[%s251 + $0x380] sm:$0xf]
        %v540 = vld [vmem:[%s251 + $0x384] sm:$0xf]
        %v541 = vld [vmem:[%s251 + $0x388] sm:$0xf]
        %v542 = vld [vmem:[%s251 + $0x38c] sm:$0xf]
        %v543 = vld [vmem:[%s251 + $0x390] sm:$0xf]
        %v544 = vld [vmem:[%s251 + $0x394] sm:$0xf]
        %v545 = vld [vmem:[%s251 + $0x398] sm:$0xf]
        %v546 = vld [vmem:[%s251 + $0x39c] sm:$0xf]
        %v547 = vld [vmem:[%s251 + $0x3a0] sm:$0xf]
        %v548 = vld [vmem:[%s251 + $0x3a4] sm:$0xf]
        %v549 = vld [vmem:[%s251 + $0x3a8] sm:$0xf]
        %v550 = vld [vmem:[%s251 + $0x3ac] sm:$0xf]
        %v551 = vld [vmem:[%s251 + $0x3b0] sm:$0xf]
        %v552 = vld [vmem:[%s251 + $0x3b4] sm:$0xf]
        %v553 = vld [vmem:[%s251 + $0x3b8] sm:$0xf]
        %v554 = vld [vmem:[%s251 + $0x3bc] sm:$0xf]
        %v555 = vld [vmem:[%s251 + $0x3c0] sm:$0xf]
        %v556 = vld [vmem:[%s251 + $0x3c4] sm:$0xf]
        %v557 = vld [vmem:[%s251 + $0x3c8] sm:$0xf]
        %v558 = vld [vmem:[%s251 + $0x3cc] sm:$0xf]
        %v559 = vld [vmem:[%s251 + $0x3d0] sm:$0xf]
        %v560 = vld [vmem:[%s251 + $0x3d4] sm:$0xf]
        %v561 = vld [vmem:[%s251 + $0x3d8] sm:$0xf]
        %v562 = vld [vmem:[%s251 + $0x3dc] sm:$0xf]
        %v563 = vld [vmem:[%s251 + $0x3e0] sm:$0xf]
        %v564 = vld [vmem:[%s251 + $0x3e4] sm:$0xf]
        %v565 = vld [vmem:[%s251 + $0x3e8] sm:$0xf]
        %v566 = vld [vmem:[%s251 + $0x3ec] sm:$0xf]
        %v567 = vld [vmem:[%s251 + $0x3f0] sm:$0xf]
        %v568 = vld [vmem:[%s251 + $0x3f4] sm:$0xf]
        %v569 = vld [vmem:[%s251 + $0x3f8] sm:$0xf]
        %v570 = vld [vmem:[%s251 + $0x3fc] sm:$0xf]
        %v571 = vld [vmem:[%s251 + $0x400] sm:$0xf]
        %v572 = vld [vmem:[%s251 + $0x404] sm:$0xf]
        %v573 = vld [vmem:[%s251 + $0x408] sm:$0xf]
        %v574 = vld [vmem:[%s251 + $0x40c] sm:$0xf]
        %v575 = vld [vmem:[%s251 + $0x410] sm:$0xf]
        %v576 = vld [vmem:[%s251 + $0x414] sm:$0xf]
        %v577 = vld [vmem:[%s251 + $0x418] sm:$0xf]
        %v578 = vld [vmem:[%s251 + $0x41c] sm:$0xf]
        %v579 = vld [vmem:[%s251 + $0x420] sm:$0xf]
        %v580 = vld [vmem:[%s251 + $0x424] sm:$0xf]
        %v581 = vld [vmem:[%s251 + $0x428] sm:$0xf]
        %v582 = vld [vmem:[%s251 + $0x42c] sm:$0xf]
        %v583 = vld [vmem:[%s251 + $0x430] sm:$0xf]
        %v584 = vld [vmem:[%s251 + $0x434] sm:$0xf]
        %v585 = vld [vmem:[%s251 + $0x438] sm:$0xf]
        %v586 = vld [vmem:[%s251 + $0x43c] sm:$0xf]
        %v587 = vld [vmem:[%s251 + $0x440] sm:$0xf]
        %v588 = vld [vmem:[%s251 + $0x444] sm:$0xf]
        %v589 = vld [vmem:[%s251 + $0x448] sm:$0xf]
        %v590 = vld [vmem:[%s251 + $0x44c] sm:$0xf]
        %v591 = vld [vmem:[%s251 + $0x450] sm:$0xf]
        %v592 = vld [vmem:[%s251 + $0x454] sm:$0xf]
        %v593 = vld [vmem:[%s251 + $0x458] sm:$0xf]
        %v594 = vld [vmem:[%s251 + $0x45c] sm:$0xf]
        %v595 = vld [vmem:[%s251 + $0x460] sm:$0xf]
        %v596 = vld [vmem:[%s251 + $0x464] sm:$0xf]
        %v597 = vld [vmem:[%s251 + $0x468] sm:$0xf]
        %v598 = vld [vmem:[%s251 + $0x46c] sm:$0xf]
        %v599 = vld [vmem:[%s251 + $0x470] sm:$0xf]
        %v600 = vld [vmem:[%s251 + $0x474] sm:$0xf]
        %v601 = vld [vmem:[%s251 + $0x478] sm:$0xf]
        %v602 = vld [vmem:[%s251 + $0x47c] sm:$0xf]
        %v603 = vld [vmem:[%s251 + $0x480] sm:$0xf]
        %v604 = vld [vmem:[%s251 + $0x484] sm:$0xf]
        %v605 = vld [vmem:[%s251 + $0x488] sm:$0xf]
        %v606 = vld [vmem:[%s251 + $0x48c] sm:$0xf]
        %v607 = vld [vmem:[%s251 + $0x490] sm:$0xf]
        %v608 = vld [vmem:[%s251 + $0x494] sm:$0xf]
        %v609 = vld [vmem:[%s251 + $0x498] sm:$0xf]
        %v610 = vld [vmem:[%s251 + $0x49c] sm:$0xf]
        %v611 = vld [vmem:[%s251 + $0x4a0] sm:$0xf]
        %v612 = vld [vmem:[%s251 + $0x4a4] sm:$0xf]
        %v613 = vld [vmem:[%s251 + $0x4a8] sm:$0xf]
        %v614 = vld [vmem:[%s251 + $0x4ac] sm:$0xf]
        %v615 = vld [vmem:[%s251 + $0x4b0] sm:$0xf]
        %v616 = vld [vmem:[%s251 + $0x4b4] sm:$0xf]
        %v617 = vld [vmem:[%s251 + $0x4b8] sm:$0xf]
        %v618 = vld [vmem:[%s251 + $0x4bc] sm:$0xf]
        %v619 = vld [vmem:[%s251 + $0x4c0] sm:$0xf]
        %v620 = vld [vmem:[%s251 + $0x4c4] sm:$0xf]
        %v621 = vld [vmem:[%s251 + $0x4c8] sm:$0xf]
        %v622 = vld [vmem:[%s251 + $0x4cc] sm:$0xf]
        %v623 = vld [vmem:[%s251 + $0x4d0] sm:$0xf]
        %v624 = vld [vmem:[%s251 + $0x4d4] sm:$0xf]
        %v625 = vld [vmem:[%s251 + $0x4d8] sm:$0xf]
        %v626 = vld [vmem:[%s251 + $0x4dc] sm:$0xf]
        %v627 = vld [vmem:[%s251 + $0x4e0] sm:$0xf]
        %v628 = vld [vmem:[%s251 + $0x4e4] sm:$0xf]
        %v629 = vld [vmem:[%s251 + $0x4e8] sm:$0xf]
        %v630 = vld [vmem:[%s251 + $0x4ec] sm:$0xf]
        %v631 = vld [vmem:[%s251 + $0x4f0] sm:$0xf]
        %v632 = vld [vmem:[%s251 + $0x4f4] sm:$0xf]
        %v633 = vld [vmem:[%s251 + $0x4f8] sm:$0xf]
        %v634 = vld [vmem:[%s251 + $0x4fc] sm:$0xf]
        %v635 = vld [vmem:[%s251 + $0x500] sm:$0xf]
        %v636 = vld [vmem:[%s251 + $0x504] sm:$0xf]
        %v637 = vld [vmem:[%s251 + $0x508] sm:$0xf]
        %v638 = vld [vmem:[%s251 + $0x50c] sm:$0xf]
        %v639 = vld [vmem:[%s251 + $0x510] sm:$0xf]
        %v640 = vld [vmem:[%s251 + $0x514] sm:$0xf]
        %v641 = vld [vmem:[%s251 + $0x518] sm:$0xf]
        %v642 = vld [vmem:[%s251 + $0x51c] sm:$0xf]
        %v643 = vld [vmem:[%s251 + $0x520] sm:$0xf]
        %v644 = vld [vmem:[%s251 + $0x524] sm:$0xf]
        %v645 = vld [vmem:[%s251 + $0x528] sm:$0xf]
        %v646 = vld [vmem:[%s251 + $0x52c] sm:$0xf]
        %v647 = vld [vmem:[%s251 + $0x530] sm:$0xf]
        %v648 = vld [vmem:[%s251 + $0x534] sm:$0xf]
        %v649 = vld [vmem:[%s251 + $0x538] sm:$0xf]
        %v650 = vld [vmem:[%s251 + $0x53c] sm:$0xf]
        %v651 = vld [vmem:[%s251 + $0x540] sm:$0xf]
        %v652 = vld [vmem:[%s251 + $0x544] sm:$0xf]
        %v653 = vld [vmem:[%s251 + $0x548] sm:$0xf]
        %v654 = vld [vmem:[%s251 + $0x54c] sm:$0xf]
        %v655 = vld [vmem:[%s251 + $0x550] sm:$0xf]
        %v656 = vld [vmem:[%s251 + $0x554] sm:$0xf]
        %v657 = vld [vmem:[%s251 + $0x558] sm:$0xf]
        %v658 = vld [vmem:[%s251 + $0x55c] sm:$0xf]
        %v659 = vld [vmem:[%s251 + $0x560] sm:$0xf]
        %v660 = vld [vmem:[%s251 + $0x564] sm:$0xf]
        %v661 = vld [vmem:[%s251 + $0x568] sm:$0xf]
        %v662 = vld [vmem:[%s251 + $0x56c] sm:$0xf]
        %v663 = vld [vmem:[%s251 + $0x570] sm:$0xf]
        %v664 = vld [vmem:[%s251 + $0x574] sm:$0xf]
        %v665 = vld [vmem:[%s251 + $0x578] sm:$0xf]
        %v666 = vld [vmem:[%s251 + $0x57c] sm:$0xf]
        %v667 = vld [vmem:[%s251 + $0x580] sm:$0xf]
        %v668 = vld [vmem:[%s251 + $0x584] sm:$0xf]
        %v669 = vld [vmem:[%s251 + $0x588] sm:$0xf]
        %v670 = vld [vmem:[%s251 + $0x58c] sm:$0xf]
        %v671 = vld [vmem:[%s251 + $0x590] sm:$0xf]
        %v672 = vld [vmem:[%s251 + $0x594] sm:$0xf]
        %v673 = vld [vmem:[%s251 + $0x598] sm:$0xf]
        %v674 = vld [vmem:[%s251 + $0x59c] sm:$0xf]
        %v675 = vld [vmem:[%s251 + $0x5a0] sm:$0xf]
        %v676 = vld [vmem:[%s251 + $0x5a4] sm:$0xf]
        %v677 = vld [vmem:[%s251 + $0x5a8] sm:$0xf]
        %v678 = vld [vmem:[%s251 + $0x5ac] sm:$0xf]
        %v679 = vld [vmem:[%s251 + $0x5b0] sm:$0xf]
        %v680 = vld [vmem:[%s251 + $0x5b4] sm:$0xf]
        %v681 = vld [vmem:[%s251 + $0x5b8] sm:$0xf]
        %v682 = vld [vmem:[%s251 + $0x5bc] sm:$0xf]
        %v683 = vld [vmem:[%s251 + $0x5c0] sm:$0xf]
        %v684 = vld [vmem:[%s251 + $0x5c4] sm:$0xf]
        %v685 = vld [vmem:[%s251 + $0x5c8] sm:$0xf]
        %v686 = vld [vmem:[%s251 + $0x5cc] sm:$0xf]
        %v687 = vld [vmem:[%s251 + $0x5d0] sm:$0xf]
        %v688 = vld [vmem:[%s251 + $0x5d4] sm:$0xf]
        %v689 = vld [vmem:[%s251 + $0x5d8] sm:$0xf]
        %v690 = vld [vmem:[%s251 + $0x5dc] sm:$0xf]
        %v691 = vld [vmem:[%s251 + $0x5e0] sm:$0xf]
        %v692 = vld [vmem:[%s251 + $0x5e4] sm:$0xf]
        %v693 = vld [vmem:[%s251 + $0x5e8] sm:$0xf]
        %v694 = vld [vmem:[%s251 + $0x5ec] sm:$0xf]
        %v695 = vld [vmem:[%s251 + $0x5f0] sm:$0xf]
        %v696 = vld [vmem:[%s251 + $0x5f4] sm:$0xf]
        %v697 = vld [vmem:[%s251 + $0x5f8] sm:$0xf]
        %v698 = vld [vmem:[%s251 + $0x5fc] sm:$0xf]
        %v699 = vld [vmem:[%s251 + $0x600] sm:$0xf]
        %v700 = vld [vmem:[%s251 + $0x604] sm:$0xf]
        %v701 = vld [vmem:[%s251 + $0x608] sm:$0xf]
        %v702 = vld [vmem:[%s251 + $0x60c] sm:$0xf]
        %v703 = vld [vmem:[%s251 + $0x610] sm:$0xf]
        %v704 = vld [vmem:[%s251 + $0x614] sm:$0xf]
        %v705 = vld [vmem:[%s251 + $0x618] sm:$0xf]
        %v706 = vld [vmem:[%s251 + $0x61c] sm:$0xf]
        %v707 = vld [vmem:[%s251 + $0x620] sm:$0xf]
        %v708 = vld [vmem:[%s251 + $0x624] sm:$0xf]
        %v709 = vld [vmem:[%s251 + $0x628] sm:$0xf]
        %v710 = vld [vmem:[%s251 + $0x62c] sm:$0xf]
        %v711 = vld [vmem:[%s251 + $0x630] sm:$0xf]
        %v712 = vld [vmem:[%s251 + $0x634] sm:$0xf]
        %v713 = vld [vmem:[%s251 + $0x638] sm:$0xf]
        %v714 = vld [vmem:[%s251 + $0x63c] sm:$0xf]
        %v715 = vld [vmem:[%s251 + $0x640] sm:$0xf]
        %v716 = vld [vmem:[%s251 + $0x644] sm:$0xf]
        %v717 = vld [vmem:[%s251 + $0x648] sm:$0xf]
        %v718 = vld [vmem:[%s251 + $0x64c] sm:$0xf]
        %v719 = vld [vmem:[%s251 + $0x650] sm:$0xf]
        %v720 = vld [vmem:[%s251 + $0x654] sm:$0xf]
        %v721 = vld [vmem:[%s251 + $0x658] sm:$0xf]
        %v722 = vld [vmem:[%s251 + $0x65c] sm:$0xf]
        %v723 = vld [vmem:[%s251 + $0x660] sm:$0xf]
        %v724 = vld [vmem:[%s251 + $0x664] sm:$0xf]
        %v725 = vld [vmem:[%s251 + $0x668] sm:$0xf]
        %v726 = vld [vmem:[%s251 + $0x66c] sm:$0xf]
        %v727 = vld [vmem:[%s251 + $0x670] sm:$0xf]
        %v728 = vld [vmem:[%s251 + $0x674] sm:$0xf]
        %v729 = vld [vmem:[%s251 + $0x678] sm:$0xf]
        %v730 = vld [vmem:[%s251 + $0x67c] sm:$0xf]
        %v731 = vld [vmem:[%s251 + $0x680] sm:$0xf]
        %v732 = vld [vmem:[%s251 + $0x684] sm:$0xf]
        %v733 = vld [vmem:[%s251 + $0x688] sm:$0xf]
        %v734 = vld [vmem:[%s251 + $0x68c] sm:$0xf]
        %v735 = vld [vmem:[%s251 + $0x690] sm:$0xf]
        %v736 = vld [vmem:[%s251 + $0x694] sm:$0xf]
        %v737 = vld [vmem:[%s251 + $0x698] sm:$0xf]
        %v738 = vld [vmem:[%s251 + $0x69c] sm:$0xf]
        %v739 = vld [vmem:[%s251 + $0x6a0] sm:$0xf]
        %v740 = vld [vmem:[%s251 + $0x6a4] sm:$0xf]
        %v741 = vld [vmem:[%s251 + $0x6a8] sm:$0xf]
        %v742 = vld [vmem:[%s251 + $0x6ac] sm:$0xf]
        %v743 = vld [vmem:[%s251 + $0x6b0] sm:$0xf]
        %v744 = vld [vmem:[%s251 + $0x6b4] sm:$0xf]
        %v745 = vld [vmem:[%s251 + $0x6b8] sm:$0xf]
        %v746 = vld [vmem:[%s251 + $0x6bc] sm:$0xf]
        %v747 = vld [vmem:[%s251 + $0x6c0] sm:$0xf]
        %v748 = vld [vmem:[%s251 + $0x6c4] sm:$0xf]
        %v749 = vld [vmem:[%s251 + $0x6c8] sm:$0xf]
        %v750 = vld [vmem:[%s251 + $0x6cc] sm:$0xf]
        %v751 = vld [vmem:[%s251 + $0x6d0] sm:$0xf]
        %v752 = vld [vmem:[%s251 + $0x6d4] sm:$0xf]
        %v753 = vld [vmem:[%s251 + $0x6d8] sm:$0xf]
        %v754 = vld [vmem:[%s251 + $0x6dc] sm:$0xf]
        %v755 = vld [vmem:[%s251 + $0x6e0] sm:$0xf]
        %v756 = vld [vmem:[%s251 + $0x6e4] sm:$0xf]
        %v757 = vld [vmem:[%s251 + $0x6e8] sm:$0xf]
        %v758 = vld [vmem:[%s251 + $0x6ec] sm:$0xf]
        %v759 = vld [vmem:[%s251 + $0x6f0] sm:$0xf]
        %v760 = vld [vmem:[%s251 + $0x6f4] sm:$0xf]
        %v761 = vld [vmem:[%s251 + $0x6f8] sm:$0xf]
        %v762 = vld [vmem:[%s251 + $0x6fc] sm:$0xf]
        %v763 = vld [vmem:[%s251 + $0x700] sm:$0xf]
        %v764 = vld [vmem:[%s251 + $0x704] sm:$0xf]
        %v765 = vld [vmem:[%s251 + $0x708] sm:$0xf]
        %v766 = vld [vmem:[%s251 + $0x70c] sm:$0xf]
        %v767 = vld [vmem:[%s251 + $0x710] sm:$0xf]
        %v768 = vld [vmem:[%s251 + $0x714] sm:$0xf]
        %v769 = vld [vmem:[%s251 + $0x718] sm:$0xf]
        %v770 = vld [vmem:[%s251 + $0x71c] sm:$0xf]
        %v771 = vld [vmem:[%s251 + $0x720] sm:$0xf]
        %v772 = vld [vmem:[%s251 + $0x724] sm:$0xf]
        %v773 = vld [vmem:[%s251 + $0x728] sm:$0xf]
        %v774 = vld [vmem:[%s251 + $0x72c] sm:$0xf]
        %v775 = vld [vmem:[%s251 + $0x730] sm:$0xf]
        %v776 = vld [vmem:[%s251 + $0x734] sm:$0xf]
        %v777 = vld [vmem:[%s251 + $0x738] sm:$0xf]
        %v778 = vld [vmem:[%s251 + $0x73c] sm:$0xf]
        %v779 = vld [vmem:[%s251 + $0x740] sm:$0xf]
        %v780 = vld [vmem:[%s251 + $0x744] sm:$0xf]
        %v781 = vld [vmem:[%s251 + $0x748] sm:$0xf]
        %v782 = vld [vmem:[%s251 + $0x74c] sm:$0xf]
        %v783 = vld [vmem:[%s251 + $0x750] sm:$0xf]
        %v784 = vld [vmem:[%s251 + $0x754] sm:$0xf]
        %v785 = vld [vmem:[%s251 + $0x758] sm:$0xf]
        %v786 = vld [vmem:[%s251 + $0x75c] sm:$0xf]
        %v787 = vld [vmem:[%s251 + $0x760] sm:$0xf]
        %v788 = vld [vmem:[%s251 + $0x764] sm:$0xf]
        %v789 = vld [vmem:[%s251 + $0x768] sm:$0xf]
        %v790 = vld [vmem:[%s251 + $0x76c] sm:$0xf]
        %v791 = vld [vmem:[%s251 + $0x770] sm:$0xf]
        %v792 = vld [vmem:[%s251 + $0x774] sm:$0xf]
        %v793 = vld [vmem:[%s251 + $0x778] sm:$0xf]
        %v794 = vld [vmem:[%s251 + $0x77c] sm:$0xf]
        %v795 = vld [vmem:[%s251 + $0x780] sm:$0xf]
        %v796 = vld [vmem:[%s251 + $0x784] sm:$0xf]
        %v797 = vld [vmem:[%s251 + $0x788] sm:$0xf]
        %v798 = vld [vmem:[%s251 + $0x78c] sm:$0xf]
        %v799 = vld [vmem:[%s251 + $0x790] sm:$0xf]
        %v800 = vld [vmem:[%s251 + $0x794] sm:$0xf]
        %v801 = vld [vmem:[%s251 + $0x798] sm:$0xf]
        %v802 = vld [vmem:[%s251 + $0x79c] sm:$0xf]
        %v803 = vld [vmem:[%s251 + $0x7a0] sm:$0xf]
        %v804 = vld [vmem:[%s251 + $0x7a4] sm:$0xf]
        %v805 = vld [vmem:[%s251 + $0x7a8] sm:$0xf]
        %v806 = vld [vmem:[%s251 + $0x7ac] sm:$0xf]
        %v807 = vld [vmem:[%s251 + $0x7b0] sm:$0xf]
        %v808 = vld [vmem:[%s251 + $0x7b4] sm:$0xf]
        %v809 = vld [vmem:[%s251 + $0x7b8] sm:$0xf]
        %v810 = vld [vmem:[%s251 + $0x7bc] sm:$0xf]
        %v811 = vld [vmem:[%s251 + $0x7c0] sm:$0xf]
        %v812 = vld [vmem:[%s251 + $0x7c4] sm:$0xf]
        %v813 = vld [vmem:[%s251 + $0x7c8] sm:$0xf]
        %v814 = vld [vmem:[%s251 + $0x7cc] sm:$0xf]
        %v815 = vld [vmem:[%s251 + $0x7d0] sm:$0xf]
        %v816 = vld [vmem:[%s251 + $0x7d4] sm:$0xf]
        %v817 = vld [vmem:[%s251 + $0x7d8] sm:$0xf]
        %v818 = vld [vmem:[%s251 + $0x7dc] sm:$0xf]
        %v819 = vld [vmem:[%s251 + $0x7e0] sm:$0xf]
        %v820 = vld [vmem:[%s251 + $0x7e4] sm:$0xf]
        %v821 = vld [vmem:[%s251 + $0x7e8] sm:$0xf]
        %v822 = vld [vmem:[%s251 + $0x7ec] sm:$0xf]
        %v823 = vld [vmem:[%s251 + $0x7f0] sm:$0xf]
        %v824 = vld [vmem:[%s251 + $0x7f4] sm:$0xf]
        %v825 = vld [vmem:[%s251 + $0x7f8] sm:$0xf]
        %v826 = vld [vmem:[%s251 + $0x7fc] sm:$0xf]
        %v827 = vld [vmem:[%s251 + $0x800] sm:$0xf]
        %v828 = vld [vmem:[%s251 + $0x804] sm:$0xf]
        %v829 = vld [vmem:[%s251 + $0x808] sm:$0xf]
        %v830 = vld [vmem:[%s251 + $0x80c] sm:$0xf]
        %v831 = vld [vmem:[%s251 + $0x810] sm:$0xf]
        %v832 = vld [vmem:[%s251 + $0x814] sm:$0xf]
        %v833 = vld [vmem:[%s251 + $0x818] sm:$0xf]
        %v834 = vld [vmem:[%s251 + $0x81c] sm:$0xf]
        %v835 = vld [vmem:[%s251 + $0x820] sm:$0xf]
        %v836 = vld [vmem:[%s251 + $0x824] sm:$0xf]
        %v837 = vld [vmem:[%s251 + $0x828] sm:$0xf]
        %v838 = vld [vmem:[%s251 + $0x82c] sm:$0xf]
        %v839 = vld [vmem:[%s251 + $0x830] sm:$0xf]
        %v840 = vld [vmem:[%s251 + $0x834] sm:$0xf]
        %v841 = vld [vmem:[%s251 + $0x838] sm:$0xf]
        %v842 = vld [vmem:[%s251 + $0x83c] sm:$0xf]
        %v843 = vld [vmem:[%s251 + $0x840] sm:$0xf]
        %v844 = vld [vmem:[%s251 + $0x844] sm:$0xf]
        %v845 = vld [vmem:[%s251 + $0x848] sm:$0xf]
        %v846 = vld [vmem:[%s251 + $0x84c] sm:$0xf]
        %v847 = vld [vmem:[%s251 + $0x850] sm:$0xf]
        %v848 = vld [vmem:[%s251 + $0x854] sm:$0xf]
        %v849 = vld [vmem:[%s251 + $0x858] sm:$0xf]
        %v850 = vld [vmem:[%s251 + $0x85c] sm:$0xf]
        %v851 = vld [vmem:[%s251 + $0x860] sm:$0xf]
        %v852 = vld [vmem:[%s251 + $0x864] sm:$0xf]
        %v853 = vld [vmem:[%s251 + $0x868] sm:$0xf]
        %v854 = vld [vmem:[%s251 + $0x86c] sm:$0xf]
        %v855 = vld [vmem:[%s251 + $0x870] sm:$0xf]
        %v856 = vld [vmem:[%s251 + $0x874] sm:$0xf]
        %v857 = vld [vmem:[%s251 + $0x878] sm:$0xf]
        %v858 = vld [vmem:[%s251 + $0x87c] sm:$0xf]
        %v859 = vld [vmem:[%s251 + $0x880] sm:$0xf]
        %v860 = vld [vmem:[%s251 + $0x884] sm:$0xf]
        %v861 = vld [vmem:[%s251 + $0x888] sm:$0xf]
        %v862 = vld [vmem:[%s251 + $0x88c] sm:$0xf]
        %v863 = vld [vmem:[%s251 + $0x890] sm:$0xf]
        %v864 = vld [vmem:[%s251 + $0x894] sm:$0xf]
        %v865 = vld [vmem:[%s251 + $0x898] sm:$0xf]
        %v866 = vld [vmem:[%s251 + $0x89c] sm:$0xf]
        %v867 = vld [vmem:[%s251 + $0x8a0] sm:$0xf]
        %v868 = vld [vmem:[%s251 + $0x8a4] sm:$0xf]
        %v869 = vld [vmem:[%s251 + $0x8a8] sm:$0xf]
        %v870 = vld [vmem:[%s251 + $0x8ac] sm:$0xf]
        %v871 = vld [vmem:[%s251 + $0x8b0] sm:$0xf]
        %v872 = vld [vmem:[%s251 + $0x8b4] sm:$0xf]
        %v873 = vld [vmem:[%s251 + $0x8b8] sm:$0xf]
        %v874 = vld [vmem:[%s251 + $0x8bc] sm:$0xf]
        %v875 = vld [vmem:[%s251 + $0x8c0] sm:$0xf]
        %v876 = vld [vmem:[%s251 + $0x8c4] sm:$0xf]
        %v877 = vld [vmem:[%s251 + $0x8c8] sm:$0xf]
        %v878 = vld [vmem:[%s251 + $0x8cc] sm:$0xf]
        %v879 = vld [vmem:[%s251 + $0x8d0] sm:$0xf]
        %v880 = vld [vmem:[%s251 + $0x8d4] sm:$0xf]
        %v881 = vld [vmem:[%s251 + $0x8d8] sm:$0xf]
        %v882 = vld [vmem:[%s251 + $0x8dc] sm:$0xf]
        %v883 = vld [vmem:[%s251 + $0x8e0] sm:$0xf]
        %v884 = vld [vmem:[%s251 + $0x8e4] sm:$0xf]
        %v885 = vld [vmem:[%s251 + $0x8e8] sm:$0xf]
        %v886 = vld [vmem:[%s251 + $0x8ec] sm:$0xf]
        %v887 = vld [vmem:[%s251 + $0x8f0] sm:$0xf]
        %v888 = vld [vmem:[%s251 + $0x8f4] sm:$0xf]
        %v889 = vld [vmem:[%s251 + $0x8f8] sm:$0xf]
        %v890 = vld [vmem:[%s251 + $0x8fc] sm:$0xf]
        %v891 = vld [vmem:[%s251 + $0x900] sm:$0xf]
        %v892 = vld [vmem:[%s251 + $0x904] sm:$0xf]
        %v893 = vld [vmem:[%s251 + $0x908] sm:$0xf]
        %v894 = vld [vmem:[%s251 + $0x90c] sm:$0xf]
        %v895 = vld [vmem:[%s251 + $0x910] sm:$0xf]
        %v896 = vld [vmem:[%s251 + $0x914] sm:$0xf]
        %v897 = vld [vmem:[%s251 + $0x918] sm:$0xf]
        %v898 = vld [vmem:[%s251 + $0x91c] sm:$0xf]
        %v899 = vld [vmem:[%s251 + $0x920] sm:$0xf]
        %v900 = vld [vmem:[%s251 + $0x924] sm:$0xf]
        %v901 = vld [vmem:[%s251 + $0x928] sm:$0xf]
        %v902 = vld [vmem:[%s251 + $0x92c] sm:$0xf]
        %v903 = vld [vmem:[%s251 + $0x930] sm:$0xf]
        %v904 = vld [vmem:[%s251 + $0x934] sm:$0xf]
        %v905 = vld [vmem:[%s251 + $0x938] sm:$0xf]
        %v906 = vld [vmem:[%s251 + $0x93c] sm:$0xf]
        %v907 = vld [vmem:[%s251 + $0x940] sm:$0xf]
        %v908 = vld [vmem:[%s251 + $0x944] sm:$0xf]
        %v909 = vld [vmem:[%s251 + $0x948] sm:$0xf]
        %v910 = vld [vmem:[%s251 + $0x94c] sm:$0xf]
        %v911 = vld [vmem:[%s251 + $0x950] sm:$0xf]
        %v912 = vld [vmem:[%s251 + $0x954] sm:$0xf]
        %v913 = vld [vmem:[%s251 + $0x958] sm:$0xf]
        %v914 = vld [vmem:[%s251 + $0x95c] sm:$0xf]
        %v915 = vld [vmem:[%s251 + $0x960] sm:$0xf]
        %v916 = vld [vmem:[%s251 + $0x964] sm:$0xf]
        %v917 = vld [vmem:[%s251 + $0x968] sm:$0xf]
        %v918 = vld [vmem:[%s251 + $0x96c] sm:$0xf]
        %v919 = vld [vmem:[%s251 + $0x970] sm:$0xf]
        %v920 = vld [vmem:[%s251 + $0x974] sm:$0xf]
        %v921 = vld [vmem:[%s251 + $0x978] sm:$0xf]
        %v922 = vld [vmem:[%s251 + $0x97c] sm:$0xf]
        %v923 = vld [vmem:[%s251 + $0x980] sm:$0xf]
        %v924 = vld [vmem:[%s251 + $0x984] sm:$0xf]
        %v925 = vld [vmem:[%s251 + $0x988] sm:$0xf]
        %v926 = vld [vmem:[%s251 + $0x98c] sm:$0xf]
        %v927 = vld [vmem:[%s251 + $0x990] sm:$0xf]
        %v928 = vld [vmem:[%s251 + $0x994] sm:$0xf]
        %v929 = vld [vmem:[%s251 + $0x998] sm:$0xf]
        %v930 = vld [vmem:[%s251 + $0x99c] sm:$0xf]
        %v931 = vld [vmem:[%s251 + $0x9a0] sm:$0xf]
        %v932 = vld [vmem:[%s251 + $0x9a4] sm:$0xf]
        %v933 = vld [vmem:[%s251 + $0x9a8] sm:$0xf]
        %v934 = vld [vmem:[%s251 + $0x9ac] sm:$0xf]
        %v935 = vld [vmem:[%s251 + $0x9b0] sm:$0xf]
        %v936 = vld [vmem:[%s251 + $0x9b4] sm:$0xf]
        %v937 = vld [vmem:[%s251 + $0x9b8] sm:$0xf]
        %v938 = vld [vmem:[%s251 + $0x9bc] sm:$0xf]
        %v939 = vld [vmem:[%s251 + $0x9c0] sm:$0xf]
        %v940 = vld [vmem:[%s251 + $0x9c4] sm:$0xf]
        %v941 = vld [vmem:[%s251 + $0x9c8] sm:$0xf]
        %v942 = vld [vmem:[%s251 + $0x9cc] sm:$0xf]
        %v943 = vld [vmem:[%s251 + $0x9d0] sm:$0xf]
        %v944 = vld [vmem:[%s251 + $0x9d4] sm:$0xf]
        %v945 = vld [vmem:[%s251 + $0x9d8] sm:$0xf]
        %v946 = vld [vmem:[%s251 + $0x9dc] sm:$0xf]
        %v947 = vld [vmem:[%s251 + $0x9e0] sm:$0xf]
        %v948 = vld [vmem:[%s251 + $0x9e4] sm:$0xf]
        %v949 = vld [vmem:[%s251 + $0x9e8] sm:$0xf]
        %v950 = vld [vmem:[%s251 + $0x9ec] sm:$0xf]
        %v951 = vld [vmem:[%s251 + $0x9f0] sm:$0xf]
        %v952 = vld [vmem:[%s251 + $0x9f4] sm:$0xf]
        %v953 = vld [vmem:[%s251 + $0x9f8] sm:$0xf]
        %v954 = vld [vmem:[%s251 + $0x9fc] sm:$0xf]
        %v955 = vld [vmem:[%s251 + $0xa00] sm:$0xf]
        %v956 = vld [vmem:[%s251 + $0xa04] sm:$0xf]
        %v957 = vld [vmem:[%s251 + $0xa08] sm:$0xf]
        %v958 = vld [vmem:[%s251 + $0xa0c] sm:$0xf]
        %v959 = vld [vmem:[%s251 + $0xa10] sm:$0xf]
        %v960 = vld [vmem:[%s251 + $0xa14] sm:$0xf]
        %v961 = vld [vmem:[%s251 + $0xa18] sm:$0xf]
        %v962 = vld [vmem:[%s251 + $0xa1c] sm:$0xf]
        %v963 = vld [vmem:[%s251 + $0xa20] sm:$0xf]
        %v964 = vld [vmem:[%s251 + $0xa24] sm:$0xf]
        %v965 = vld [vmem:[%s251 + $0xa28] sm:$0xf]
        %v966 = vld [vmem:[%s251 + $0xa2c] sm:$0xf]
        %v967 = vld [vmem:[%s251 + $0xa30] sm:$0xf]
        %v968 = vld [vmem:[%s251 + $0xa34] sm:$0xf]
        %v969 = vld [vmem:[%s251 + $0xa38] sm:$0xf]
        %v970 = vld [vmem:[%s251 + $0xa3c] sm:$0xf]
        %v971 = vld [vmem:[%s251 + $0xa40] sm:$0xf]
        %v972 = vld [vmem:[%s251 + $0xa44] sm:$0xf]
        %v973 = vld [vmem:[%s251 + $0xa48] sm:$0xf]
        %v974 = vld [vmem:[%s251 + $0xa4c] sm:$0xf]
        %v975 = vld [vmem:[%s251 + $0xa50] sm:$0xf]
        %v976 = vld [vmem:[%s251 + $0xa54] sm:$0xf]
        %v977 = vld [vmem:[%s251 + $0xa58] sm:$0xf]
        %v978 = vld [vmem:[%s251 + $0xa5c] sm:$0xf]
        %v979 = vld [vmem:[%s251 + $0xa60] sm:$0xf]
        %v980 = vld [vmem:[%s251 + $0xa64] sm:$0xf]
        %v981 = vld [vmem:[%s251 + $0xa68] sm:$0xf]
        %v982 = vld [vmem:[%s251 + $0xa6c] sm:$0xf]
        %v983 = vld [vmem:[%s251 + $0xa70] sm:$0xf]
        %v984 = vld [vmem:[%s251 + $0xa74] sm:$0xf]
        %v985 = vld [vmem:[%s251 + $0xa78] sm:$0xf]
        %v986 = vld [vmem:[%s251 + $0xa7c] sm:$0xf]
        %v987 = vld [vmem:[%s251 + $0xa80] sm:$0xf]
        %v988 = vld [vmem:[%s251 + $0xa84] sm:$0xf]
        %v989 = vld [vmem:[%s251 + $0xa88] sm:$0xf]
        %v990 = vld [vmem:[%s251 + $0xa8c] sm:$0xf]
        %v991 = vld [vmem:[%s251 + $0xa90] sm:$0xf]
        %v992 = vld [vmem:[%s251 + $0xa94] sm:$0xf]
        %v993 = vld [vmem:[%s251 + $0xa98] sm:$0xf]
        %v994 = vld [vmem:[%s251 + $0xa9c] sm:$0xf]
        %v995 = vld [vmem:[%s251 + $0xaa0] sm:$0xf]
        %v996 = vld [vmem:[%s251 + $0xaa4] sm:$0xf]
        %v997 = vld [vmem:[%s251 + $0xaa8] sm:$0xf]
        %v998 = vld [vmem:[%s251 + $0xaac] sm:$0xf]
        %v999 = vld [vmem:[%s251 + $0xab0] sm:$0xf]
        %v1000 = vld [vmem:[%s251 + $0xab4] sm:$0xf]
        %v1001 = vld [vmem:[%s251 + $0xab8] sm:$0xf]
        %v1002 = vld [vmem:[%s251 + $0xabc] sm:$0xf]
        %v1003 = vld [vmem:[%s251 + $0xac0] sm:$0xf]
        %v1004 = vld [vmem:[%s251 + $0xac4] sm:$0xf]
        %v1005 = vld [vmem:[%s251 + $0xac8] sm:$0xf]
        %v1006 = vld [vmem:[%s251 + $0xacc] sm:$0xf]
        %v1007 = vld [vmem:[%s251 + $0xad0] sm:$0xf]
        %v1008 = vld [vmem:[%s251 + $0xad4] sm:$0xf]
        %v1009 = vld [vmem:[%s251 + $0xad8] sm:$0xf]
        %v1010 = vld [vmem:[%s251 + $0xadc] sm:$0xf]
        %v1011 = vld [vmem:[%s251 + $0xae0] sm:$0xf]
        %v1012 = vld [vmem:[%s251 + $0xae4] sm:$0xf]
        %v1013 = vld [vmem:[%s251 + $0xae8] sm:$0xf]
        %v1014 = vld [vmem:[%s251 + $0xaec] sm:$0xf]
        %v1015 = vld [vmem:[%s251 + $0xaf0] sm:$0xf]
        %v1016 = vld [vmem:[%s251 + $0xaf4] sm:$0xf]
        %v1017 = vld [vmem:[%s251 + $0xaf8] sm:$0xf]
        %v1018 = vld [vmem:[%s251 + $0xafc] sm:$0xf]
        %v1019 = vld [vmem:[%s251 + $0xb00] sm:$0xf]
        %v1020 = vld [vmem:[%s251 + $0xb04] sm:$0xf]
        %v1021 = vld [vmem:[%s251 + $0xb08] sm:$0xf]
        %v1022 = vld [vmem:[%s251 + $0xb0c] sm:$0xf]
        %v1023 = vld [vmem:[%s251 + $0xb10] sm:$0xf]
        %v1024 = vld [vmem:[%s251 + $0xb14] sm:$0xf]
        %v1025 = vld [vmem:[%s251 + $0xb18] sm:$0xf]
        %v1026 = vld [vmem:[%s251 + $0xb1c] sm:$0xf]
        %v1027 = vld [vmem:[%s251 + $0xb20] sm:$0xf]
        %v1028 = vld [vmem:[%s251 + $0xb24] sm:$0xf]
        %v1029 = vld [vmem:[%s251 + $0xb28] sm:$0xf]
        %v1030 = vld [vmem:[%s251 + $0xb2c] sm:$0xf]
        %v1031 = vld [vmem:[%s251 + $0xb30] sm:$0xf]
        %v1032 = vld [vmem:[%s251 + $0xb34] sm:$0xf]
        %v1033 = vld [vmem:[%s251 + $0xb38] sm:$0xf]
        %v1034 = vld [vmem:[%s251 + $0xb3c] sm:$0xf]
        %v1035 = vld [vmem:[%s251 + $0xb40] sm:$0xf]
        %v1036 = vld [vmem:[%s251 + $0xb44] sm:$0xf]
        %v1037 = vld [vmem:[%s251 + $0xb48] sm:$0xf]
        %v1038 = vld [vmem:[%s251 + $0xb4c] sm:$0xf]
        %v1039 = vld [vmem:[%s251 + $0xb50] sm:$0xf]
        %v1040 = vld [vmem:[%s251 + $0xb54] sm:$0xf]
        %v1041 = vld [vmem:[%s251 + $0xb58] sm:$0xf]
        %v1042 = vld [vmem:[%s251 + $0xb5c] sm:$0xf]
        %v1043 = vld [vmem:[%s251 + $0xb60] sm:$0xf]
        %v1044 = vld [vmem:[%s251 + $0xb64] sm:$0xf]
        %v1045 = vld [vmem:[%s251 + $0xb68] sm:$0xf]
        %v1046 = vld [vmem:[%s251 + $0xb6c] sm:$0xf]
        %v1047 = vld [vmem:[%s251 + $0xb70] sm:$0xf]
        %v1048 = vld [vmem:[%s251 + $0xb74] sm:$0xf]
        %v1049 = vld [vmem:[%s251 + $0xb78] sm:$0xf]
        %v1050 = vld [vmem:[%s251 + $0xb7c] sm:$0xf]
        %v1051 = vld [vmem:[%s251 + $0xb80] sm:$0xf]
        %v1052 = vld [vmem:[%s251 + $0xb84] sm:$0xf]
        %v1053 = vld [vmem:[%s251 + $0xb88] sm:$0xf]
        %v1054 = vld [vmem:[%s251 + $0xb8c] sm:$0xf]
        %v1055 = vld [vmem:[%s251 + $0xb90] sm:$0xf]
        %v1056 = vld [vmem:[%s251 + $0xb94] sm:$0xf]
        %v1057 = vld [vmem:[%s251 + $0xb98] sm:$0xf]
        %v1058 = vld [vmem:[%s251 + $0xb9c] sm:$0xf]
        %v1059 = vld [vmem:[%s251 + $0xba0] sm:$0xf]
        %v1060 = vld [vmem:[%s251 + $0xba4] sm:$0xf]
        %v1061 = vld [vmem:[%s251 + $0xba8] sm:$0xf]
        %v1062 = vld [vmem:[%s251 + $0xbac] sm:$0xf]
        %v1063 = vld [vmem:[%s251 + $0xbb0] sm:$0xf]
        %v1064 = vld [vmem:[%s251 + $0xbb4] sm:$0xf]
        %v1065 = vld [vmem:[%s251 + $0xbb8] sm:$0xf]
        %v1066 = vld [vmem:[%s251 + $0xbbc] sm:$0xf]
        %v1067 = vld [vmem:[%s251 + $0xbc0] sm:$0xf]
        %v1068 = vld [vmem:[%s251 + $0xbc4] sm:$0xf]
        %v1069 = vld [vmem:[%s251 + $0xbc8] sm:$0xf]
        %v1070 = vld [vmem:[%s251 + $0xbcc] sm:$0xf]
        %v1071 = vld [vmem:[%s251 + $0xbd0] sm:$0xf]
        %v1072 = vld [vmem:[%s251 + $0xbd4] sm:$0xf]
        %v1073 = vld [vmem:[%s251 + $0xbd8] sm:$0xf]
        %v1074 = vld [vmem:[%s251 + $0xbdc] sm:$0xf]
        %v1075 = vld [vmem:[%s251 + $0xbe0] sm:$0xf]
        %v1076 = vld [vmem:[%s251 + $0xbe4] sm:$0xf]
        %v1077 = vld [vmem:[%s251 + $0xbe8] sm:$0xf]
        %v1078 = vld [vmem:[%s251 + $0xbec] sm:$0xf]
        %v1079 = vld [vmem:[%s251 + $0xbf0] sm:$0xf]
        %v1080 = vld [vmem:[%s251 + $0xbf4] sm:$0xf]
        %v1081 = vld [vmem:[%s251 + $0xbf8] sm:$0xf]
        %v1082 = vld [vmem:[%s251 + $0xbfc] sm:$0xf]
        %v1083 = vld [vmem:[%s251 + $0xc00] sm:$0xf]
        %v1084 = vld [vmem:[%s251 + $0xc04] sm:$0xf]
        %v1085 = vld [vmem:[%s251 + $0xc08] sm:$0xf]
        %v1086 = vld [vmem:[%s251 + $0xc0c] sm:$0xf]
        %v1087 = vld [vmem:[%s251 + $0xc10] sm:$0xf]
        %v1088 = vld [vmem:[%s251 + $0xc14] sm:$0xf]
        %v1089 = vld [vmem:[%s251 + $0xc18] sm:$0xf]
        %v1090 = vld [vmem:[%s251 + $0xc1c] sm:$0xf]
        %v1091 = vld [vmem:[%s251 + $0xc20] sm:$0xf]
        %v1092 = vld [vmem:[%s251 + $0xc24] sm:$0xf]
        %v1093 = vld [vmem:[%s251 + $0xc28] sm:$0xf]
        %v1094 = vld [vmem:[%s251 + $0xc2c] sm:$0xf]
        %v1095 = vld [vmem:[%s251 + $0xc30] sm:$0xf]
        %v1096 = vld [vmem:[%s251 + $0xc34] sm:$0xf]
        %v1097 = vld [vmem:[%s251 + $0xc38] sm:$0xf]
        %v1098 = vld [vmem:[%s251 + $0xc3c] sm:$0xf]
        %v1099 = vld [vmem:[%s251 + $0xc40] sm:$0xf]
        %v1100 = vld [vmem:[%s251 + $0xc44] sm:$0xf]
        %v1101 = vld [vmem:[%s251 + $0xc48] sm:$0xf]
        %v1102 = vld [vmem:[%s251 + $0xc4c] sm:$0xf]
        %v1103 = vld [vmem:[%s251 + $0xc50] sm:$0xf]
        %v1104 = vld [vmem:[%s251 + $0xc54] sm:$0xf]
        %v1105 = vld [vmem:[%s251 + $0xc58] sm:$0xf]
        %v1106 = vld [vmem:[%s251 + $0xc5c] sm:$0xf]
        %v1107 = vld [vmem:[%s251 + $0xc60] sm:$0xf]
        %v1108 = vld [vmem:[%s251 + $0xc64] sm:$0xf]
        %v1109 = vld [vmem:[%s251 + $0xc68] sm:$0xf]
        %v1110 = vld [vmem:[%s251 + $0xc6c] sm:$0xf]
        %v1111 = vld [vmem:[%s251 + $0xc70] sm:$0xf]
        %v1112 = vld [vmem:[%s251 + $0xc74] sm:$0xf]
        %v1113 = vld [vmem:[%s251 + $0xc78] sm:$0xf]
        %v1114 = vld [vmem:[%s251 + $0xc7c] sm:$0xf]
        %v1115 = vld [vmem:[%s251 + $0xc80] sm:$0xf]
        %v1116 = vld [vmem:[%s251 + $0xc84] sm:$0xf]
        %v1117 = vld [vmem:[%s251 + $0xc88] sm:$0xf]
        %v1118 = vld [vmem:[%s251 + $0xc8c] sm:$0xf]
        %v1119 = vld [vmem:[%s251 + $0xc90] sm:$0xf]
        %v1120 = vld [vmem:[%s251 + $0xc94] sm:$0xf]
        %v1121 = vld [vmem:[%s251 + $0xc98] sm:$0xf]
        %v1122 = vld [vmem:[%s251 + $0xc9c] sm:$0xf]
        %v1123 = vld [vmem:[%s251 + $0xca0] sm:$0xf]
        %v1124 = vld [vmem:[%s251 + $0xca4] sm:$0xf]
        %v1125 = vld [vmem:[%s251 + $0xca8] sm:$0xf]
        %v1126 = vld [vmem:[%s251 + $0xcac] sm:$0xf]
        %v1127 = vld [vmem:[%s251 + $0xcb0] sm:$0xf]
        %v1128 = vld [vmem:[%s251 + $0xcb4] sm:$0xf]
        %v1129 = vld [vmem:[%s251 + $0xcb8] sm:$0xf]
        %v1130 = vld [vmem:[%s251 + $0xcbc] sm:$0xf]
        %v1131 = vld [vmem:[%s251 + $0xcc0] sm:$0xf]
        %v1132 = vld [vmem:[%s251 + $0xcc4] sm:$0xf]
        %v1133 = vld [vmem:[%s251 + $0xcc8] sm:$0xf]
        %v1134 = vld [vmem:[%s251 + $0xccc] sm:$0xf]
        %v1135 = vld [vmem:[%s251 + $0xcd0] sm:$0xf]
        %v1136 = vld [vmem:[%s251 + $0xcd4] sm:$0xf]
        %v1137 = vld [vmem:[%s251 + $0xcd8] sm:$0xf]
        %v1138 = vld [vmem:[%s251 + $0xcdc] sm:$0xf]
        %v1139 = vld [vmem:[%s251 + $0xce0] sm:$0xf]
        %v1140 = vld [vmem:[%s251 + $0xce4] sm:$0xf]
        %v1141 = vld [vmem:[%s251 + $0xce8] sm:$0xf]
        %v1142 = vld [vmem:[%s251 + $0xcec] sm:$0xf]
        %v1143 = vld [vmem:[%s251 + $0xcf0] sm:$0xf]
        %v1144 = vld [vmem:[%s251 + $0xcf4] sm:$0xf]
        %v1145 = vld [vmem:[%s251 + $0xcf8] sm:$0xf]
        %v1146 = vld [vmem:[%s251 + $0xcfc] sm:$0xf]
        %v1154 = vcombine.high %v308, %v308
        %v1156 = vunpack.c.l.s4 1966171168
        %v1157 = vunpack.c.0.s8 %v1156
        %v1158 = vlaneseq
        %v1159 = vshrl.u32 %v1158, 7
        %v1160 = vsub.s32 %v1157, %v1159
        %v1161 = vrot.slane %v308, %v1160
        %v1163 = vunpack.c.l.s4 1966171168
        %v1164 = vunpack.c.0.s8 %v1163
        %v1165 = vlaneseq
        %v1166 = vshrl.u32 %v1165, 7
        %v1167 = vsub.s32 %v1164, %v1166
        %v1168 = vrot.slane %v1154, %v1167
        %v1169 = vcombine.high %v1161, %v1161
        %v1170 = vcombine.high %v1168, %v1168
        %v1172 = vunpack.c.l.s4 1966171168
        %v1173 = vunpack.c.0.s8 %v1172
        %v1174 = vlaneseq
        %v1175 = vshrl.u32 %v1174, 7
        %v1176 = vsub.s32 %v1173, %v1175
        %v1177 = vrot.slane %v1161, %v1176
        %v1179 = vunpack.c.l.s4 1966171168
        %v1180 = vunpack.c.0.s8 %v1179
        %v1181 = vlaneseq
        %v1182 = vshrl.u32 %v1181, 7
        %v1183 = vsub.s32 %v1180, %v1182
        %v1184 = vrot.slane %v1168, %v1183
        %v1186 = vunpack.c.l.s4 1966171168
        %v1187 = vunpack.c.0.s8 %v1186
        %v1188 = vlaneseq
        %v1189 = vshrl.u32 %v1188, 7
        %v1190 = vsub.s32 %v1187, %v1189
        %v1191 = vrot.slane %v1169, %v1190
        %v1193 = vunpack.c.l.s4 1966171168
        %v1194 = vunpack.c.0.s8 %v1193
        %v1195 = vlaneseq
        %v1196 = vshrl.u32 %v1195, 7
        %v1197 = vsub.s32 %v1194, %v1196
        %v1198 = vrot.slane %v1170, %v1197
        %v1199 = vcombine.high %v1177, %v1177
        %v1200 = vcombine.high %v1184, %v1184
        %v1201 = vcombine.high %v1191, %v1191
        %v1202 = vcombine.high %v1198, %v1198
        %v1203 = vcombine.high %v309, %v309
        %v1205 = vunpack.c.l.s4 1966171168
        %v1206 = vunpack.c.0.s8 %v1205
        %v1207 = vlaneseq
        %v1208 = vshrl.u32 %v1207, 7
        %v1209 = vsub.s32 %v1206, %v1208
        %v1210 = vrot.slane %v309, %v1209
        %v1212 = vunpack.c.l.s4 1966171168
        %v1213 = vunpack.c.0.s8 %v1212
        %v1214 = vlaneseq
        %v1215 = vshrl.u32 %v1214, 7
        %v1216 = vsub.s32 %v1213, %v1215
        %v1217 = vrot.slane %v1203, %v1216
        %v1218 = vcombine.high %v1210, %v1210
        %v1219 = vcombine.high %v1217, %v1217
        %v1221 = vunpack.c.l.s4 1966171168
        %v1222 = vunpack.c.0.s8 %v1221
        %v1223 = vlaneseq
        %v1224 = vshrl.u32 %v1223, 7
        %v1225 = vsub.s32 %v1222, %v1224
        %v1226 = vrot.slane %v1210, %v1225
        %v1228 = vunpack.c.l.s4 1966171168
        %v1229 = vunpack.c.0.s8 %v1228
        %v1230 = vlaneseq
        %v1231 = vshrl.u32 %v1230, 7
        %v1232 = vsub.s32 %v1229, %v1231
        %v1233 = vrot.slane %v1217, %v1232
        %v1235 = vunpack.c.l.s4 1966171168
        %v1236 = vunpack.c.0.s8 %v1235
        %v1237 = vlaneseq
        %v1238 = vshrl.u32 %v1237, 7
        %v1239 = vsub.s32 %v1236, %v1238
        %v1240 = vrot.slane %v1218, %v1239
        %v1242 = vunpack.c.l.s4 1966171168
        %v1243 = vunpack.c.0.s8 %v1242
        %v1244 = vlaneseq
        %v1245 = vshrl.u32 %v1244, 7
        %v1246 = vsub.s32 %v1243, %v1245
        %v1247 = vrot.slane %v1219, %v1246
        %v1248 = vcombine.high %v1226, %v1226
        %v1249 = vcombine.high %v1233, %v1233
        %v1250 = vcombine.high %v1240, %v1240
        %v1251 = vcombine.high %v1247, %v1247
        %v1252 = vcombine.high %v310, %v310
        %v1254 = vunpack.c.l.s4 1966171168
        %v1255 = vunpack.c.0.s8 %v1254
        %v1256 = vlaneseq
        %v1257 = vshrl.u32 %v1256, 7
        %v1258 = vsub.s32 %v1255, %v1257
        %v1259 = vrot.slane %v310, %v1258
        %v1261 = vunpack.c.l.s4 1966171168
        %v1262 = vunpack.c.0.s8 %v1261
        %v1263 = vlaneseq
        %v1264 = vshrl.u32 %v1263, 7
        %v1265 = vsub.s32 %v1262, %v1264
        %v1266 = vrot.slane %v1252, %v1265
        %v1267 = vcombine.high %v1259, %v1259
        %v1268 = vcombine.high %v1266, %v1266
        %v1270 = vunpack.c.l.s4 1966171168
        %v1271 = vunpack.c.0.s8 %v1270
        %v1272 = vlaneseq
        %v1273 = vshrl.u32 %v1272, 7
        %v1274 = vsub.s32 %v1271, %v1273
        %v1275 = vrot.slane %v1259, %v1274
        %v1277 = vunpack.c.l.s4 1966171168
        %v1278 = vunpack.c.0.s8 %v1277
        %v1279 = vlaneseq
        %v1280 = vshrl.u32 %v1279, 7
        %v1281 = vsub.s32 %v1278, %v1280
        %v1282 = vrot.slane %v1266, %v1281
        %v1284 = vunpack.c.l.s4 1966171168
        %v1285 = vunpack.c.0.s8 %v1284
        %v1286 = vlaneseq
        %v1287 = vshrl.u32 %v1286, 7
        %v1288 = vsub.s32 %v1285, %v1287
        %v1289 = vrot.slane %v1267, %v1288
        %v1291 = vunpack.c.l.s4 1966171168
        %v1292 = vunpack.c.0.s8 %v1291
        %v1293 = vlaneseq
        %v1294 = vshrl.u32 %v1293, 7
        %v1295 = vsub.s32 %v1292, %v1294
        %v1296 = vrot.slane %v1268, %v1295
        %v1297 = vcombine.high %v1275, %v1275
        %v1298 = vcombine.high %v1282, %v1282
        %v1299 = vcombine.high %v1289, %v1289
        %v1300 = vcombine.high %v1296, %v1296
        %v1301 = vcombine.high %v311, %v311
        %v1303 = vunpack.c.l.s4 1966171168
        %v1304 = vunpack.c.0.s8 %v1303
        %v1305 = vlaneseq
        %v1306 = vshrl.u32 %v1305, 7
        %v1307 = vsub.s32 %v1304, %v1306
        %v1308 = vrot.slane %v311, %v1307
        %v1310 = vunpack.c.l.s4 1966171168
        %v1311 = vunpack.c.0.s8 %v1310
        %v1312 = vlaneseq
        %v1313 = vshrl.u32 %v1312, 7
        %v1314 = vsub.s32 %v1311, %v1313
        %v1315 = vrot.slane %v1301, %v1314
        %v1316 = vcombine.high %v1308, %v1308
        %v1317 = vcombine.high %v1315, %v1315
        %v1319 = vunpack.c.l.s4 1966171168
        %v1320 = vunpack.c.0.s8 %v1319
        %v1321 = vlaneseq
        %v1322 = vshrl.u32 %v1321, 7
        %v1323 = vsub.s32 %v1320, %v1322
        %v1324 = vrot.slane %v1308, %v1323
        %v1326 = vunpack.c.l.s4 1966171168
        %v1327 = vunpack.c.0.s8 %v1326
        %v1328 = vlaneseq
        %v1329 = vshrl.u32 %v1328, 7
        %v1330 = vsub.s32 %v1327, %v1329
        %v1331 = vrot.slane %v1315, %v1330
        %v1333 = vunpack.c.l.s4 1966171168
        %v1334 = vunpack.c.0.s8 %v1333
        %v1335 = vlaneseq
        %v1336 = vshrl.u32 %v1335, 7
        %v1337 = vsub.s32 %v1334, %v1336
        %v1338 = vrot.slane %v1316, %v1337
        %v1340 = vunpack.c.l.s4 1966171168
        %v1341 = vunpack.c.0.s8 %v1340
        %v1342 = vlaneseq
        %v1343 = vshrl.u32 %v1342, 7
        %v1344 = vsub.s32 %v1341, %v1343
        %v1345 = vrot.slane %v1317, %v1344
        %v1346 = vcombine.high %v1324, %v1324
        %v1347 = vcombine.high %v1331, %v1331
        %v1348 = vcombine.high %v1338, %v1338
        %v1349 = vcombine.high %v1345, %v1345
        %v1350 = vcombine.high %v312, %v312
        %v1352 = vunpack.c.l.s4 1966171168
        %v1353 = vunpack.c.0.s8 %v1352
        %v1354 = vlaneseq
        %v1355 = vshrl.u32 %v1354, 7
        %v1356 = vsub.s32 %v1353, %v1355
        %v1357 = vrot.slane %v312, %v1356
        %v1359 = vunpack.c.l.s4 1966171168
        %v1360 = vunpack.c.0.s8 %v1359
        %v1361 = vlaneseq
        %v1362 = vshrl.u32 %v1361, 7
        %v1363 = vsub.s32 %v1360, %v1362
        %v1364 = vrot.slane %v1350, %v1363
        %v1365 = vcombine.high %v1357, %v1357
        %v1366 = vcombine.high %v1364, %v1364
        %v1368 = vunpack.c.l.s4 1966171168
        %v1369 = vunpack.c.0.s8 %v1368
        %v1370 = vlaneseq
        %v1371 = vshrl.u32 %v1370, 7
        %v1372 = vsub.s32 %v1369, %v1371
        %v1373 = vrot.slane %v1357, %v1372
        %v1375 = vunpack.c.l.s4 1966171168
        %v1376 = vunpack.c.0.s8 %v1375
        %v1377 = vlaneseq
        %v1378 = vshrl.u32 %v1377, 7
        %v1379 = vsub.s32 %v1376, %v1378
        %v1380 = vrot.slane %v1364, %v1379
        %v1382 = vunpack.c.l.s4 1966171168
        %v1383 = vunpack.c.0.s8 %v1382
        %v1384 = vlaneseq
        %v1385 = vshrl.u32 %v1384, 7
        %v1386 = vsub.s32 %v1383, %v1385
        %v1387 = vrot.slane %v1365, %v1386
        %v1389 = vunpack.c.l.s4 1966171168
        %v1390 = vunpack.c.0.s8 %v1389
        %v1391 = vlaneseq
        %v1392 = vshrl.u32 %v1391, 7
        %v1393 = vsub.s32 %v1390, %v1392
        %v1394 = vrot.slane %v1366, %v1393
        %v1395 = vcombine.high %v1373, %v1373
        %v1396 = vcombine.high %v1380, %v1380
        %v1397 = vcombine.high %v1387, %v1387
        %v1398 = vcombine.high %v1394, %v1394
        %v1399 = vcombine.high %v313, %v313
        %v1401 = vunpack.c.l.s4 1966171168
        %v1402 = vunpack.c.0.s8 %v1401
        %v1403 = vlaneseq
        %v1404 = vshrl.u32 %v1403, 7
        %v1405 = vsub.s32 %v1402, %v1404
        %v1406 = vrot.slane %v313, %v1405
        %v1408 = vunpack.c.l.s4 1966171168
        %v1409 = vunpack.c.0.s8 %v1408
        %v1410 = vlaneseq
        %v1411 = vshrl.u32 %v1410, 7
        %v1412 = vsub.s32 %v1409, %v1411
        %v1413 = vrot.slane %v1399, %v1412
        %v1414 = vcombine.high %v1406, %v1406
        %v1415 = vcombine.high %v1413, %v1413
        %v1417 = vunpack.c.l.s4 1966171168
        %v1418 = vunpack.c.0.s8 %v1417
        %v1419 = vlaneseq
        %v1420 = vshrl.u32 %v1419, 7
        %v1421 = vsub.s32 %v1418, %v1420
        %v1422 = vrot.slane %v1406, %v1421
        %v1424 = vunpack.c.l.s4 1966171168
        %v1425 = vunpack.c.0.s8 %v1424
        %v1426 = vlaneseq
        %v1427 = vshrl.u32 %v1426, 7
        %v1428 = vsub.s32 %v1425, %v1427
        %v1429 = vrot.slane %v1413, %v1428
        %v1431 = vunpack.c.l.s4 1966171168
        %v1432 = vunpack.c.0.s8 %v1431
        %v1433 = vlaneseq
        %v1434 = vshrl.u32 %v1433, 7
        %v1435 = vsub.s32 %v1432, %v1434
        %v1436 = vrot.slane %v1414, %v1435
        %v1438 = vunpack.c.l.s4 1966171168
        %v1439 = vunpack.c.0.s8 %v1438
        %v1440 = vlaneseq
        %v1441 = vshrl.u32 %v1440, 7
        %v1442 = vsub.s32 %v1439, %v1441
        %v1443 = vrot.slane %v1415, %v1442
        %v1444 = vcombine.high %v1422, %v1422
        %v1445 = vcombine.high %v1429, %v1429
        %v1446 = vcombine.high %v1436, %v1436
        %v1447 = vcombine.high %v1443, %v1443
        %v1449 = vunpack.c.l.s4 1966171168
        %v1450 = vunpack.c.0.s8 %v1449
        %v1451 = vlaneseq
        %v1452 = vshrl.u32 %v1451, 7
        %v1453 = vsub.s32 %v1450, %v1452
        %v1454 = vrot.slane %v314, %v1453
        %v1455 = vcombine.high %v1454, %v1454
        %v1457 = vunpack.c.l.s4 1966171168
        %v1458 = vunpack.c.0.s8 %v1457
        %v1459 = vlaneseq
        %v1460 = vshrl.u32 %v1459, 7
        %v1461 = vsub.s32 %v1458, %v1460
        %v1462 = vrot.slane %v1454, %v1461
        %v1464 = vunpack.c.l.s4 1966171168
        %v1465 = vunpack.c.0.s8 %v1464
        %v1466 = vlaneseq
        %v1467 = vshrl.u32 %v1466, 7
        %v1468 = vsub.s32 %v1465, %v1467
        %v1469 = vrot.slane %v1455, %v1468
        %v1470 = vcombine.high %v1462, %v1462
        %v1471 = vcombine.high %v1469, %v1469
        %v2356 = vunpack.c.l.b16 %v315
        %v2357 = vunpack.c.l.b16 %v316
        %v2358 = vunpack.c.l.b16 %v317
        %v2359 = vunpack.c.l.b16 %v318
        %v2360 = vunpack.c.l.b16 %v319
        %v2361 = vunpack.c.l.b16 %v320
        %v2362 = vunpack.c.l.b16 %v321
        %v2363 = vunpack.c.l.b16 %v322
        %v2364 = vunpack.c.l.b16 %v323
        %v2365 = vunpack.c.l.b16 %v324
        %v2366 = vunpack.c.l.b16 %v325
        %v2367 = vunpack.c.l.b16 %v326
        %v2368 = vunpack.c.l.b16 %v327
        %v2369 = vunpack.c.l.b16 %v328
        %v2370 = vunpack.c.l.b16 %v329
        %v2371 = vunpack.c.l.b16 %v330
        %v2372 = vunpack.c.l.b16 %v331
        %v2373 = vunpack.c.l.b16 %v332
        %v2374 = vunpack.c.l.b16 %v333
        %v2375 = vunpack.c.l.b16 %v334
        %v2376 = vunpack.c.l.b16 %v335
        %v2377 = vunpack.c.l.b16 %v336
        %v2378 = vunpack.c.l.b16 %v337
        %v2379 = vunpack.c.l.b16 %v338
        %v2380 = vunpack.c.l.b16 %v339
        %v2381 = vunpack.c.l.b16 %v340
        %v2382 = vunpack.c.l.b16 %v341
        %v2383 = vunpack.c.l.b16 %v342
        %v2384 = vunpack.c.l.b16 %v343
        %v2385 = vunpack.c.l.b16 %v344
        %v2386 = vunpack.c.l.b16 %v345
        %v2387 = vunpack.c.l.b16 %v346
        %v2388 = vunpack.c.l.b16 %v347
        %v2389 = vunpack.c.l.b16 %v348
        %v2390 = vunpack.c.l.b16 %v349
        %v2391 = vunpack.c.l.b16 %v350
        %v2392 = vunpack.c.l.b16 %v351
        %v2393 = vunpack.c.l.b16 %v352
        %v2394 = vunpack.c.l.b16 %v353
        %v2395 = vunpack.c.l.b16 %v354
        %v2396 = vunpack.c.l.b16 %v355
        %v2397 = vunpack.c.l.b16 %v356
        %v2398 = vunpack.c.l.b16 %v357
        %v2399 = vunpack.c.l.b16 %v358
        %v2400 = vunpack.c.l.b16 %v359
        %v2401 = vunpack.c.l.b16 %v360
        %v2402 = vunpack.c.l.b16 %v361
        %v2403 = vunpack.c.l.b16 %v362
        %v2404 = vunpack.c.l.b16 %v363
        %v2405 = vunpack.c.l.b16 %v364
        %v2406 = vunpack.c.l.b16 %v365
        %v2407 = vunpack.c.l.b16 %v366
        %v2408 = vunpack.c.l.b16 %v367
        %v2409 = vunpack.c.l.b16 %v368
        %v2410 = vunpack.c.l.b16 %v369
        %v2411 = vunpack.c.l.b16 %v370
        %v2412 = vunpack.c.l.b16 %v371
        %v2413 = vunpack.c.l.b16 %v372
        %v2414 = vunpack.c.l.b16 %v373
        %v2415 = vunpack.c.l.b16 %v374
        %v2416 = vunpack.c.l.b16 %v375
        %v2417 = vunpack.c.l.b16 %v376
        %v2418 = vunpack.c.l.b16 %v377
        %v2419 = vunpack.c.l.b16 %v378
        %v2420 = vunpack.c.l.b16 %v379
        %v2421 = vunpack.c.l.b16 %v380
        %v2422 = vunpack.c.l.b16 %v381
        %v2423 = vunpack.c.l.b16 %v382
        %v2424 = vunpack.c.l.b16 %v383
        %v2425 = vunpack.c.l.b16 %v384
        %v2426 = vunpack.c.l.b16 %v385
        %v2427 = vunpack.c.l.b16 %v386
        %v2428 = vunpack.c.l.b16 %v387
        %v2429 = vunpack.c.l.b16 %v388
        %v2430 = vunpack.c.l.b16 %v389
        %v2431 = vunpack.c.l.b16 %v390
        %v2432 = vunpack.c.l.b16 %v391
        %v2433 = vunpack.c.l.b16 %v392
        %v2434 = vunpack.c.l.b16 %v393
        %v2435 = vunpack.c.l.b16 %v394
        %v2436 = vunpack.c.l.b16 %v395
        %v2437 = vunpack.c.l.b16 %v396
        %v2438 = vunpack.c.l.b16 %v397
        %v2439 = vunpack.c.l.b16 %v398
        %v2440 = vunpack.c.l.b16 %v399
        %v2441 = vunpack.c.l.b16 %v400
        %v2442 = vunpack.c.l.b16 %v401
        %v2443 = vunpack.c.l.b16 %v402
        %v2444 = vunpack.c.l.b16 %v403
        %v2445 = vunpack.c.l.b16 %v404
        %v2446 = vunpack.c.l.b16 %v405
        %v2447 = vunpack.c.l.b16 %v406
        %v2448 = vunpack.c.l.b16 %v407
        %v2449 = vunpack.c.l.b16 %v408
        %v2450 = vunpack.c.l.b16 %v409
        %v2451 = vunpack.c.l.b16 %v410
        %v2452 = vunpack.c.l.b16 %v411
        %v2453 = vunpack.c.l.b16 %v412
        %v2454 = vunpack.c.l.b16 %v413
        %v2455 = vunpack.c.l.b16 %v414
        %v2456 = vunpack.c.l.b16 %v415
        %v2457 = vunpack.c.l.b16 %v416
        %v2458 = vunpack.c.l.b16 %v417
        %v2459 = vunpack.c.l.b16 %v418
        %v2460 = vunpack.c.l.b16 %v419
        %v2461 = vunpack.c.l.b16 %v420
        %v2462 = vunpack.c.l.b16 %v421
        %v2463 = vunpack.c.l.b16 %v422
        %v2464 = vunpack.c.l.b16 %v423
        %v2465 = vunpack.c.l.b16 %v424
        %v2466 = vunpack.c.l.b16 %v425
        %v2467 = vunpack.c.l.b16 %v426
        %v2468 = vunpack.c.l.b16 %v427
        %v2469 = vunpack.c.l.b16 %v428
        %v2470 = vunpack.c.l.b16 %v429
        %v2471 = vunpack.c.l.b16 %v430
        %v2472 = vunpack.c.l.b16 %v431
        %v2473 = vunpack.c.l.b16 %v432
        %v2474 = vunpack.c.l.b16 %v433
        %v2475 = vunpack.c.l.b16 %v434
        %v2476 = vunpack.c.l.b16 %v435
        %v2477 = vunpack.c.l.b16 %v436
        %v2478 = vunpack.c.l.b16 %v437
        %v2479 = vunpack.c.l.b16 %v438
        %v2480 = vunpack.c.l.b16 %v439
        %v2481 = vunpack.c.l.b16 %v440
        %v2482 = vunpack.c.l.b16 %v441
        %v2483 = vunpack.c.l.b16 %v442
        %v2484 = vunpack.c.l.b16 %v443
        %v2485 = vunpack.c.l.b16 %v444
        %v2486 = vunpack.c.l.b16 %v445
        %v2487 = vunpack.c.l.b16 %v446
        %v2488 = vunpack.c.l.b16 %v447
        %v2489 = vunpack.c.l.b16 %v448
        %v2490 = vunpack.c.l.b16 %v449
        %v2491 = vunpack.c.l.b16 %v450
        %v2492 = vunpack.c.l.b16 %v451
        %v2493 = vunpack.c.l.b16 %v452
        %v2494 = vunpack.c.l.b16 %v453
        %v2495 = vunpack.c.l.b16 %v454
        %v2496 = vunpack.c.l.b16 %v455
        %v2497 = vunpack.c.l.b16 %v456
        %v2498 = vunpack.c.l.b16 %v457
        %v2499 = vunpack.c.l.b16 %v458
        %v2500 = vunpack.c.l.b16 %v459
        %v2501 = vunpack.c.l.b16 %v460
        %v2502 = vunpack.c.l.b16 %v461
        %v2503 = vunpack.c.l.b16 %v462
        %v2504 = vunpack.c.l.b16 %v463
        %v2505 = vunpack.c.l.b16 %v464
        %v2506 = vunpack.c.l.b16 %v465
        %v2507 = vunpack.c.l.b16 %v466
        %v2508 = vunpack.c.l.b16 %v467
        %v2509 = vunpack.c.l.b16 %v468
        %v2510 = vunpack.c.l.b16 %v469
        %v2511 = vunpack.c.l.b16 %v470
        %v2512 = vunpack.c.l.b16 %v471
        %v2513 = vunpack.c.l.b16 %v472
        %v2514 = vunpack.c.l.b16 %v473
        %v2515 = vunpack.c.l.b16 %v474
        %v2516 = vunpack.c.l.b16 %v475
        %v2517 = vunpack.c.l.b16 %v476
        %v2518 = vunpack.c.l.b16 %v477
        %v2519 = vunpack.c.l.b16 %v478
        %v2520 = vunpack.c.l.b16 %v479
        %v2521 = vunpack.c.l.b16 %v480
        %v2522 = vunpack.c.l.b16 %v481
        %v2523 = vunpack.c.l.b16 %v482
        %v2524 = vunpack.c.l.b16 %v483
        %v2525 = vunpack.c.l.b16 %v484
        %v2526 = vunpack.c.l.b16 %v485
        %v2527 = vunpack.c.l.b16 %v486
        %v2528 = vunpack.c.l.b16 %v487
        %v2529 = vunpack.c.l.b16 %v488
        %v2530 = vunpack.c.l.b16 %v489
        %v2531 = vunpack.c.l.b16 %v490
        %v2532 = vunpack.c.l.b16 %v491
        %v2533 = vunpack.c.l.b16 %v492
        %v2534 = vunpack.c.l.b16 %v493
        %v2535 = vunpack.c.l.b16 %v494
        %v2536 = vunpack.c.l.b16 %v495
        %v2537 = vunpack.c.l.b16 %v496
        %v2538 = vunpack.c.l.b16 %v497
        %v2539 = vunpack.c.l.b16 %v498
        %v2540 = vunpack.c.l.b16 %v499
        %v2541 = vunpack.c.l.b16 %v500
        %v2542 = vunpack.c.l.b16 %v501
        %v2543 = vunpack.c.l.b16 %v502
        %v2544 = vunpack.c.l.b16 %v503
        %v2545 = vunpack.c.l.b16 %v504
        %v2546 = vunpack.c.l.b16 %v505
        %v2547 = vunpack.c.l.b16 %v506
        %v2548 = vunpack.c.l.b16 %v507
        %v2549 = vunpack.c.l.b16 %v508
        %v2550 = vunpack.c.l.b16 %v509
        %v2551 = vunpack.c.l.b16 %v510
        %v2552 = vunpack.c.l.b16 %v511
        %v2553 = vunpack.c.l.b16 %v512
        %v2554 = vunpack.c.l.b16 %v513
        %v2555 = vunpack.c.l.b16 %v514
        %v2556 = vunpack.c.l.b16 %v515
        %v2557 = vunpack.c.l.b16 %v516
        %v2558 = vunpack.c.l.b16 %v517
        %v2559 = vunpack.c.l.b16 %v518
        %v2560 = vunpack.c.l.b16 %v519
        %v2561 = vunpack.c.l.b16 %v520
        %v2562 = vunpack.c.l.b16 %v521
        %v2563 = vunpack.c.l.b16 %v522
        %v2564 = vunpack.c.l.b16 %v523
        %v2565 = vunpack.c.l.b16 %v524
        %v2566 = vunpack.c.l.b16 %v525
        %v2567 = vunpack.c.l.b16 %v526
        %v2568 = vunpack.c.l.b16 %v527
        %v2569 = vunpack.c.l.b16 %v528
        %v2570 = vunpack.c.l.b16 %v529
        %v2571 = vunpack.c.l.b16 %v530
        %v2572 = vunpack.c.l.b16 %v531
        %v2573 = vunpack.c.l.b16 %v532
        %v2574 = vunpack.c.l.b16 %v533
        %v2575 = vunpack.c.l.b16 %v534
        %v2576 = vunpack.c.l.b16 %v535
        %v2577 = vunpack.c.l.b16 %v536
        %v2578 = vunpack.c.l.b16 %v537
        %v2579 = vunpack.c.l.b16 %v538
        %v2580 = vunpack.c.l.b16 %v539
        %v2581 = vunpack.c.l.b16 %v540
        %v2582 = vunpack.c.l.b16 %v541
        %v2583 = vunpack.c.l.b16 %v542
        %v2584 = vunpack.c.l.b16 %v543
        %v2585 = vunpack.c.l.b16 %v544
        %v2586 = vunpack.c.l.b16 %v545
        %v2587 = vunpack.c.l.b16 %v546
        %v2588 = vunpack.c.l.b16 %v547
        %v2589 = vunpack.c.l.b16 %v548
        %v2590 = vunpack.c.l.b16 %v549
        %v2591 = vunpack.c.l.b16 %v550
        %v2592 = vunpack.c.l.b16 %v551
        %v2593 = vunpack.c.l.b16 %v552
        %v2594 = vunpack.c.l.b16 %v553
        %v2595 = vunpack.c.l.b16 %v554
        %v2596 = vunpack.c.l.b16 %v555
        %v2597 = vunpack.c.l.b16 %v556
        %v2598 = vunpack.c.l.b16 %v557
        %v2599 = vunpack.c.l.b16 %v558
        %v2600 = vunpack.c.l.b16 %v559
        %v2601 = vunpack.c.l.b16 %v560
        %v2602 = vunpack.c.l.b16 %v561
        %v2603 = vunpack.c.l.b16 %v562
        %v2604 = vunpack.c.l.b16 %v563
        %v2605 = vunpack.c.l.b16 %v564
        %v2606 = vunpack.c.l.b16 %v565
        %v2607 = vunpack.c.l.b16 %v566
        %v2608 = vunpack.c.l.b16 %v567
        %v2609 = vunpack.c.l.b16 %v568
        %v2610 = vunpack.c.l.b16 %v569
        %v2611 = vunpack.c.l.b16 %v570
        %v2612 = vunpack.c.l.b16 %v571
        %v2613 = vunpack.c.l.b16 %v572
        %v2614 = vunpack.c.l.b16 %v573
        %v2615 = vunpack.c.l.b16 %v574
        %v2616 = vunpack.c.l.b16 %v575
        %v2617 = vunpack.c.l.b16 %v576
        %v2618 = vunpack.c.l.b16 %v577
        %v2619 = vunpack.c.l.b16 %v578
        %v2620 = vunpack.c.l.b16 %v579
        %v2621 = vunpack.c.l.b16 %v580
        %v2622 = vunpack.c.l.b16 %v581
        %v2623 = vunpack.c.l.b16 %v582
        %v2624 = vunpack.c.l.b16 %v583
        %v2625 = vunpack.c.l.b16 %v584
        %v2626 = vunpack.c.l.b16 %v585
        %v2627 = vunpack.c.l.b16 %v586
        %v2628 = vunpack.c.l.b16 %v587
        %v2629 = vunpack.c.l.b16 %v588
        %v2630 = vunpack.c.l.b16 %v589
        %v2631 = vunpack.c.l.b16 %v590
        %v2632 = vunpack.c.l.b16 %v591
        %v2633 = vunpack.c.l.b16 %v592
        %v2634 = vunpack.c.l.b16 %v593
        %v2635 = vunpack.c.l.b16 %v594
        %v2636 = vunpack.c.l.b16 %v595
        %v2637 = vunpack.c.l.b16 %v596
        %v2638 = vunpack.c.l.b16 %v597
        %v2639 = vunpack.c.l.b16 %v598
        %v2640 = vunpack.c.l.b16 %v599
        %v2641 = vunpack.c.l.b16 %v600
        %v2642 = vunpack.c.l.b16 %v601
        %v2643 = vunpack.c.l.b16 %v602
        %v2644 = vunpack.c.l.b16 %v603
        %v2645 = vunpack.c.l.b16 %v604
        %v2646 = vunpack.c.l.b16 %v605
        %v2647 = vunpack.c.l.b16 %v606
        %v2648 = vunpack.c.l.b16 %v607
        %v2649 = vunpack.c.l.b16 %v608
        %v2650 = vunpack.c.l.b16 %v609
        %v2651 = vunpack.c.l.b16 %v610
        %v2652 = vunpack.c.l.b16 %v611
        %v2653 = vunpack.c.l.b16 %v612
        %v2654 = vunpack.c.l.b16 %v613
        %v2655 = vunpack.c.l.b16 %v614
        %v2656 = vunpack.c.l.b16 %v615
        %v2657 = vunpack.c.l.b16 %v616
        %v2658 = vunpack.c.l.b16 %v617
        %v2659 = vunpack.c.l.b16 %v618
        %v2660 = vunpack.c.l.b16 %v619
        %v2661 = vunpack.c.l.b16 %v620
        %v2662 = vunpack.c.l.b16 %v621
        %v2663 = vunpack.c.l.b16 %v622
        %v2664 = vunpack.c.l.b16 %v623
        %v2665 = vunpack.c.l.b16 %v624
        %v2666 = vunpack.c.l.b16 %v625
        %v2667 = vunpack.c.l.b16 %v626
        %v2668 = vunpack.c.l.b16 %v627
        %v2669 = vunpack.c.l.b16 %v628
        %v2670 = vunpack.c.l.b16 %v629
        %v2671 = vunpack.c.l.b16 %v630
        %v2672 = vunpack.c.l.b16 %v631
        %v2673 = vunpack.c.l.b16 %v632
        %v2674 = vunpack.c.l.b16 %v633
        %v2675 = vunpack.c.l.b16 %v634
        %v2676 = vunpack.c.l.b16 %v635
        %v2677 = vunpack.c.l.b16 %v636
        %v2678 = vunpack.c.l.b16 %v637
        %v2679 = vunpack.c.l.b16 %v638
        %v2680 = vunpack.c.l.b16 %v639
        %v2681 = vunpack.c.l.b16 %v640
        %v2682 = vunpack.c.l.b16 %v641
        %v2683 = vunpack.c.l.b16 %v642
        %v2684 = vunpack.c.l.b16 %v643
        %v2685 = vunpack.c.l.b16 %v644
        %v2686 = vunpack.c.l.b16 %v645
        %v2687 = vunpack.c.l.b16 %v646
        %v2688 = vunpack.c.l.b16 %v647
        %v2689 = vunpack.c.l.b16 %v648
        %v2690 = vunpack.c.l.b16 %v649
        %v2691 = vunpack.c.l.b16 %v650
        %v2692 = vunpack.c.l.b16 %v651
        %v2693 = vunpack.c.l.b16 %v652
        %v2694 = vunpack.c.l.b16 %v653
        %v2695 = vunpack.c.l.b16 %v654
        %v2696 = vunpack.c.l.b16 %v655
        %v2697 = vunpack.c.l.b16 %v656
        %v2698 = vunpack.c.l.b16 %v657
        %v2699 = vunpack.c.l.b16 %v658
        %v2700 = vunpack.c.l.b16 %v659
        %v2701 = vunpack.c.l.b16 %v660
        %v2702 = vunpack.c.l.b16 %v661
        %v2703 = vunpack.c.l.b16 %v662
        %v2704 = vunpack.c.l.b16 %v663
        %v2705 = vunpack.c.l.b16 %v664
        %v2706 = vunpack.c.l.b16 %v665
        %v2707 = vunpack.c.l.b16 %v666
        %v2708 = vunpack.c.l.b16 %v667
        %v2709 = vunpack.c.l.b16 %v668
        %v2710 = vunpack.c.l.b16 %v669
        %v2711 = vunpack.c.l.b16 %v670
        %v2712 = vunpack.c.l.b16 %v671
        %v2713 = vunpack.c.l.b16 %v672
        %v2714 = vunpack.c.l.b16 %v673
        %v2715 = vunpack.c.l.b16 %v674
        %v2716 = vunpack.c.l.b16 %v675
        %v2717 = vunpack.c.l.b16 %v676
        %v2718 = vunpack.c.l.b16 %v677
        %v2719 = vunpack.c.l.b16 %v678
        %v2720 = vunpack.c.l.b16 %v679
        %v2721 = vunpack.c.l.b16 %v680
        %v2722 = vunpack.c.l.b16 %v681
        %v2723 = vunpack.c.l.b16 %v682
        %v2724 = vunpack.c.l.b16 %v683
        %v2725 = vunpack.c.l.b16 %v684
        %v2726 = vunpack.c.l.b16 %v685
        %v2727 = vunpack.c.l.b16 %v686
        %v2728 = vunpack.c.l.b16 %v687
        %v2729 = vunpack.c.l.b16 %v688
        %v2730 = vunpack.c.l.b16 %v689
        %v2731 = vunpack.c.l.b16 %v690
        %v2732 = vunpack.c.l.b16 %v691
        %v2733 = vunpack.c.l.b16 %v692
        %v2734 = vunpack.c.l.b16 %v693
        %v2735 = vunpack.c.l.b16 %v694
        %v2736 = vunpack.c.l.b16 %v695
        %v2737 = vunpack.c.l.b16 %v696
        %v2738 = vunpack.c.l.b16 %v697
        %v2739 = vunpack.c.l.b16 %v698
        %v2740 = vunpack.c.l.b16 %v699
        %v2741 = vunpack.c.l.b16 %v700
        %v2742 = vunpack.c.l.b16 %v701
        %v2743 = vunpack.c.l.b16 %v702
        %v2744 = vunpack.c.l.b16 %v703
        %v2745 = vunpack.c.l.b16 %v704
        %v2746 = vunpack.c.l.b16 %v705
        %v2747 = vunpack.c.l.b16 %v706
        %v2748 = vunpack.c.l.b16 %v707
        %v2749 = vunpack.c.l.b16 %v708
        %v2750 = vunpack.c.l.b16 %v709
        %v2751 = vunpack.c.l.b16 %v710
        %v2752 = vunpack.c.l.b16 %v711
        %v2753 = vunpack.c.l.b16 %v712
        %v2754 = vunpack.c.l.b16 %v713
        %v2755 = vunpack.c.l.b16 %v714
        %v2756 = vunpack.c.l.b16 %v715
        %v2757 = vunpack.c.l.b16 %v716
        %v2758 = vunpack.c.l.b16 %v717
        %v2759 = vunpack.c.l.b16 %v718
        %v2760 = vunpack.c.l.b16 %v719
        %v2761 = vunpack.c.l.b16 %v720
        %v2762 = vunpack.c.l.b16 %v721
        %v2763 = vunpack.c.l.b16 %v722
        %v2764 = vunpack.c.l.b16 %v723
        %v2765 = vunpack.c.l.b16 %v724
        %v2766 = vunpack.c.l.b16 %v725
        %v2767 = vunpack.c.l.b16 %v726
        %v2768 = vunpack.c.l.b16 %v727
        %v2769 = vunpack.c.l.b16 %v728
        %v2770 = vunpack.c.l.b16 %v729
        %v2771 = vunpack.c.l.b16 %v730
        %v2772 = vunpack.c.l.b16 %v731
        %v2773 = vunpack.c.l.b16 %v732
        %v2774 = vunpack.c.l.b16 %v733
        %v2775 = vunpack.c.l.b16 %v734
        %v2776 = vunpack.c.l.b16 %v735
        %v2777 = vunpack.c.l.b16 %v736
        %v2778 = vunpack.c.l.b16 %v737
        %v2779 = vunpack.c.l.b16 %v738
        %v2780 = vunpack.c.l.b16 %v739
        %v2781 = vunpack.c.l.b16 %v740
        %v2782 = vunpack.c.l.b16 %v741
        %v2783 = vunpack.c.l.b16 %v742
        %v2784 = vunpack.c.l.b16 %v743
        %v2785 = vunpack.c.l.b16 %v744
        %v2786 = vunpack.c.l.b16 %v745
        %v2787 = vunpack.c.l.b16 %v746
        %v2788 = vunpack.c.l.b16 %v747
        %v2789 = vunpack.c.l.b16 %v748
        %v2790 = vunpack.c.l.b16 %v749
        %v2791 = vunpack.c.l.b16 %v750
        %v2792 = vunpack.c.l.b16 %v751
        %v2793 = vunpack.c.l.b16 %v752
        %v2794 = vunpack.c.l.b16 %v753
        %v2795 = vunpack.c.l.b16 %v754
        %v2796 = vunpack.c.l.b16 %v755
        %v2797 = vunpack.c.l.b16 %v756
        %v2798 = vunpack.c.l.b16 %v757
        %v2799 = vunpack.c.l.b16 %v758
        %v2800 = vunpack.c.l.b16 %v759
        %v2801 = vunpack.c.l.b16 %v760
        %v2802 = vunpack.c.l.b16 %v761
        %v2803 = vunpack.c.l.b16 %v762
        %v2804 = vunpack.c.l.b16 %v763
        %v2805 = vunpack.c.l.b16 %v764
        %v2806 = vunpack.c.l.b16 %v765
        %v2807 = vunpack.c.l.b16 %v766
        %v2808 = vunpack.c.l.b16 %v767
        %v2809 = vunpack.c.l.b16 %v768
        %v2810 = vunpack.c.l.b16 %v769
        %v2811 = vunpack.c.l.b16 %v770
        %v2812 = vunpack.c.l.b16 %v771
        %v2813 = vunpack.c.l.b16 %v772
        %v2814 = vunpack.c.l.b16 %v773
        %v2815 = vunpack.c.l.b16 %v774
        %v2816 = vunpack.c.l.b16 %v775
        %v2817 = vunpack.c.l.b16 %v776
        %v2818 = vunpack.c.l.b16 %v777
        %v2819 = vunpack.c.l.b16 %v778
        %v2820 = vunpack.c.l.b16 %v779
        %v2821 = vunpack.c.l.b16 %v780
        %v2822 = vunpack.c.l.b16 %v781
        %v2823 = vunpack.c.l.b16 %v782
        %v2824 = vunpack.c.l.b16 %v783
        %v2825 = vunpack.c.l.b16 %v784
        %v2826 = vunpack.c.l.b16 %v785
        %v2827 = vunpack.c.l.b16 %v786
        %v2828 = vunpack.c.l.b16 %v787
        %v2829 = vunpack.c.l.b16 %v788
        %v2830 = vunpack.c.l.b16 %v789
        %v2831 = vunpack.c.l.b16 %v790
        %v2832 = vunpack.c.l.b16 %v791
        %v2833 = vunpack.c.l.b16 %v792
        %v2834 = vunpack.c.l.b16 %v793
        %v2835 = vunpack.c.l.b16 %v794
        %v2836 = vunpack.c.l.b16 %v795
        %v2837 = vunpack.c.l.b16 %v796
        %v2838 = vunpack.c.l.b16 %v797
        %v2839 = vunpack.c.l.b16 %v798
        %v2840 = vunpack.c.l.b16 %v799
        %v2841 = vunpack.c.l.b16 %v800
        %v2842 = vunpack.c.l.b16 %v801
        %v2843 = vunpack.c.l.b16 %v802
        %v2844 = vunpack.c.l.b16 %v803
        %v2845 = vunpack.c.l.b16 %v804
        %v2846 = vunpack.c.l.b16 %v805
        %v2847 = vunpack.c.l.b16 %v806
        %v2848 = vunpack.c.l.b16 %v807
        %v2849 = vunpack.c.l.b16 %v808
        %v2850 = vunpack.c.l.b16 %v809
        %v2851 = vunpack.c.l.b16 %v810
        %v2852 = vunpack.c.l.b16 %v811
        %v2853 = vunpack.c.l.b16 %v812
        %v2854 = vunpack.c.l.b16 %v813
        %v2855 = vunpack.c.l.b16 %v814
        %v2856 = vunpack.c.l.b16 %v815
        %v2857 = vunpack.c.l.b16 %v816
        %v2858 = vunpack.c.l.b16 %v817
        %v2859 = vunpack.c.l.b16 %v818
        %v2860 = vunpack.c.l.b16 %v819
        %v2861 = vunpack.c.l.b16 %v820
        %v2862 = vunpack.c.l.b16 %v821
        %v2863 = vunpack.c.l.b16 %v822
        %v2864 = vunpack.c.l.b16 %v823
        %v2865 = vunpack.c.l.b16 %v824
        %v2866 = vunpack.c.l.b16 %v825
        %v2867 = vunpack.c.l.b16 %v826
        %v2868 = vunpack.c.l.b16 %v827
        %v2869 = vunpack.c.l.b16 %v828
        %v2870 = vunpack.c.l.b16 %v829
        %v2871 = vunpack.c.l.b16 %v830
        %v2872 = vunpack.c.l.b16 %v831
        %v2873 = vunpack.c.l.b16 %v832
        %v2874 = vunpack.c.l.b16 %v833
        %v2875 = vunpack.c.l.b16 %v834
        %v2876 = vunpack.c.l.b16 %v835
        %v2877 = vunpack.c.l.b16 %v836
        %v2878 = vunpack.c.l.b16 %v837
        %v2879 = vunpack.c.l.b16 %v838
        %v2880 = vunpack.c.l.b16 %v839
        %v2881 = vunpack.c.l.b16 %v840
        %v2882 = vunpack.c.l.b16 %v841
        %v2883 = vunpack.c.l.b16 %v842
        %v2884 = vunpack.c.l.b16 %v843
        %v2885 = vunpack.c.l.b16 %v844
        %v2886 = vunpack.c.l.b16 %v845
        %v2887 = vunpack.c.l.b16 %v846
        %v2888 = vunpack.c.l.b16 %v847
        %v2889 = vunpack.c.l.b16 %v848
        %v2890 = vunpack.c.l.b16 %v849
        %v2891 = vunpack.c.l.b16 %v850
        %v2892 = vunpack.c.l.b16 %v851
        %v2893 = vunpack.c.l.b16 %v852
        %v2894 = vunpack.c.l.b16 %v853
        %v2895 = vunpack.c.l.b16 %v854
        %v2896 = vunpack.c.l.b16 %v855
        %v2897 = vunpack.c.l.b16 %v856
        %v2898 = vunpack.c.l.b16 %v857
        %v2899 = vunpack.c.l.b16 %v858
        %v2900 = vunpack.c.l.b16 %v859
        %v2901 = vunpack.c.l.b16 %v860
        %v2902 = vunpack.c.l.b16 %v861
        %v2903 = vunpack.c.l.b16 %v862
        %v2904 = vunpack.c.l.b16 %v863
        %v2905 = vunpack.c.l.b16 %v864
        %v2906 = vunpack.c.l.b16 %v865
        %v2907 = vunpack.c.l.b16 %v866
        %v2908 = vunpack.c.l.b16 %v867
        %v2909 = vunpack.c.l.b16 %v868
        %v2910 = vunpack.c.l.b16 %v869
        %v2911 = vunpack.c.l.b16 %v870
        %v2912 = vunpack.c.l.b16 %v871
        %v2913 = vunpack.c.l.b16 %v872
        %v2914 = vunpack.c.l.b16 %v873
        %v2915 = vunpack.c.l.b16 %v874
        %v2916 = vunpack.c.l.b16 %v875
        %v2917 = vunpack.c.l.b16 %v876
        %v2918 = vunpack.c.l.b16 %v877
        %v2919 = vunpack.c.l.b16 %v878
        %v2920 = vunpack.c.l.b16 %v879
        %v2921 = vunpack.c.l.b16 %v880
        %v2922 = vunpack.c.l.b16 %v881
        %v2923 = vunpack.c.l.b16 %v882
        %v2924 = vunpack.c.l.b16 %v883
        %v2925 = vunpack.c.l.b16 %v884
        %v2926 = vunpack.c.l.b16 %v885
        %v2927 = vunpack.c.l.b16 %v886
        %v2928 = vunpack.c.l.b16 %v887
        %v2929 = vunpack.c.l.b16 %v888
        %v2930 = vunpack.c.l.b16 %v889
        %v2931 = vunpack.c.l.b16 %v890
        %v2932 = vunpack.c.l.b16 %v891
        %v2933 = vunpack.c.l.b16 %v892
        %v2934 = vunpack.c.l.b16 %v893
        %v2935 = vunpack.c.l.b16 %v894
        %v2936 = vunpack.c.l.b16 %v895
        %v2937 = vunpack.c.l.b16 %v896
        %v2938 = vunpack.c.l.b16 %v897
        %v2939 = vunpack.c.l.b16 %v898
        %v2940 = vunpack.c.l.b16 %v899
        %v2941 = vunpack.c.l.b16 %v900
        %v2942 = vunpack.c.l.b16 %v901
        %v2943 = vunpack.c.l.b16 %v902
        %v2944 = vunpack.c.l.b16 %v903
        %v2945 = vunpack.c.l.b16 %v904
        %v2946 = vunpack.c.l.b16 %v905
        %v2947 = vunpack.c.l.b16 %v906
        %v2948 = vunpack.c.l.b16 %v907
        %v2949 = vunpack.c.l.b16 %v908
        %v2950 = vunpack.c.l.b16 %v909
        %v2951 = vunpack.c.l.b16 %v910
        %v2952 = vunpack.c.l.b16 %v911
        %v2953 = vunpack.c.l.b16 %v912
        %v2954 = vunpack.c.l.b16 %v913
        %v2955 = vunpack.c.l.b16 %v914
        %v2956 = vunpack.c.l.b16 %v915
        %v2957 = vunpack.c.l.b16 %v916
        %v2958 = vunpack.c.l.b16 %v917
        %v2959 = vunpack.c.l.b16 %v918
        %v2960 = vunpack.c.l.b16 %v919
        %v2961 = vunpack.c.l.b16 %v920
        %v2962 = vunpack.c.l.b16 %v921
        %v2963 = vunpack.c.l.b16 %v922
        %v2964 = vunpack.c.l.b16 %v923
        %v2965 = vunpack.c.l.b16 %v924
        %v2966 = vunpack.c.l.b16 %v925
        %v2967 = vunpack.c.l.b16 %v926
        %v2968 = vunpack.c.l.b16 %v927
        %v2969 = vunpack.c.l.b16 %v928
        %v2970 = vunpack.c.l.b16 %v929
        %v2971 = vunpack.c.l.b16 %v930
        %v2972 = vunpack.c.l.b16 %v931
        %v2973 = vunpack.c.l.b16 %v932
        %v2974 = vunpack.c.l.b16 %v933
        %v2975 = vunpack.c.l.b16 %v934
        %v2976 = vunpack.c.l.b16 %v935
        %v2977 = vunpack.c.l.b16 %v936
        %v2978 = vunpack.c.l.b16 %v937
        %v2979 = vunpack.c.l.b16 %v938
        %v2980 = vunpack.c.l.b16 %v939
        %v2981 = vunpack.c.l.b16 %v940
        %v2982 = vunpack.c.l.b16 %v941
        %v2983 = vunpack.c.l.b16 %v942
        %v2984 = vunpack.c.l.b16 %v943
        %v2985 = vunpack.c.l.b16 %v944
        %v2986 = vunpack.c.l.b16 %v945
        %v2987 = vunpack.c.l.b16 %v946
        %v2988 = vunpack.c.l.b16 %v947
        %v2989 = vunpack.c.l.b16 %v948
        %v2990 = vunpack.c.l.b16 %v949
        %v2991 = vunpack.c.l.b16 %v950
        %v2992 = vunpack.c.l.b16 %v951
        %v2993 = vunpack.c.l.b16 %v952
        %v2994 = vunpack.c.l.b16 %v953
        %v2995 = vunpack.c.l.b16 %v954
        %v2996 = vunpack.c.l.b16 %v955
        %v2997 = vunpack.c.l.b16 %v956
        %v2998 = vunpack.c.l.b16 %v957
        %v2999 = vunpack.c.l.b16 %v958
        %v3000 = vunpack.c.l.b16 %v959
        %v3001 = vunpack.c.l.b16 %v960
        %v3002 = vunpack.c.l.b16 %v961
        %v3003 = vunpack.c.l.b16 %v962
        %v3004 = vunpack.c.l.b16 %v963
        %v3005 = vunpack.c.l.b16 %v964
        %v3006 = vunpack.c.l.b16 %v965
        %v3007 = vunpack.c.l.b16 %v966
        %v3008 = vunpack.c.l.b16 %v967
        %v3009 = vunpack.c.l.b16 %v968
        %v3010 = vunpack.c.l.b16 %v969
        %v3011 = vunpack.c.l.b16 %v970
        %v3012 = vunpack.c.l.b16 %v971
        %v3013 = vunpack.c.l.b16 %v972
        %v3014 = vunpack.c.l.b16 %v973
        %v3015 = vunpack.c.l.b16 %v974
        %v3016 = vunpack.c.l.b16 %v975
        %v3017 = vunpack.c.l.b16 %v976
        %v3018 = vunpack.c.l.b16 %v977
        %v3019 = vunpack.c.l.b16 %v978
        %v3020 = vunpack.c.l.b16 %v979
        %v3021 = vunpack.c.l.b16 %v980
        %v3022 = vunpack.c.l.b16 %v981
        %v3023 = vunpack.c.l.b16 %v982
        %v3024 = vunpack.c.l.b16 %v983
        %v3025 = vunpack.c.l.b16 %v984
        %v3026 = vunpack.c.l.b16 %v985
        %v3027 = vunpack.c.l.b16 %v986
        %v3028 = vunpack.c.l.b16 %v987
        %v3029 = vunpack.c.l.b16 %v988
        %v3030 = vunpack.c.l.b16 %v989
        %v3031 = vunpack.c.l.b16 %v990
        %v3032 = vunpack.c.l.b16 %v991
        %v3033 = vunpack.c.l.b16 %v992
        %v3034 = vunpack.c.l.b16 %v993
        %v3035 = vunpack.c.l.b16 %v994
        %v3036 = vunpack.c.l.b16 %v995
        %v3037 = vunpack.c.l.b16 %v996
        %v3038 = vunpack.c.l.b16 %v997
        %v3039 = vunpack.c.l.b16 %v998
        %v3040 = vunpack.c.l.b16 %v999
        %v3041 = vunpack.c.l.b16 %v1000
        %v3042 = vunpack.c.l.b16 %v1001
        %v3043 = vunpack.c.l.b16 %v1002
        %v3044 = vunpack.c.l.b16 %v1003
        %v3045 = vunpack.c.l.b16 %v1004
        %v3046 = vunpack.c.l.b16 %v1005
        %v3047 = vunpack.c.l.b16 %v1006
        %v3048 = vunpack.c.l.b16 %v1007
        %v3049 = vunpack.c.l.b16 %v1008
        %v3050 = vunpack.c.l.b16 %v1009
        %v3051 = vunpack.c.l.b16 %v1010
        %v3052 = vunpack.c.l.b16 %v1011
        %v3053 = vunpack.c.l.b16 %v1012
        %v3054 = vunpack.c.l.b16 %v1013
        %v3055 = vunpack.c.l.b16 %v1014
        %v3056 = vunpack.c.l.b16 %v1015
        %v3057 = vunpack.c.l.b16 %v1016
        %v3058 = vunpack.c.l.b16 %v1017
        %v3059 = vunpack.c.l.b16 %v1018
        %v3060 = vunpack.c.l.b16 %v1019
        %v3061 = vunpack.c.l.b16 %v1020
        %v3062 = vunpack.c.l.b16 %v1021
        %v3063 = vunpack.c.l.b16 %v1022
        %v3064 = vunpack.c.l.b16 %v1023
        %v3065 = vunpack.c.l.b16 %v1024
        %v3066 = vunpack.c.l.b16 %v1025
        %v3067 = vunpack.c.l.b16 %v1026
        %v3068 = vunpack.c.l.b16 %v1027
        %v3069 = vunpack.c.l.b16 %v1028
        %v3070 = vunpack.c.l.b16 %v1029
        %v3071 = vunpack.c.l.b16 %v1030
        %v3072 = vunpack.c.l.b16 %v1031
        %v3073 = vunpack.c.l.b16 %v1032
        %v3074 = vunpack.c.l.b16 %v1033
        %v3075 = vunpack.c.l.b16 %v1034
        %v3076 = vunpack.c.l.b16 %v1035
        %v3077 = vunpack.c.l.b16 %v1036
        %v3078 = vunpack.c.l.b16 %v1037
        %v3079 = vunpack.c.l.b16 %v1038
        %v3080 = vunpack.c.l.b16 %v1039
        %v3081 = vunpack.c.l.b16 %v1040
        %v3082 = vunpack.c.l.b16 %v1041
        %v3083 = vunpack.c.l.b16 %v1042
        %v3084 = vunpack.c.l.b16 %v1043
        %v3085 = vunpack.c.l.b16 %v1044
        %v3086 = vunpack.c.l.b16 %v1045
        %v3087 = vunpack.c.l.b16 %v1046
        %v3088 = vunpack.c.l.b16 %v1047
        %v3089 = vunpack.c.l.b16 %v1048
        %v3090 = vunpack.c.l.b16 %v1049
        %v3091 = vunpack.c.l.b16 %v1050
        %v3092 = vunpack.c.l.b16 %v1051
        %v3093 = vunpack.c.l.b16 %v1052
        %v3094 = vunpack.c.l.b16 %v1053
        %v3095 = vunpack.c.l.b16 %v1054
        %v3096 = vunpack.c.l.b16 %v1055
        %v3097 = vunpack.c.l.b16 %v1056
        %v3098 = vunpack.c.l.b16 %v1057
        %v3099 = vunpack.c.l.b16 %v1058
        %v3100 = vunpack.c.l.b16 %v1059
        %v3101 = vunpack.c.l.b16 %v1060
        %v3102 = vunpack.c.l.b16 %v1061
        %v3103 = vunpack.c.l.b16 %v1062
        %v3104 = vunpack.c.l.b16 %v1063
        %v3105 = vunpack.c.l.b16 %v1064
        %v3106 = vunpack.c.l.b16 %v1065
        %v3107 = vunpack.c.l.b16 %v1066
        %v3108 = vunpack.c.l.b16 %v1067
        %v3109 = vunpack.c.l.b16 %v1068
        %v3110 = vunpack.c.l.b16 %v1069
        %v3111 = vunpack.c.l.b16 %v1070
        %v3112 = vunpack.c.l.b16 %v1071
        %v3113 = vunpack.c.l.b16 %v1072
        %v3114 = vunpack.c.l.b16 %v1073
        %v3115 = vunpack.c.l.b16 %v1074
        %v3116 = vunpack.c.l.b16 %v1075
        %v3117 = vunpack.c.l.b16 %v1076
        %v3118 = vunpack.c.l.b16 %v1077
        %v3119 = vunpack.c.l.b16 %v1078
        %v3120 = vunpack.c.l.b16 %v1079
        %v3121 = vunpack.c.l.b16 %v1080
        %v3122 = vunpack.c.l.b16 %v1081
        %v3123 = vunpack.c.l.b16 %v1082
        %v3124 = vunpack.c.l.b16 %v1083
        %v3125 = vunpack.c.l.b16 %v1084
        %v3126 = vunpack.c.l.b16 %v1085
        %v3127 = vunpack.c.l.b16 %v1086
        %v3128 = vunpack.c.l.b16 %v1087
        %v3129 = vunpack.c.l.b16 %v1088
        %v3130 = vunpack.c.l.b16 %v1089
        %v3131 = vunpack.c.l.b16 %v1090
        %v3132 = vunpack.c.l.b16 %v1091
        %v3133 = vunpack.c.l.b16 %v1092
        %v3134 = vunpack.c.l.b16 %v1093
        %v3135 = vunpack.c.l.b16 %v1094
        %v3136 = vunpack.c.l.b16 %v1095
        %v3137 = vunpack.c.l.b16 %v1096
        %v3138 = vunpack.c.l.b16 %v1097
        %v3139 = vunpack.c.l.b16 %v1098
        %v3140 = vunpack.c.l.b16 %v1099
        %v3141 = vunpack.c.l.b16 %v1100
        %v3142 = vunpack.c.l.b16 %v1101
        %v3143 = vunpack.c.l.b16 %v1102
        %v3144 = vunpack.c.l.b16 %v1103
        %v3145 = vunpack.c.l.b16 %v1104
        %v3146 = vunpack.c.l.b16 %v1105
        %v3147 = vunpack.c.l.b16 %v1106
        %v3148 = vunpack.c.l.b16 %v1107
        %v3149 = vunpack.c.l.b16 %v1108
        %v3150 = vunpack.c.l.b16 %v1109
        %v3151 = vunpack.c.l.b16 %v1110
        %v3152 = vunpack.c.l.b16 %v1111
        %v3153 = vunpack.c.l.b16 %v1112
        %v3154 = vunpack.c.l.b16 %v1113
        %v3155 = vunpack.c.l.b16 %v1114
        %v3156 = vunpack.c.l.b16 %v1115
        %v3157 = vunpack.c.l.b16 %v1116
        %v3158 = vunpack.c.l.b16 %v1117
        %v3159 = vunpack.c.l.b16 %v1118
        %v3160 = vunpack.c.l.b16 %v1119
        %v3161 = vunpack.c.l.b16 %v1120
        %v3162 = vunpack.c.l.b16 %v1121
        %v3163 = vunpack.c.l.b16 %v1122
        %v3164 = vunpack.c.l.b16 %v1123
        %v3165 = vunpack.c.l.b16 %v1124
        %v3166 = vunpack.c.l.b16 %v1125
        %v3167 = vunpack.c.l.b16 %v1126
        %v3168 = vunpack.c.l.b16 %v1127
        %v3169 = vunpack.c.l.b16 %v1128
        %v3170 = vunpack.c.l.b16 %v1129
        %v3171 = vunpack.c.l.b16 %v1130
        %v3172 = vunpack.c.l.b16 %v1131
        %v3173 = vunpack.c.l.b16 %v1132
        %v3174 = vunpack.c.l.b16 %v1133
        %v3175 = vunpack.c.l.b16 %v1134
        %v3176 = vunpack.c.l.b16 %v1135
        %v3177 = vunpack.c.l.b16 %v1136
        %v3178 = vunpack.c.l.b16 %v1137
        %v3179 = vunpack.c.l.b16 %v1138
        %v3180 = vunpack.c.l.b16 %v1139
        %v3181 = vunpack.c.l.b16 %v1140
        %v3182 = vunpack.c.l.b16 %v1141
        %v3183 = vunpack.c.l.b16 %v1142
        %v3184 = vunpack.c.l.b16 %v1143
        %v3185 = vunpack.c.l.b16 %v1144
        %v3186 = vunpack.c.l.b16 %v1145
        %v3187 = vunpack.c.l.b16 %v1146
        %v3188 = vpack.c.b16 %v2357, %v2356
        %v3189 = vpack.c.b16 %v2359, %v2358
        %v3190 = vpack.c.b16 %v2361, %v2360
        %v3191 = vpack.c.b16 %v2363, %v2362
        %v3192 = vpack.c.b16 %v2365, %v2364
        %v3193 = vpack.c.b16 %v2367, %v2366
        %v3194 = vpack.c.b16 %v2369, %v2368
        %v3195 = vpack.c.b16 %v2371, %v2370
        %v3196 = vpack.c.b16 %v2373, %v2372
        %v3197 = vpack.c.b16 %v2375, %v2374
        %v3198 = vpack.c.b16 %v2377, %v2376
        %v3199 = vpack.c.b16 %v2379, %v2378
        %v3200 = vpack.c.b16 %v2381, %v2380
        %v3201 = vpack.c.b16 %v2383, %v2382
        %v3202 = vpack.c.b16 %v2385, %v2384
        %v3203 = vpack.c.b16 %v2387, %v2386
        %v3204 = vpack.c.b16 %v2389, %v2388
        %v3205 = vpack.c.b16 %v2391, %v2390
        %v3206 = vpack.c.b16 %v2393, %v2392
        %v3207 = vpack.c.b16 %v2395, %v2394
        %v3208 = vpack.c.b16 %v2397, %v2396
        %v3209 = vpack.c.b16 %v2399, %v2398
        %v3210 = vpack.c.b16 %v2401, %v2400
        %v3211 = vpack.c.b16 %v2403, %v2402
        %v3212 = vpack.c.b16 %v2405, %v2404
        %v3213 = vpack.c.b16 %v2407, %v2406
        %v3214 = vpack.c.b16 %v2409, %v2408
        %v3215 = vpack.c.b16 %v2411, %v2410
        %v3216 = vpack.c.b16 %v2413, %v2412
        %v3217 = vpack.c.b16 %v2415, %v2414
        %v3218 = vpack.c.b16 %v2417, %v2416
        %v3219 = vpack.c.b16 %v2419, %v2418
        %v3220 = vpack.c.b16 %v2421, %v2420
        %v3221 = vpack.c.b16 %v2423, %v2422
        %v3222 = vpack.c.b16 %v2425, %v2424
        %v3223 = vpack.c.b16 %v2427, %v2426
        %v3224 = vpack.c.b16 %v2429, %v2428
        %v3225 = vpack.c.b16 %v2431, %v2430
        %v3226 = vpack.c.b16 %v2433, %v2432
        %v3227 = vpack.c.b16 %v2435, %v2434
        %v3228 = vpack.c.b16 %v2437, %v2436
        %v3229 = vpack.c.b16 %v2439, %v2438
        %v3230 = vpack.c.b16 %v2441, %v2440
        %v3231 = vpack.c.b16 %v2443, %v2442
        %v3232 = vpack.c.b16 %v2445, %v2444
        %v3233 = vpack.c.b16 %v2447, %v2446
        %v3234 = vpack.c.b16 %v2449, %v2448
        %v3235 = vpack.c.b16 %v2451, %v2450
        %v3236 = vpack.c.b16 %v2453, %v2452
        %v3237 = vpack.c.b16 %v2455, %v2454
        %v3238 = vpack.c.b16 %v2457, %v2456
        %v3239 = vpack.c.b16 %v2459, %v2458
        %v3240 = vpack.c.b16 %v2461, %v2460
        %v3241 = vpack.c.b16 %v2463, %v2462
        %v3242 = vpack.c.b16 %v2465, %v2464
        %v3243 = vpack.c.b16 %v2467, %v2466
        %v3244 = vpack.c.b16 %v2469, %v2468
        %v3245 = vpack.c.b16 %v2471, %v2470
        %v3246 = vpack.c.b16 %v2473, %v2472
        %v3247 = vpack.c.b16 %v2475, %v2474
        %v3248 = vpack.c.b16 %v2477, %v2476
        %v3249 = vpack.c.b16 %v2479, %v2478
        %v3250 = vpack.c.b16 %v2481, %v2480
        %v3251 = vpack.c.b16 %v2483, %v2482
        %v3252 = vpack.c.b16 %v2485, %v2484
        %v3253 = vpack.c.b16 %v2487, %v2486
        %v3254 = vpack.c.b16 %v2489, %v2488
        %v3255 = vpack.c.b16 %v2491, %v2490
        %v3256 = vpack.c.b16 %v2493, %v2492
        %v3257 = vpack.c.b16 %v2495, %v2494
        %v3258 = vpack.c.b16 %v2497, %v2496
        %v3259 = vpack.c.b16 %v2499, %v2498
        %v3260 = vpack.c.b16 %v2501, %v2500
        %v3261 = vpack.c.b16 %v2503, %v2502
        %v3262 = vpack.c.b16 %v2505, %v2504
        %v3263 = vpack.c.b16 %v2507, %v2506
        %v3264 = vpack.c.b16 %v2509, %v2508
        %v3265 = vpack.c.b16 %v2511, %v2510
        %v3266 = vpack.c.b16 %v2513, %v2512
        %v3267 = vpack.c.b16 %v2515, %v2514
        %v3268 = vpack.c.b16 %v2517, %v2516
        %v3269 = vpack.c.b16 %v2519, %v2518
        %v3270 = vpack.c.b16 %v2521, %v2520
        %v3271 = vpack.c.b16 %v2523, %v2522
        %v3272 = vpack.c.b16 %v2525, %v2524
        %v3273 = vpack.c.b16 %v2527, %v2526
        %v3274 = vpack.c.b16 %v2529, %v2528
        %v3275 = vpack.c.b16 %v2531, %v2530
        %v3276 = vpack.c.b16 %v2533, %v2532
        %v3277 = vpack.c.b16 %v2535, %v2534
        %v3278 = vpack.c.b16 %v2537, %v2536
        %v3279 = vpack.c.b16 %v2539, %v2538
        %v3280 = vpack.c.b16 %v2541, %v2540
        %v3281 = vpack.c.b16 %v2543, %v2542
        %v3282 = vpack.c.b16 %v2545, %v2544
        %v3283 = vpack.c.b16 %v2547, %v2546
        %v3284 = vpack.c.b16 %v2549, %v2548
        %v3285 = vpack.c.b16 %v2551, %v2550
        %v3286 = vpack.c.b16 %v2553, %v2552
        %v3287 = vpack.c.b16 %v2555, %v2554
        %v3288 = vpack.c.b16 %v2557, %v2556
        %v3289 = vpack.c.b16 %v2559, %v2558
        %v3290 = vpack.c.b16 %v2561, %v2560
        %v3291 = vpack.c.b16 %v2563, %v2562
        %v3292 = vpack.c.b16 %v2565, %v2564
        %v3293 = vpack.c.b16 %v2567, %v2566
        %v3294 = vpack.c.b16 %v2569, %v2568
        %v3295 = vpack.c.b16 %v2571, %v2570
        %v3296 = vpack.c.b16 %v2573, %v2572
        %v3297 = vpack.c.b16 %v2575, %v2574
        %v3298 = vpack.c.b16 %v2577, %v2576
        %v3299 = vpack.c.b16 %v2579, %v2578
        %v3300 = vpack.c.b16 %v2581, %v2580
        %v3301 = vpack.c.b16 %v2583, %v2582
        %v3302 = vpack.c.b16 %v2585, %v2584
        %v3303 = vpack.c.b16 %v2587, %v2586
        %v3304 = vpack.c.b16 %v2589, %v2588
        %v3305 = vpack.c.b16 %v2591, %v2590
        %v3306 = vpack.c.b16 %v2593, %v2592
        %v3307 = vpack.c.b16 %v2595, %v2594
        %v3308 = vpack.c.b16 %v2597, %v2596
        %v3309 = vpack.c.b16 %v2599, %v2598
        %v3310 = vpack.c.b16 %v2601, %v2600
        %v3311 = vpack.c.b16 %v2603, %v2602
        %v3312 = vpack.c.b16 %v2605, %v2604
        %v3313 = vpack.c.b16 %v2607, %v2606
        %v3314 = vpack.c.b16 %v2609, %v2608
        %v3315 = vpack.c.b16 %v2611, %v2610
        %v3316 = vpack.c.b16 %v2613, %v2612
        %v3317 = vpack.c.b16 %v2615, %v2614
        %v3318 = vpack.c.b16 %v2617, %v2616
        %v3319 = vpack.c.b16 %v2619, %v2618
        %v3320 = vpack.c.b16 %v2621, %v2620
        %v3321 = vpack.c.b16 %v2623, %v2622
        %v3322 = vpack.c.b16 %v2625, %v2624
        %v3323 = vpack.c.b16 %v2627, %v2626
        %v3324 = vpack.c.b16 %v2629, %v2628
        %v3325 = vpack.c.b16 %v2631, %v2630
        %v3326 = vpack.c.b16 %v2633, %v2632
        %v3327 = vpack.c.b16 %v2635, %v2634
        %v3328 = vpack.c.b16 %v2637, %v2636
        %v3329 = vpack.c.b16 %v2639, %v2638
        %v3330 = vpack.c.b16 %v2641, %v2640
        %v3331 = vpack.c.b16 %v2643, %v2642
        %v3332 = vpack.c.b16 %v2645, %v2644
        %v3333 = vpack.c.b16 %v2647, %v2646
        %v3334 = vpack.c.b16 %v2649, %v2648
        %v3335 = vpack.c.b16 %v2651, %v2650
        %v3336 = vpack.c.b16 %v2653, %v2652
        %v3337 = vpack.c.b16 %v2655, %v2654
        %v3338 = vpack.c.b16 %v2657, %v2656
        %v3339 = vpack.c.b16 %v2659, %v2658
        %v3340 = vpack.c.b16 %v2661, %v2660
        %v3341 = vpack.c.b16 %v2663, %v2662
        %v3342 = vpack.c.b16 %v2665, %v2664
        %v3343 = vpack.c.b16 %v2667, %v2666
        %v3344 = vpack.c.b16 %v2669, %v2668
        %v3345 = vpack.c.b16 %v2671, %v2670
        %v3346 = vpack.c.b16 %v2673, %v2672
        %v3347 = vpack.c.b16 %v2675, %v2674
        %v3348 = vpack.c.b16 %v2677, %v2676
        %v3349 = vpack.c.b16 %v2679, %v2678
        %v3350 = vpack.c.b16 %v2681, %v2680
        %v3351 = vpack.c.b16 %v2683, %v2682
        %v3352 = vpack.c.b16 %v2685, %v2684
        %v3353 = vpack.c.b16 %v2687, %v2686
        %v3354 = vpack.c.b16 %v2689, %v2688
        %v3355 = vpack.c.b16 %v2691, %v2690
        %v3356 = vpack.c.b16 %v2693, %v2692
        %v3357 = vpack.c.b16 %v2695, %v2694
        %v3358 = vpack.c.b16 %v2697, %v2696
        %v3359 = vpack.c.b16 %v2699, %v2698
        %v3360 = vpack.c.b16 %v2701, %v2700
        %v3361 = vpack.c.b16 %v2703, %v2702
        %v3362 = vpack.c.b16 %v2705, %v2704
        %v3363 = vpack.c.b16 %v2707, %v2706
        %v3364 = vpack.c.b16 %v2709, %v2708
        %v3365 = vpack.c.b16 %v2711, %v2710
        %v3366 = vpack.c.b16 %v2713, %v2712
        %v3367 = vpack.c.b16 %v2715, %v2714
        %v3368 = vpack.c.b16 %v2717, %v2716
        %v3369 = vpack.c.b16 %v2719, %v2718
        %v3370 = vpack.c.b16 %v2721, %v2720
        %v3371 = vpack.c.b16 %v2723, %v2722
        %v3372 = vpack.c.b16 %v2725, %v2724
        %v3373 = vpack.c.b16 %v2727, %v2726
        %v3374 = vpack.c.b16 %v2729, %v2728
        %v3375 = vpack.c.b16 %v2731, %v2730
        %v3376 = vpack.c.b16 %v2733, %v2732
        %v3377 = vpack.c.b16 %v2735, %v2734
        %v3378 = vpack.c.b16 %v2737, %v2736
        %v3379 = vpack.c.b16 %v2739, %v2738
        %v3380 = vpack.c.b16 %v2741, %v2740
        %v3381 = vpack.c.b16 %v2743, %v2742
        %v3382 = vpack.c.b16 %v2745, %v2744
        %v3383 = vpack.c.b16 %v2747, %v2746
        %v3384 = vpack.c.b16 %v2749, %v2748
        %v3385 = vpack.c.b16 %v2751, %v2750
        %v3386 = vpack.c.b16 %v2753, %v2752
        %v3387 = vpack.c.b16 %v2755, %v2754
        %v3388 = vpack.c.b16 %v2757, %v2756
        %v3389 = vpack.c.b16 %v2759, %v2758
        %v3390 = vpack.c.b16 %v2761, %v2760
        %v3391 = vpack.c.b16 %v2763, %v2762
        %v3392 = vpack.c.b16 %v2765, %v2764
        %v3393 = vpack.c.b16 %v2767, %v2766
        %v3394 = vpack.c.b16 %v2769, %v2768
        %v3395 = vpack.c.b16 %v2771, %v2770
        %v3396 = vpack.c.b16 %v2773, %v2772
        %v3397 = vpack.c.b16 %v2775, %v2774
        %v3398 = vpack.c.b16 %v2777, %v2776
        %v3399 = vpack.c.b16 %v2779, %v2778
        %v3400 = vpack.c.b16 %v2781, %v2780
        %v3401 = vpack.c.b16 %v2783, %v2782
        %v3402 = vpack.c.b16 %v2785, %v2784
        %v3403 = vpack.c.b16 %v2787, %v2786
        %v3404 = vpack.c.b16 %v2789, %v2788
        %v3405 = vpack.c.b16 %v2791, %v2790
        %v3406 = vpack.c.b16 %v2793, %v2792
        %v3407 = vpack.c.b16 %v2795, %v2794
        %v3408 = vpack.c.b16 %v2797, %v2796
        %v3409 = vpack.c.b16 %v2799, %v2798
        %v3410 = vpack.c.b16 %v2801, %v2800
        %v3411 = vpack.c.b16 %v2803, %v2802
        %v3412 = vpack.c.b16 %v2805, %v2804
        %v3413 = vpack.c.b16 %v2807, %v2806
        %v3414 = vpack.c.b16 %v2809, %v2808
        %v3415 = vpack.c.b16 %v2811, %v2810
        %v3416 = vpack.c.b16 %v2813, %v2812
        %v3417 = vpack.c.b16 %v2815, %v2814
        %v3418 = vpack.c.b16 %v2817, %v2816
        %v3419 = vpack.c.b16 %v2819, %v2818
        %v3420 = vpack.c.b16 %v2821, %v2820
        %v3421 = vpack.c.b16 %v2823, %v2822
        %v3422 = vpack.c.b16 %v2825, %v2824
        %v3423 = vpack.c.b16 %v2827, %v2826
        %v3424 = vpack.c.b16 %v2829, %v2828
        %v3425 = vpack.c.b16 %v2831, %v2830
        %v3426 = vpack.c.b16 %v2833, %v2832
        %v3427 = vpack.c.b16 %v2835, %v2834
        %v3428 = vpack.c.b16 %v2837, %v2836
        %v3429 = vpack.c.b16 %v2839, %v2838
        %v3430 = vpack.c.b16 %v2841, %v2840
        %v3431 = vpack.c.b16 %v2843, %v2842
        %v3432 = vpack.c.b16 %v2845, %v2844
        %v3433 = vpack.c.b16 %v2847, %v2846
        %v3434 = vpack.c.b16 %v2849, %v2848
        %v3435 = vpack.c.b16 %v2851, %v2850
        %v3436 = vpack.c.b16 %v2853, %v2852
        %v3437 = vpack.c.b16 %v2855, %v2854
        %v3438 = vpack.c.b16 %v2857, %v2856
        %v3439 = vpack.c.b16 %v2859, %v2858
        %v3440 = vpack.c.b16 %v2861, %v2860
        %v3441 = vpack.c.b16 %v2863, %v2862
        %v3442 = vpack.c.b16 %v2865, %v2864
        %v3443 = vpack.c.b16 %v2867, %v2866
        %v3444 = vpack.c.b16 %v2869, %v2868
        %v3445 = vpack.c.b16 %v2871, %v2870
        %v3446 = vpack.c.b16 %v2873, %v2872
        %v3447 = vpack.c.b16 %v2875, %v2874
        %v3448 = vpack.c.b16 %v2877, %v2876
        %v3449 = vpack.c.b16 %v2879, %v2878
        %v3450 = vpack.c.b16 %v2881, %v2880
        %v3451 = vpack.c.b16 %v2883, %v2882
        %v3452 = vpack.c.b16 %v2885, %v2884
        %v3453 = vpack.c.b16 %v2887, %v2886
        %v3454 = vpack.c.b16 %v2889, %v2888
        %v3455 = vpack.c.b16 %v2891, %v2890
        %v3456 = vpack.c.b16 %v2893, %v2892
        %v3457 = vpack.c.b16 %v2895, %v2894
        %v3458 = vpack.c.b16 %v2897, %v2896
        %v3459 = vpack.c.b16 %v2899, %v2898
        %v3460 = vpack.c.b16 %v2901, %v2900
        %v3461 = vpack.c.b16 %v2903, %v2902
        %v3462 = vpack.c.b16 %v2905, %v2904
        %v3463 = vpack.c.b16 %v2907, %v2906
        %v3464 = vpack.c.b16 %v2909, %v2908
        %v3465 = vpack.c.b16 %v2911, %v2910
        %v3466 = vpack.c.b16 %v2913, %v2912
        %v3467 = vpack.c.b16 %v2915, %v2914
        %v3468 = vpack.c.b16 %v2917, %v2916
        %v3469 = vpack.c.b16 %v2919, %v2918
        %v3470 = vpack.c.b16 %v2921, %v2920
        %v3471 = vpack.c.b16 %v2923, %v2922
        %v3472 = vpack.c.b16 %v2925, %v2924
        %v3473 = vpack.c.b16 %v2927, %v2926
        %v3474 = vpack.c.b16 %v2929, %v2928
        %v3475 = vpack.c.b16 %v2931, %v2930
        %v3476 = vpack.c.b16 %v2933, %v2932
        %v3477 = vpack.c.b16 %v2935, %v2934
        %v3478 = vpack.c.b16 %v2937, %v2936
        %v3479 = vpack.c.b16 %v2939, %v2938
        %v3480 = vpack.c.b16 %v2941, %v2940
        %v3481 = vpack.c.b16 %v2943, %v2942
        %v3482 = vpack.c.b16 %v2945, %v2944
        %v3483 = vpack.c.b16 %v2947, %v2946
        %v3484 = vpack.c.b16 %v2949, %v2948
        %v3485 = vpack.c.b16 %v2951, %v2950
        %v3486 = vpack.c.b16 %v2953, %v2952
        %v3487 = vpack.c.b16 %v2955, %v2954
        %v3488 = vpack.c.b16 %v2957, %v2956
        %v3489 = vpack.c.b16 %v2959, %v2958
        %v3490 = vpack.c.b16 %v2961, %v2960
        %v3491 = vpack.c.b16 %v2963, %v2962
        %v3492 = vpack.c.b16 %v2965, %v2964
        %v3493 = vpack.c.b16 %v2967, %v2966
        %v3494 = vpack.c.b16 %v2969, %v2968
        %v3495 = vpack.c.b16 %v2971, %v2970
        %v3496 = vpack.c.b16 %v2973, %v2972
        %v3497 = vpack.c.b16 %v2975, %v2974
        %v3498 = vpack.c.b16 %v2977, %v2976
        %v3499 = vpack.c.b16 %v2979, %v2978
        %v3500 = vpack.c.b16 %v2981, %v2980
        %v3501 = vpack.c.b16 %v2983, %v2982
        %v3502 = vpack.c.b16 %v2985, %v2984
        %v3503 = vpack.c.b16 %v2987, %v2986
        %v3504 = vpack.c.b16 %v2989, %v2988
        %v3505 = vpack.c.b16 %v2991, %v2990
        %v3506 = vpack.c.b16 %v2993, %v2992
        %v3507 = vpack.c.b16 %v2995, %v2994
        %v3508 = vpack.c.b16 %v2997, %v2996
        %v3509 = vpack.c.b16 %v2999, %v2998
        %v3510 = vpack.c.b16 %v3001, %v3000
        %v3511 = vpack.c.b16 %v3003, %v3002
        %v3512 = vpack.c.b16 %v3005, %v3004
        %v3513 = vpack.c.b16 %v3007, %v3006
        %v3514 = vpack.c.b16 %v3009, %v3008
        %v3515 = vpack.c.b16 %v3011, %v3010
        %v3516 = vpack.c.b16 %v3013, %v3012
        %v3517 = vpack.c.b16 %v3015, %v3014
        %v3518 = vpack.c.b16 %v3017, %v3016
        %v3519 = vpack.c.b16 %v3019, %v3018
        %v3520 = vpack.c.b16 %v3021, %v3020
        %v3521 = vpack.c.b16 %v3023, %v3022
        %v3522 = vpack.c.b16 %v3025, %v3024
        %v3523 = vpack.c.b16 %v3027, %v3026
        %v3524 = vpack.c.b16 %v3029, %v3028
        %v3525 = vpack.c.b16 %v3031, %v3030
        %v3526 = vpack.c.b16 %v3033, %v3032
        %v3527 = vpack.c.b16 %v3035, %v3034
        %v3528 = vpack.c.b16 %v3037, %v3036
        %v3529 = vpack.c.b16 %v3039, %v3038
        %v3530 = vpack.c.b16 %v3041, %v3040
        %v3531 = vpack.c.b16 %v3043, %v3042
        %v3532 = vpack.c.b16 %v3045, %v3044
        %v3533 = vpack.c.b16 %v3047, %v3046
        %v3534 = vpack.c.b16 %v3049, %v3048
        %v3535 = vpack.c.b16 %v3051, %v3050
        %v3536 = vpack.c.b16 %v3053, %v3052
        %v3537 = vpack.c.b16 %v3055, %v3054
        %v3538 = vpack.c.b16 %v3057, %v3056
        %v3539 = vpack.c.b16 %v3059, %v3058
        %v3540 = vpack.c.b16 %v3061, %v3060
        %v3541 = vpack.c.b16 %v3063, %v3062
        %v3542 = vpack.c.b16 %v3065, %v3064
        %v3543 = vpack.c.b16 %v3067, %v3066
        %v3544 = vpack.c.b16 %v3069, %v3068
        %v3545 = vpack.c.b16 %v3071, %v3070
        %v3546 = vpack.c.b16 %v3073, %v3072
        %v3547 = vpack.c.b16 %v3075, %v3074
        %v3548 = vpack.c.b16 %v3077, %v3076
        %v3549 = vpack.c.b16 %v3079, %v3078
        %v3550 = vpack.c.b16 %v3081, %v3080
        %v3551 = vpack.c.b16 %v3083, %v3082
        %v3552 = vpack.c.b16 %v3085, %v3084
        %v3553 = vpack.c.b16 %v3087, %v3086
        %v3554 = vpack.c.b16 %v3089, %v3088
        %v3555 = vpack.c.b16 %v3091, %v3090
        %v3556 = vpack.c.b16 %v3093, %v3092
        %v3557 = vpack.c.b16 %v3095, %v3094
        %v3558 = vpack.c.b16 %v3097, %v3096
        %v3559 = vpack.c.b16 %v3099, %v3098
        %v3560 = vpack.c.b16 %v3101, %v3100
        %v3561 = vpack.c.b16 %v3103, %v3102
        %v3562 = vpack.c.b16 %v3105, %v3104
        %v3563 = vpack.c.b16 %v3107, %v3106
        %v3564 = vpack.c.b16 %v3109, %v3108
        %v3565 = vpack.c.b16 %v3111, %v3110
        %v3566 = vpack.c.b16 %v3113, %v3112
        %v3567 = vpack.c.b16 %v3115, %v3114
        %v3568 = vpack.c.b16 %v3117, %v3116
        %v3569 = vpack.c.b16 %v3119, %v3118
        %v3570 = vpack.c.b16 %v3121, %v3120
        %v3571 = vpack.c.b16 %v3123, %v3122
        %v3572 = vpack.c.b16 %v3125, %v3124
        %v3573 = vpack.c.b16 %v3127, %v3126
        %v3574 = vpack.c.b16 %v3129, %v3128
        %v3575 = vpack.c.b16 %v3131, %v3130
        %v3576 = vpack.c.b16 %v3133, %v3132
        %v3577 = vpack.c.b16 %v3135, %v3134
        %v3578 = vpack.c.b16 %v3137, %v3136
        %v3579 = vpack.c.b16 %v3139, %v3138
        %v3580 = vpack.c.b16 %v3141, %v3140
        %v3581 = vpack.c.b16 %v3143, %v3142
        %v3582 = vpack.c.b16 %v3145, %v3144
        %v3583 = vpack.c.b16 %v3147, %v3146
        %v3584 = vpack.c.b16 %v3149, %v3148
        %v3585 = vpack.c.b16 %v3151, %v3150
        %v3586 = vpack.c.b16 %v3153, %v3152
        %v3587 = vpack.c.b16 %v3155, %v3154
        %v3588 = vpack.c.b16 %v3157, %v3156
        %v3589 = vpack.c.b16 %v3159, %v3158
        %v3590 = vpack.c.b16 %v3161, %v3160
        %v3591 = vpack.c.b16 %v3163, %v3162
        %v3592 = vpack.c.b16 %v3165, %v3164
        %v3593 = vpack.c.b16 %v3167, %v3166
        %v3594 = vpack.c.b16 %v3169, %v3168
        %v3595 = vpack.c.b16 %v3171, %v3170
        %v3596 = vpack.c.b16 %v3173, %v3172
        %v3597 = vpack.c.b16 %v3175, %v3174
        %v3598 = vpack.c.b16 %v3177, %v3176
        %v3599 = vpack.c.b16 %v3179, %v3178
        %v3600 = vpack.c.b16 %v3181, %v3180
        %v3601 = vpack.c.b16 %v3183, %v3182
        %v3602 = vpack.c.b16 %v3185, %v3184
        %v3603 = vpack.c.b16 %v3187, %v3186
        %4020 = vmatprep.subr.bf16.mxu0 0
        %4021 = vmatpush1.bf16.msra.mxu0 %v3188
        %4022 = vmatprep.subr.bf16.mxu0 0
        %4023 = vmatpush1.bf16.msra.mxu0 %v3189
        %4024 = vmatprep.subr.bf16.mxu0 0
        %4025 = vmatpush1.bf16.msra.mxu0 %v3190
        %4026 = vmatprep.subr.bf16.mxu0 0
        %4027 = vmatpush1.bf16.msra.mxu0 %v3191
        %4028 = vmatprep.subr.bf16.mxu0 0
        %4029 = vmatpush1.bf16.msra.mxu0 %v3192
        %4030 = vmatprep.subr.bf16.mxu0 0
        %4031 = vmatpush1.bf16.msra.mxu0 %v3193
        %4032 = vmatprep.subr.bf16.mxu0 0
        %4033 = vmatpush1.bf16.msra.mxu0 %v3194
        %4034 = vmatprep.subr.bf16.mxu0 0
        %4035 = vmatpush1.bf16.msra.mxu0 %v3195
        %4036 = vmatprep.subr.bf16.mxu0 0
        %4037 = vmatpush1.bf16.msra.mxu0 %v3196
        %4038 = vmatprep.subr.bf16.mxu0 0
        %4039 = vmatpush1.bf16.msra.mxu0 %v3197
        %4040 = vmatprep.subr.bf16.mxu0 0
        %4041 = vmatpush1.bf16.msra.mxu0 %v3198
        %4042 = vmatprep.subr.bf16.mxu0 0
        %4043 = vmatpush1.bf16.msra.mxu0 %v3199
        %4044 = vmatprep.subr.bf16.mxu0 0
        %4045 = vmatpush1.bf16.msra.mxu0 %v3200
        %4046 = vmatprep.subr.bf16.mxu0 0
        %4047 = vmatpush1.bf16.msra.mxu0 %v3201
        %4048 = vmatprep.subr.bf16.mxu0 0
        %4049 = vmatpush1.bf16.msra.mxu0 %v3202
        %4050 = vmatprep.subr.bf16.mxu0 0
        %4051 = vmatpush1.bf16.msra.mxu0 %v3203
        %4052 = vmatprep.mubr.bf16.mxu0 %v1191
        %4053 = vmatmul.mubr.bf16.gmra.mrb[0].mxu0 %v1177
        %v4054 = vpop.f32.mrb[0].mxu0
        %v4055 = vadd.f32 0.0, %v4054
        %v4056 = vpop.f32.mrb[0].mxu0
        %v4057 = vpop.f32.mrb[0].mxu0
        %v4058 = vpop.f32.mrb[0].mxu0
        %4059 = vdwg.mxu0
        %4060 = vmatprep.subr.bf16.mxu0 0
        %4061 = vmatpush1.bf16.msra.mxu0 %v3204
        %4062 = vmatprep.subr.bf16.mxu0 0
        %4063 = vmatpush1.bf16.msra.mxu0 %v3205
        %4064 = vmatprep.subr.bf16.mxu0 0
        %4065 = vmatpush1.bf16.msra.mxu0 %v3206
        %4066 = vmatprep.subr.bf16.mxu0 0
        %4067 = vmatpush1.bf16.msra.mxu0 %v3207
        %4068 = vmatprep.subr.bf16.mxu0 0
        %4069 = vmatpush1.bf16.msra.mxu0 %v3208
        %4070 = vmatprep.subr.bf16.mxu0 0
        %4071 = vmatpush1.bf16.msra.mxu0 %v3209
        %4072 = vmatprep.subr.bf16.mxu0 0
        %4073 = vmatpush1.bf16.msra.mxu0 %v3210
        %4074 = vmatprep.subr.bf16.mxu0 0
        %4075 = vmatpush1.bf16.msra.mxu0 %v3211
        %4076 = vmatprep.subr.bf16.mxu0 0
        %4077 = vmatpush1.bf16.msra.mxu0 %v3212
        %4078 = vmatprep.subr.bf16.mxu0 0
        %4079 = vmatpush1.bf16.msra.mxu0 %v3213
        %4080 = vmatprep.subr.bf16.mxu0 0
        %4081 = vmatpush1.bf16.msra.mxu0 %v3214
        %4082 = vmatprep.subr.bf16.mxu0 0
        %4083 = vmatpush1.bf16.msra.mxu0 %v3215
        %4084 = vmatprep.subr.bf16.mxu0 0
        %4085 = vmatpush1.bf16.msra.mxu0 %v3216
        %4086 = vmatprep.subr.bf16.mxu0 0
        %4087 = vmatpush1.bf16.msra.mxu0 %v3217
        %4088 = vmatprep.subr.bf16.mxu0 0
        %4089 = vmatpush1.bf16.msra.mxu0 %v3218
        %4090 = vmatprep.subr.bf16.mxu0 0
        %4091 = vmatpush1.bf16.msra.mxu0 %v3219
        %4092 = vmatprep.mubr.bf16.mxu0 %v1201
        %4093 = vmatmul.mubr.bf16.gmra.mrb[0].mxu0 %v1199
        %v4094 = vpop.f32.mrb[0].mxu0
        %v4095 = vadd.f32 %v4055, %v4094
        %v4096 = vpop.f32.mrb[0].mxu0
        %v4097 = vpop.f32.mrb[0].mxu0
        %v4098 = vpop.f32.mrb[0].mxu0
        %4099 = vdwg.mxu0
        %4100 = vmatprep.subr.bf16.mxu0 0
        %4101 = vmatpush1.bf16.msra.mxu0 %v3220
        %4102 = vmatprep.subr.bf16.mxu0 0
        %4103 = vmatpush1.bf16.msra.mxu0 %v3221
        %4104 = vmatprep.subr.bf16.mxu0 0
        %4105 = vmatpush1.bf16.msra.mxu0 %v3222
        %4106 = vmatprep.subr.bf16.mxu0 0
        %4107 = vmatpush1.bf16.msra.mxu0 %v3223
        %4108 = vmatprep.subr.bf16.mxu0 0
        %4109 = vmatpush1.bf16.msra.mxu0 %v3224
        %4110 = vmatprep.subr.bf16.mxu0 0
        %4111 = vmatpush1.bf16.msra.mxu0 %v3225
        %4112 = vmatprep.subr.bf16.mxu0 0
        %4113 = vmatpush1.bf16.msra.mxu0 %v3226
        %4114 = vmatprep.subr.bf16.mxu0 0
        %4115 = vmatpush1.bf16.msra.mxu0 %v3227
        %4116 = vmatprep.subr.bf16.mxu0 0
        %4117 = vmatpush1.bf16.msra.mxu0 %v3228
        %4118 = vmatprep.subr.bf16.mxu0 0
        %4119 = vmatpush1.bf16.msra.mxu0 %v3229
        %4120 = vmatprep.subr.bf16.mxu0 0
        %4121 = vmatpush1.bf16.msra.mxu0 %v3230
        %4122 = vmatprep.subr.bf16.mxu0 0
        %4123 = vmatpush1.bf16.msra.mxu0 %v3231
        %4124 = vmatprep.subr.bf16.mxu0 0
        %4125 = vmatpush1.bf16.msra.mxu0 %v3232
        %4126 = vmatprep.subr.bf16.mxu0 0
        %4127 = vmatpush1.bf16.msra.mxu0 %v3233
        %4128 = vmatprep.subr.bf16.mxu0 0
        %4129 = vmatpush1.bf16.msra.mxu0 %v3234
        %4130 = vmatprep.subr.bf16.mxu0 0
        %4131 = vmatpush1.bf16.msra.mxu0 %v3235
        %4132 = vmatprep.mubr.bf16.mxu0 %v1198
        %4133 = vmatmul.mubr.bf16.gmra.mrb[0].mxu0 %v1184
        %v4134 = vpop.f32.mrb[0].mxu0
        %v4135 = vadd.f32 %v4095, %v4134
        %v4136 = vpop.f32.mrb[0].mxu0
        %v4137 = vpop.f32.mrb[0].mxu0
        %v4138 = vpop.f32.mrb[0].mxu0
        %4139 = vdwg.mxu0
        %4140 = vmatprep.subr.bf16.mxu0 0
        %4141 = vmatpush1.bf16.msra.mxu0 %v3236
        %4142 = vmatprep.subr.bf16.mxu0 0
        %4143 = vmatpush1.bf16.msra.mxu0 %v3237
        %4144 = vmatprep.subr.bf16.mxu0 0
        %4145 = vmatpush1.bf16.msra.mxu0 %v3238
        %4146 = vmatprep.subr.bf16.mxu0 0
        %4147 = vmatpush1.bf16.msra.mxu0 %v3239
        %4148 = vmatprep.subr.bf16.mxu0 0
        %4149 = vmatpush1.bf16.msra.mxu0 %v3240
        %4150 = vmatprep.subr.bf16.mxu0 0
        %4151 = vmatpush1.bf16.msra.mxu0 %v3241
        %4152 = vmatprep.subr.bf16.mxu0 0
        %4153 = vmatpush1.bf16.msra.mxu0 %v3242
        %4154 = vmatprep.subr.bf16.mxu0 0
        %4155 = vmatpush1.bf16.msra.mxu0 %v3243
        %4156 = vmatprep.subr.bf16.mxu0 0
        %4157 = vmatpush1.bf16.msra.mxu0 %v3244
        %4158 = vmatprep.subr.bf16.mxu0 0
        %4159 = vmatpush1.bf16.msra.mxu0 %v3245
        %4160 = vmatprep.subr.bf16.mxu0 0
        %4161 = vmatpush1.bf16.msra.mxu0 %v3246
        %4162 = vmatprep.subr.bf16.mxu0 0
        %4163 = vmatpush1.bf16.msra.mxu0 %v3247
        %4164 = vmatprep.subr.bf16.mxu0 0
        %4165 = vmatpush1.bf16.msra.mxu0 %v3248
        %4166 = vmatprep.subr.bf16.mxu0 0
        %4167 = vmatpush1.bf16.msra.mxu0 %v3249
        %4168 = vmatprep.subr.bf16.mxu0 0
        %4169 = vmatpush1.bf16.msra.mxu0 %v3250
        %4170 = vmatprep.subr.bf16.mxu0 0
        %4171 = vmatpush1.bf16.msra.mxu0 %v3251
        %4172 = vmatprep.mubr.bf16.mxu0 %v1202
        %4173 = vmatmul.mubr.bf16.gmra.mrb[0].mxu0 %v1200
        %v4174 = vpop.f32.mrb[0].mxu0
        %v4175 = vadd.f32 %v4135, %v4174
        %v4176 = vpop.f32.mrb[0].mxu0
        %v4177 = vpop.f32.mrb[0].mxu0
        %v4178 = vpop.f32.mrb[0].mxu0
        %4179 = vdwg.mxu0
        %4180 = vmatprep.subr.bf16.mxu0 0
        %4181 = vmatpush1.bf16.msra.mxu0 %v3252
        %4182 = vmatprep.subr.bf16.mxu0 0
        %4183 = vmatpush1.bf16.msra.mxu0 %v3253
        %4184 = vmatprep.subr.bf16.mxu0 0
        %4185 = vmatpush1.bf16.msra.mxu0 %v3254
        %4186 = vmatprep.subr.bf16.mxu0 0
        %4187 = vmatpush1.bf16.msra.mxu0 %v3255
        %4188 = vmatprep.subr.bf16.mxu0 0
        %4189 = vmatpush1.bf16.msra.mxu0 %v3256
        %4190 = vmatprep.subr.bf16.mxu0 0
        %4191 = vmatpush1.bf16.msra.mxu0 %v3257
        %4192 = vmatprep.subr.bf16.mxu0 0
        %4193 = vmatpush1.bf16.msra.mxu0 %v3258
        %4194 = vmatprep.subr.bf16.mxu0 0
        %4195 = vmatpush1.bf16.msra.mxu0 %v3259
        %4196 = vmatprep.subr.bf16.mxu0 0
        %4197 = vmatpush1.bf16.msra.mxu0 %v3260
        %4198 = vmatprep.subr.bf16.mxu0 0
        %4199 = vmatpush1.bf16.msra.mxu0 %v3261
        %4200 = vmatprep.subr.bf16.mxu0 0
        %4201 = vmatpush1.bf16.msra.mxu0 %v3262
        %4202 = vmatprep.subr.bf16.mxu0 0
        %4203 = vmatpush1.bf16.msra.mxu0 %v3263
        %4204 = vmatprep.subr.bf16.mxu0 0
        %4205 = vmatpush1.bf16.msra.mxu0 %v3264
        %4206 = vmatprep.subr.bf16.mxu0 0
        %4207 = vmatpush1.bf16.msra.mxu0 %v3265
        %4208 = vmatprep.subr.bf16.mxu0 0
        %4209 = vmatpush1.bf16.msra.mxu0 %v3266
        %4210 = vmatprep.subr.bf16.mxu0 0
        %4211 = vmatpush1.bf16.msra.mxu0 %v3267
        %4212 = vmatprep.mubr.bf16.mxu0 %v1240
        %4213 = vmatmul.mubr.bf16.gmra.mrb[0].mxu0 %v1226
        %v4214 = vpop.f32.mrb[0].mxu0
        %v4215 = vadd.f32 %v4175, %v4214
        %v4216 = vpop.f32.mrb[0].mxu0
        %v4217 = vpop.f32.mrb[0].mxu0
        %v4218 = vpop.f32.mrb[0].mxu0
        %4219 = vdwg.mxu0
        %4220 = vmatprep.subr.bf16.mxu0 0
        %4221 = vmatpush1.bf16.msra.mxu0 %v3268
        %4222 = vmatprep.subr.bf16.mxu0 0
        %4223 = vmatpush1.bf16.msra.mxu0 %v3269
        %4224 = vmatprep.subr.bf16.mxu0 0
        %4225 = vmatpush1.bf16.msra.mxu0 %v3270
        %4226 = vmatprep.subr.bf16.mxu0 0
        %4227 = vmatpush1.bf16.msra.mxu0 %v3271
        %4228 = vmatprep.subr.bf16.mxu0 0
        %4229 = vmatpush1.bf16.msra.mxu0 %v3272
        %4230 = vmatprep.subr.bf16.mxu0 0
        %4231 = vmatpush1.bf16.msra.mxu0 %v3273
        %4232 = vmatprep.subr.bf16.mxu0 0
        %4233 = vmatpush1.bf16.msra.mxu0 %v3274
        %4234 = vmatprep.subr.bf16.mxu0 0
        %4235 = vmatpush1.bf16.msra.mxu0 %v3275
        %4236 = vmatprep.subr.bf16.mxu0 0
        %4237 = vmatpush1.bf16.msra.mxu0 %v3276
        %4238 = vmatprep.subr.bf16.mxu0 0
        %4239 = vmatpush1.bf16.msra.mxu0 %v3277
        %4240 = vmatprep.subr.bf16.mxu0 0
        %4241 = vmatpush1.bf16.msra.mxu0 %v3278
        %4242 = vmatprep.subr.bf16.mxu0 0
        %4243 = vmatpush1.bf16.msra.mxu0 %v3279
        %4244 = vmatprep.subr.bf16.mxu0 0
        %4245 = vmatpush1.bf16.msra.mxu0 %v3280
        %4246 = vmatprep.subr.bf16.mxu0 0
        %4247 = vmatpush1.bf16.msra.mxu0 %v3281
        %4248 = vmatprep.subr.bf16.mxu0 0
        %4249 = vmatpush1.bf16.msra.mxu0 %v3282
        %4250 = vmatprep.subr.bf16.mxu0 0
        %4251 = vmatpush1.bf16.msra.mxu0 %v3283
        %4252 = vmatprep.mubr.bf16.mxu0 %v1250
        %4253 = vmatmul.mubr.bf16.gmra.mrb[0].mxu0 %v1248
        %v4254 = vpop.f32.mrb[0].mxu0
        %v4255 = vadd.f32 %v4215, %v4254
        %v4256 = vpop.f32.mrb[0].mxu0
        %v4257 = vpop.f32.mrb[0].mxu0
        %v4258 = vpop.f32.mrb[0].mxu0
        %4259 = vdwg.mxu0
        %4260 = vmatprep.subr.bf16.mxu0 0
        %4261 = vmatpush1.bf16.msra.mxu0 %v3284
        %4262 = vmatprep.subr.bf16.mxu0 0
        %4263 = vmatpush1.bf16.msra.mxu0 %v3285
        %4264 = vmatprep.subr.bf16.mxu0 0
        %4265 = vmatpush1.bf16.msra.mxu0 %v3286
        %4266 = vmatprep.subr.bf16.mxu0 0
        %4267 = vmatpush1.bf16.msra.mxu0 %v3287
        %4268 = vmatprep.subr.bf16.mxu0 0
        %4269 = vmatpush1.bf16.msra.mxu0 %v3288
        %4270 = vmatprep.subr.bf16.mxu0 0
        %4271 = vmatpush1.bf16.msra.mxu0 %v3289
        %4272 = vmatprep.subr.bf16.mxu0 0
        %4273 = vmatpush1.bf16.msra.mxu0 %v3290
        %4274 = vmatprep.subr.bf16.mxu0 0
        %4275 = vmatpush1.bf16.msra.mxu0 %v3291
        %4276 = vmatprep.subr.bf16.mxu0 0
        %4277 = vmatpush1.bf16.msra.mxu0 %v3292
        %4278 = vmatprep.subr.bf16.mxu0 0
        %4279 = vmatpush1.bf16.msra.mxu0 %v3293
        %4280 = vmatprep.subr.bf16.mxu0 0
        %4281 = vmatpush1.bf16.msra.mxu0 %v3294
        %4282 = vmatprep.subr.bf16.mxu0 0
        %4283 = vmatpush1.bf16.msra.mxu0 %v3295
        %4284 = vmatprep.subr.bf16.mxu0 0
        %4285 = vmatpush1.bf16.msra.mxu0 %v3296
        %4286 = vmatprep.subr.bf16.mxu0 0
        %4287 = vmatpush1.bf16.msra.mxu0 %v3297
        %4288 = vmatprep.subr.bf16.mxu0 0
        %4289 = vmatpush1.bf16.msra.mxu0 %v3298
        %4290 = vmatprep.subr.bf16.mxu0 0
        %4291 = vmatpush1.bf16.msra.mxu0 %v3299
        %4292 = vmatprep.mubr.bf16.mxu0 %v1247
        %4293 = vmatmul.mubr.bf16.gmra.mrb[0].mxu0 %v1233
        %v4294 = vpop.f32.mrb[0].mxu0
        %v4295 = vadd.f32 %v4255, %v4294
        %v4296 = vpop.f32.mrb[0].mxu0
        %v4297 = vpop.f32.mrb[0].mxu0
        %v4298 = vpop.f32.mrb[0].mxu0
        %4299 = vdwg.mxu0
        %4300 = vmatprep.subr.bf16.mxu0 0
        %4301 = vmatpush1.bf16.msra.mxu0 %v3300
        %4302 = vmatprep.subr.bf16.mxu0 0
        %4303 = vmatpush1.bf16.msra.mxu0 %v3301
        %4304 = vmatprep.subr.bf16.mxu0 0
        %4305 = vmatpush1.bf16.msra.mxu0 %v3302
        %4306 = vmatprep.subr.bf16.mxu0 0
        %4307 = vmatpush1.bf16.msra.mxu0 %v3303
        %4308 = vmatprep.subr.bf16.mxu0 0
        %4309 = vmatpush1.bf16.msra.mxu0 %v3304
        %4310 = vmatprep.subr.bf16.mxu0 0
        %4311 = vmatpush1.bf16.msra.mxu0 %v3305
        %4312 = vmatprep.subr.bf16.mxu0 0
        %4313 = vmatpush1.bf16.msra.mxu0 %v3306
        %4314 = vmatprep.subr.bf16.mxu0 0
        %4315 = vmatpush1.bf16.msra.mxu0 %v3307
        %4316 = vmatprep.subr.bf16.mxu0 0
        %4317 = vmatpush1.bf16.msra.mxu0 %v3308
        %4318 = vmatprep.subr.bf16.mxu0 0
        %4319 = vmatpush1.bf16.msra.mxu0 %v3309
        %4320 = vmatprep.subr.bf16.mxu0 0
        %4321 = vmatpush1.bf16.msra.mxu0 %v3310
        %4322 = vmatprep.subr.bf16.mxu0 0
        %4323 = vmatpush1.bf16.msra.mxu0 %v3311
        %4324 = vmatprep.subr.bf16.mxu0 0
        %4325 = vmatpush1.bf16.msra.mxu0 %v3312
        %4326 = vmatprep.subr.bf16.mxu0 0
        %4327 = vmatpush1.bf16.msra.mxu0 %v3313
        %4328 = vmatprep.subr.bf16.mxu0 0
        %4329 = vmatpush1.bf16.msra.mxu0 %v3314
        %4330 = vmatprep.subr.bf16.mxu0 0
        %4331 = vmatpush1.bf16.msra.mxu0 %v3315
        %4332 = vmatprep.mubr.bf16.mxu0 %v1251
        %4333 = vmatmul.mubr.bf16.gmra.mrb[0].mxu0 %v1249
        %v4334 = vpop.f32.mrb[0].mxu0
        %v4335 = vadd.f32 %v4295, %v4334
        %v4336 = vpop.f32.mrb[0].mxu0
        %v4337 = vpop.f32.mrb[0].mxu0
        %v4338 = vpop.f32.mrb[0].mxu0
        %4339 = vdwg.mxu0
        %4340 = vmatprep.subr.bf16.mxu0 0
        %4341 = vmatpush1.bf16.msra.mxu0 %v3316
        %4342 = vmatprep.subr.bf16.mxu0 0
        %4343 = vmatpush1.bf16.msra.mxu0 %v3317
        %4344 = vmatprep.subr.bf16.mxu0 0
        %4345 = vmatpush1.bf16.msra.mxu0 %v3318
        %4346 = vmatprep.subr.bf16.mxu0 0
        %4347 = vmatpush1.bf16.msra.mxu0 %v3319
        %4348 = vmatprep.subr.bf16.mxu0 0
        %4349 = vmatpush1.bf16.msra.mxu0 %v3320
        %4350 = vmatprep.subr.bf16.mxu0 0
        %4351 = vmatpush1.bf16.msra.mxu0 %v3321
        %4352 = vmatprep.subr.bf16.mxu0 0
        %4353 = vmatpush1.bf16.msra.mxu0 %v3322
        %4354 = vmatprep.subr.bf16.mxu0 0
        %4355 = vmatpush1.bf16.msra.mxu0 %v3323
        %4356 = vmatprep.subr.bf16.mxu0 0
        %4357 = vmatpush1.bf16.msra.mxu0 %v3324
        %4358 = vmatprep.subr.bf16.mxu0 0
        %4359 = vmatpush1.bf16.msra.mxu0 %v3325
        %4360 = vmatprep.subr.bf16.mxu0 0
        %4361 = vmatpush1.bf16.msra.mxu0 %v3326
        %4362 = vmatprep.subr.bf16.mxu0 0
        %4363 = vmatpush1.bf16.msra.mxu0 %v3327
        %4364 = vmatprep.subr.bf16.mxu0 0
        %4365 = vmatpush1.bf16.msra.mxu0 %v3328
        %4366 = vmatprep.subr.bf16.mxu0 0
        %4367 = vmatpush1.bf16.msra.mxu0 %v3329
        %4368 = vmatprep.subr.bf16.mxu0 0
        %4369 = vmatpush1.bf16.msra.mxu0 %v3330
        %4370 = vmatprep.subr.bf16.mxu0 0
        %4371 = vmatpush1.bf16.msra.mxu0 %v3331
        %4372 = vmatprep.mubr.bf16.mxu0 %v1289
        %4373 = vmatmul.mubr.bf16.gmra.mrb[0].mxu0 %v1275
        %v4374 = vpop.f32.mrb[0].mxu0
        %v4375 = vadd.f32 %v4335, %v4374
        %v4376 = vpop.f32.mrb[0].mxu0
        %v4377 = vpop.f32.mrb[0].mxu0
        %v4378 = vpop.f32.mrb[0].mxu0
        %4379 = vdwg.mxu0
        %4380 = vmatprep.subr.bf16.mxu0 0
        %4381 = vmatpush1.bf16.msra.mxu0 %v3332
        %4382 = vmatprep.subr.bf16.mxu0 0
        %4383 = vmatpush1.bf16.msra.mxu0 %v3333
        %4384 = vmatprep.subr.bf16.mxu0 0
        %4385 = vmatpush1.bf16.msra.mxu0 %v3334
        %4386 = vmatprep.subr.bf16.mxu0 0
        %4387 = vmatpush1.bf16.msra.mxu0 %v3335
        %4388 = vmatprep.subr.bf16.mxu0 0
        %4389 = vmatpush1.bf16.msra.mxu0 %v3336
        %4390 = vmatprep.subr.bf16.mxu0 0
        %4391 = vmatpush1.bf16.msra.mxu0 %v3337
        %4392 = vmatprep.subr.bf16.mxu0 0
        %4393 = vmatpush1.bf16.msra.mxu0 %v3338
        %4394 = vmatprep.subr.bf16.mxu0 0
        %4395 = vmatpush1.bf16.msra.mxu0 %v3339
        %4396 = vmatprep.subr.bf16.mxu0 0
        %4397 = vmatpush1.bf16.msra.mxu0 %v3340
        %4398 = vmatprep.subr.bf16.mxu0 0
        %4399 = vmatpush1.bf16.msra.mxu0 %v3341
        %4400 = vmatprep.subr.bf16.mxu0 0
        %4401 = vmatpush1.bf16.msra.mxu0 %v3342
        %4402 = vmatprep.subr.bf16.mxu0 0
        %4403 = vmatpush1.bf16.msra.mxu0 %v3343
        %4404 = vmatprep.subr.bf16.mxu0 0
        %4405 = vmatpush1.bf16.msra.mxu0 %v3344
        %4406 = vmatprep.subr.bf16.mxu0 0
        %4407 = vmatpush1.bf16.msra.mxu0 %v3345
        %4408 = vmatprep.subr.bf16.mxu0 0
        %4409 = vmatpush1.bf16.msra.mxu0 %v3346
        %4410 = vmatprep.subr.bf16.mxu0 0
        %4411 = vmatpush1.bf16.msra.mxu0 %v3347
        %4412 = vmatprep.mubr.bf16.mxu0 %v1299
        %4413 = vmatmul.mubr.bf16.gmra.mrb[0].mxu0 %v1297
        %v4414 = vpop.f32.mrb[0].mxu0
        %v4415 = vadd.f32 %v4375, %v4414
        %v4416 = vpop.f32.mrb[0].mxu0
        %v4417 = vpop.f32.mrb[0].mxu0
        %v4418 = vpop.f32.mrb[0].mxu0
        %4419 = vdwg.mxu0
        %4420 = vmatprep.subr.bf16.mxu0 0
        %4421 = vmatpush1.bf16.msra.mxu0 %v3348
        %4422 = vmatprep.subr.bf16.mxu0 0
        %4423 = vmatpush1.bf16.msra.mxu0 %v3349
        %4424 = vmatprep.subr.bf16.mxu0 0
        %4425 = vmatpush1.bf16.msra.mxu0 %v3350
        %4426 = vmatprep.subr.bf16.mxu0 0
        %4427 = vmatpush1.bf16.msra.mxu0 %v3351
        %4428 = vmatprep.subr.bf16.mxu0 0
        %4429 = vmatpush1.bf16.msra.mxu0 %v3352
        %4430 = vmatprep.subr.bf16.mxu0 0
        %4431 = vmatpush1.bf16.msra.mxu0 %v3353
        %4432 = vmatprep.subr.bf16.mxu0 0
        %4433 = vmatpush1.bf16.msra.mxu0 %v3354
        %4434 = vmatprep.subr.bf16.mxu0 0
        %4435 = vmatpush1.bf16.msra.mxu0 %v3355
        %4436 = vmatprep.subr.bf16.mxu0 0
        %4437 = vmatpush1.bf16.msra.mxu0 %v3356
        %4438 = vmatprep.subr.bf16.mxu0 0
        %4439 = vmatpush1.bf16.msra.mxu0 %v3357
        %4440 = vmatprep.subr.bf16.mxu0 0
        %4441 = vmatpush1.bf16.msra.mxu0 %v3358
        %4442 = vmatprep.subr.bf16.mxu0 0
        %4443 = vmatpush1.bf16.msra.mxu0 %v3359
        %4444 = vmatprep.subr.bf16.mxu0 0
        %4445 = vmatpush1.bf16.msra.mxu0 %v3360
        %4446 = vmatprep.subr.bf16.mxu0 0
        %4447 = vmatpush1.bf16.msra.mxu0 %v3361
        %4448 = vmatprep.subr.bf16.mxu0 0
        %4449 = vmatpush1.bf16.msra.mxu0 %v3362
        %4450 = vmatprep.subr.bf16.mxu0 0
        %4451 = vmatpush1.bf16.msra.mxu0 %v3363
        %4452 = vmatprep.mubr.bf16.mxu0 %v1296
        %4453 = vmatmul.mubr.bf16.gmra.mrb[0].mxu0 %v1282
        %v4454 = vpop.f32.mrb[0].mxu0
        %v4455 = vadd.f32 %v4415, %v4454
        %v4456 = vpop.f32.mrb[0].mxu0
        %v4457 = vpop.f32.mrb[0].mxu0
        %v4458 = vpop.f32.mrb[0].mxu0
        %4459 = vdwg.mxu0
        %4460 = vmatprep.subr.bf16.mxu0 0
        %4461 = vmatpush1.bf16.msra.mxu0 %v3364
        %4462 = vmatprep.subr.bf16.mxu0 0
        %4463 = vmatpush1.bf16.msra.mxu0 %v3365
        %4464 = vmatprep.subr.bf16.mxu0 0
        %4465 = vmatpush1.bf16.msra.mxu0 %v3366
        %4466 = vmatprep.subr.bf16.mxu0 0
        %4467 = vmatpush1.bf16.msra.mxu0 %v3367
        %4468 = vmatprep.subr.bf16.mxu0 0
        %4469 = vmatpush1.bf16.msra.mxu0 %v3368
        %4470 = vmatprep.subr.bf16.mxu0 0
        %4471 = vmatpush1.bf16.msra.mxu0 %v3369
        %4472 = vmatprep.subr.bf16.mxu0 0
        %4473 = vmatpush1.bf16.msra.mxu0 %v3370
        %4474 = vmatprep.subr.bf16.mxu0 0
        %4475 = vmatpush1.bf16.msra.mxu0 %v3371
        %4476 = vmatprep.subr.bf16.mxu0 0
        %4477 = vmatpush1.bf16.msra.mxu0 %v3372
        %4478 = vmatprep.subr.bf16.mxu0 0
        %4479 = vmatpush1.bf16.msra.mxu0 %v3373
        %4480 = vmatprep.subr.bf16.mxu0 0
        %4481 = vmatpush1.bf16.msra.mxu0 %v3374
        %4482 = vmatprep.subr.bf16.mxu0 0
        %4483 = vmatpush1.bf16.msra.mxu0 %v3375
        %4484 = vmatprep.subr.bf16.mxu0 0
        %4485 = vmatpush1.bf16.msra.mxu0 %v3376
        %4486 = vmatprep.subr.bf16.mxu0 0
        %4487 = vmatpush1.bf16.msra.mxu0 %v3377
        %4488 = vmatprep.subr.bf16.mxu0 0
        %4489 = vmatpush1.bf16.msra.mxu0 %v3378
        %4490 = vmatprep.subr.bf16.mxu0 0
        %4491 = vmatpush1.bf16.msra.mxu0 %v3379
        %4492 = vmatprep.mubr.bf16.mxu0 %v1300
        %4493 = vmatmul.mubr.bf16.gmra.mrb[0].mxu0 %v1298
        %v4494 = vpop.f32.mrb[0].mxu0
        %v4495 = vadd.f32 %v4455, %v4494
        %v4496 = vpop.f32.mrb[0].mxu0
        %v4497 = vpop.f32.mrb[0].mxu0
        %v4498 = vpop.f32.mrb[0].mxu0
        %4499 = vdwg.mxu0
        %4500 = vmatprep.subr.bf16.mxu0 0
        %4501 = vmatpush1.bf16.msra.mxu0 %v3380
        %4502 = vmatprep.subr.bf16.mxu0 0
        %4503 = vmatpush1.bf16.msra.mxu0 %v3381
        %4504 = vmatprep.subr.bf16.mxu0 0
        %4505 = vmatpush1.bf16.msra.mxu0 %v3382
        %4506 = vmatprep.subr.bf16.mxu0 0
        %4507 = vmatpush1.bf16.msra.mxu0 %v3383
        %4508 = vmatprep.subr.bf16.mxu0 0
        %4509 = vmatpush1.bf16.msra.mxu0 %v3384
        %4510 = vmatprep.subr.bf16.mxu0 0
        %4511 = vmatpush1.bf16.msra.mxu0 %v3385
        %4512 = vmatprep.subr.bf16.mxu0 0
        %4513 = vmatpush1.bf16.msra.mxu0 %v3386
        %4514 = vmatprep.subr.bf16.mxu0 0
        %4515 = vmatpush1.bf16.msra.mxu0 %v3387
        %4516 = vmatprep.subr.bf16.mxu0 0
        %4517 = vmatpush1.bf16.msra.mxu0 %v3388
        %4518 = vmatprep.subr.bf16.mxu0 0
        %4519 = vmatpush1.bf16.msra.mxu0 %v3389
        %4520 = vmatprep.subr.bf16.mxu0 0
        %4521 = vmatpush1.bf16.msra.mxu0 %v3390
        %4522 = vmatprep.subr.bf16.mxu0 0
        %4523 = vmatpush1.bf16.msra.mxu0 %v3391
        %4524 = vmatprep.subr.bf16.mxu0 0
        %4525 = vmatpush1.bf16.msra.mxu0 %v3392
        %4526 = vmatprep.subr.bf16.mxu0 0
        %4527 = vmatpush1.bf16.msra.mxu0 %v3393
        %4528 = vmatprep.subr.bf16.mxu0 0
        %4529 = vmatpush1.bf16.msra.mxu0 %v3394
        %4530 = vmatprep.subr.bf16.mxu0 0
        %4531 = vmatpush1.bf16.msra.mxu0 %v3395
        %4532 = vmatprep.mubr.bf16.mxu0 %v1338
        %4533 = vmatmul.mubr.bf16.gmra.mrb[0].mxu0 %v1324
        %v4534 = vpop.f32.mrb[0].mxu0
        %v4535 = vadd.f32 %v4495, %v4534
        %v4536 = vpop.f32.mrb[0].mxu0
        %v4537 = vpop.f32.mrb[0].mxu0
        %v4538 = vpop.f32.mrb[0].mxu0
        %4539 = vdwg.mxu0
        %4540 = vmatprep.subr.bf16.mxu0 0
        %4541 = vmatpush1.bf16.msra.mxu0 %v3396
        %4542 = vmatprep.subr.bf16.mxu0 0
        %4543 = vmatpush1.bf16.msra.mxu0 %v3397
        %4544 = vmatprep.subr.bf16.mxu0 0
        %4545 = vmatpush1.bf16.msra.mxu0 %v3398
        %4546 = vmatprep.subr.bf16.mxu0 0
        %4547 = vmatpush1.bf16.msra.mxu0 %v3399
        %4548 = vmatprep.subr.bf16.mxu0 0
        %4549 = vmatpush1.bf16.msra.mxu0 %v3400
        %4550 = vmatprep.subr.bf16.mxu0 0
        %4551 = vmatpush1.bf16.msra.mxu0 %v3401
        %4552 = vmatprep.subr.bf16.mxu0 0
        %4553 = vmatpush1.bf16.msra.mxu0 %v3402
        %4554 = vmatprep.subr.bf16.mxu0 0
        %4555 = vmatpush1.bf16.msra.mxu0 %v3403
        %4556 = vmatprep.subr.bf16.mxu0 0
        %4557 = vmatpush1.bf16.msra.mxu0 %v3404
        %4558 = vmatprep.subr.bf16.mxu0 0
        %4559 = vmatpush1.bf16.msra.mxu0 %v3405
        %4560 = vmatprep.subr.bf16.mxu0 0
        %4561 = vmatpush1.bf16.msra.mxu0 %v3406
        %4562 = vmatprep.subr.bf16.mxu0 0
        %4563 = vmatpush1.bf16.msra.mxu0 %v3407
        %4564 = vmatprep.subr.bf16.mxu0 0
        %4565 = vmatpush1.bf16.msra.mxu0 %v3408
        %4566 = vmatprep.subr.bf16.mxu0 0
        %4567 = vmatpush1.bf16.msra.mxu0 %v3409
        %4568 = vmatprep.subr.bf16.mxu0 0
        %4569 = vmatpush1.bf16.msra.mxu0 %v3410
        %4570 = vmatprep.subr.bf16.mxu0 0
        %4571 = vmatpush1.bf16.msra.mxu0 %v3411
        %4572 = vmatprep.mubr.bf16.mxu0 %v1348
        %4573 = vmatmul.mubr.bf16.gmra.mrb[0].mxu0 %v1346
        %v4574 = vpop.f32.mrb[0].mxu0
        %v4575 = vadd.f32 %v4535, %v4574
        %v4576 = vpop.f32.mrb[0].mxu0
        %v4577 = vpop.f32.mrb[0].mxu0
        %v4578 = vpop.f32.mrb[0].mxu0
        %4579 = vdwg.mxu0
        %4580 = vmatprep.subr.bf16.mxu0 0
        %4581 = vmatpush1.bf16.msra.mxu0 %v3412
        %4582 = vmatprep.subr.bf16.mxu0 0
        %4583 = vmatpush1.bf16.msra.mxu0 %v3413
        %4584 = vmatprep.subr.bf16.mxu0 0
        %4585 = vmatpush1.bf16.msra.mxu0 %v3414
        %4586 = vmatprep.subr.bf16.mxu0 0
        %4587 = vmatpush1.bf16.msra.mxu0 %v3415
        %4588 = vmatprep.subr.bf16.mxu0 0
        %4589 = vmatpush1.bf16.msra.mxu0 %v3416
        %4590 = vmatprep.subr.bf16.mxu0 0
        %4591 = vmatpush1.bf16.msra.mxu0 %v3417
        %4592 = vmatprep.subr.bf16.mxu0 0
        %4593 = vmatpush1.bf16.msra.mxu0 %v3418
        %4594 = vmatprep.subr.bf16.mxu0 0
        %4595 = vmatpush1.bf16.msra.mxu0 %v3419
        %4596 = vmatprep.subr.bf16.mxu0 0
        %4597 = vmatpush1.bf16.msra.mxu0 %v3420
        %4598 = vmatprep.subr.bf16.mxu0 0
        %4599 = vmatpush1.bf16.msra.mxu0 %v3421
        %4600 = vmatprep.subr.bf16.mxu0 0
        %4601 = vmatpush1.bf16.msra.mxu0 %v3422
        %4602 = vmatprep.subr.bf16.mxu0 0
        %4603 = vmatpush1.bf16.msra.mxu0 %v3423
        %4604 = vmatprep.subr.bf16.mxu0 0
        %4605 = vmatpush1.bf16.msra.mxu0 %v3424
        %4606 = vmatprep.subr.bf16.mxu0 0
        %4607 = vmatpush1.bf16.msra.mxu0 %v3425
        %4608 = vmatprep.subr.bf16.mxu0 0
        %4609 = vmatpush1.bf16.msra.mxu0 %v3426
        %4610 = vmatprep.subr.bf16.mxu0 0
        %4611 = vmatpush1.bf16.msra.mxu0 %v3427
        %4612 = vmatprep.mubr.bf16.mxu0 %v1345
        %4613 = vmatmul.mubr.bf16.gmra.mrb[0].mxu0 %v1331
        %v4614 = vpop.f32.mrb[0].mxu0
        %v4615 = vadd.f32 %v4575, %v4614
        %v4616 = vpop.f32.mrb[0].mxu0
        %v4617 = vpop.f32.mrb[0].mxu0
        %v4618 = vpop.f32.mrb[0].mxu0
        %4619 = vdwg.mxu0
        %4620 = vmatprep.subr.bf16.mxu0 0
        %4621 = vmatpush1.bf16.msra.mxu0 %v3428
        %4622 = vmatprep.subr.bf16.mxu0 0
        %4623 = vmatpush1.bf16.msra.mxu0 %v3429
        %4624 = vmatprep.subr.bf16.mxu0 0
        %4625 = vmatpush1.bf16.msra.mxu0 %v3430
        %4626 = vmatprep.subr.bf16.mxu0 0
        %4627 = vmatpush1.bf16.msra.mxu0 %v3431
        %4628 = vmatprep.subr.bf16.mxu0 0
        %4629 = vmatpush1.bf16.msra.mxu0 %v3432
        %4630 = vmatprep.subr.bf16.mxu0 0
        %4631 = vmatpush1.bf16.msra.mxu0 %v3433
        %4632 = vmatprep.subr.bf16.mxu0 0
        %4633 = vmatpush1.bf16.msra.mxu0 %v3434
        %4634 = vmatprep.subr.bf16.mxu0 0
        %4635 = vmatpush1.bf16.msra.mxu0 %v3435
        %4636 = vmatprep.subr.bf16.mxu0 0
        %4637 = vmatpush1.bf16.msra.mxu0 %v3436
        %4638 = vmatprep.subr.bf16.mxu0 0
        %4639 = vmatpush1.bf16.msra.mxu0 %v3437
        %4640 = vmatprep.subr.bf16.mxu0 0
        %4641 = vmatpush1.bf16.msra.mxu0 %v3438
        %4642 = vmatprep.subr.bf16.mxu0 0
        %4643 = vmatpush1.bf16.msra.mxu0 %v3439
        %4644 = vmatprep.subr.bf16.mxu0 0
        %4645 = vmatpush1.bf16.msra.mxu0 %v3440
        %4646 = vmatprep.subr.bf16.mxu0 0
        %4647 = vmatpush1.bf16.msra.mxu0 %v3441
        %4648 = vmatprep.subr.bf16.mxu0 0
        %4649 = vmatpush1.bf16.msra.mxu0 %v3442
        %4650 = vmatprep.subr.bf16.mxu0 0
        %4651 = vmatpush1.bf16.msra.mxu0 %v3443
        %4652 = vmatprep.mubr.bf16.mxu0 %v1349
        %4653 = vmatmul.mubr.bf16.gmra.mrb[0].mxu0 %v1347
        %v4654 = vpop.f32.mrb[0].mxu0
        %v4655 = vadd.f32 %v4615, %v4654
        %v4656 = vpop.f32.mrb[0].mxu0
        %v4657 = vpop.f32.mrb[0].mxu0
        %v4658 = vpop.f32.mrb[0].mxu0
        %4659 = vdwg.mxu0
        %4660 = vmatprep.subr.bf16.mxu0 0
        %4661 = vmatpush1.bf16.msra.mxu0 %v3444
        %4662 = vmatprep.subr.bf16.mxu0 0
        %4663 = vmatpush1.bf16.msra.mxu0 %v3445
        %4664 = vmatprep.subr.bf16.mxu0 0
        %4665 = vmatpush1.bf16.msra.mxu0 %v3446
        %4666 = vmatprep.subr.bf16.mxu0 0
        %4667 = vmatpush1.bf16.msra.mxu0 %v3447
        %4668 = vmatprep.subr.bf16.mxu0 0
        %4669 = vmatpush1.bf16.msra.mxu0 %v3448
        %4670 = vmatprep.subr.bf16.mxu0 0
        %4671 = vmatpush1.bf16.msra.mxu0 %v3449
        %4672 = vmatprep.subr.bf16.mxu0 0
        %4673 = vmatpush1.bf16.msra.mxu0 %v3450
        %4674 = vmatprep.subr.bf16.mxu0 0
        %4675 = vmatpush1.bf16.msra.mxu0 %v3451
        %4676 = vmatprep.subr.bf16.mxu0 0
        %4677 = vmatpush1.bf16.msra.mxu0 %v3452
        %4678 = vmatprep.subr.bf16.mxu0 0
        %4679 = vmatpush1.bf16.msra.mxu0 %v3453
        %4680 = vmatprep.subr.bf16.mxu0 0
        %4681 = vmatpush1.bf16.msra.mxu0 %v3454
        %4682 = vmatprep.subr.bf16.mxu0 0
        %4683 = vmatpush1.bf16.msra.mxu0 %v3455
        %4684 = vmatprep.subr.bf16.mxu0 0
        %4685 = vmatpush1.bf16.msra.mxu0 %v3456
        %4686 = vmatprep.subr.bf16.mxu0 0
        %4687 = vmatpush1.bf16.msra.mxu0 %v3457
        %4688 = vmatprep.subr.bf16.mxu0 0
        %4689 = vmatpush1.bf16.msra.mxu0 %v3458
        %4690 = vmatprep.subr.bf16.mxu0 0
        %4691 = vmatpush1.bf16.msra.mxu0 %v3459
        %4692 = vmatprep.mubr.bf16.mxu0 %v1387
        %4693 = vmatmul.mubr.bf16.gmra.mrb[0].mxu0 %v1373
        %v4694 = vpop.f32.mrb[0].mxu0
        %v4695 = vadd.f32 %v4655, %v4694
        %v4696 = vpop.f32.mrb[0].mxu0
        %v4697 = vpop.f32.mrb[0].mxu0
        %v4698 = vpop.f32.mrb[0].mxu0
        %4699 = vdwg.mxu0
        %4700 = vmatprep.subr.bf16.mxu0 0
        %4701 = vmatpush1.bf16.msra.mxu0 %v3460
        %4702 = vmatprep.subr.bf16.mxu0 0
        %4703 = vmatpush1.bf16.msra.mxu0 %v3461
        %4704 = vmatprep.subr.bf16.mxu0 0
        %4705 = vmatpush1.bf16.msra.mxu0 %v3462
        %4706 = vmatprep.subr.bf16.mxu0 0
        %4707 = vmatpush1.bf16.msra.mxu0 %v3463
        %4708 = vmatprep.subr.bf16.mxu0 0
        %4709 = vmatpush1.bf16.msra.mxu0 %v3464
        %4710 = vmatprep.subr.bf16.mxu0 0
        %4711 = vmatpush1.bf16.msra.mxu0 %v3465
        %4712 = vmatprep.subr.bf16.mxu0 0
        %4713 = vmatpush1.bf16.msra.mxu0 %v3466
        %4714 = vmatprep.subr.bf16.mxu0 0
        %4715 = vmatpush1.bf16.msra.mxu0 %v3467
        %4716 = vmatprep.subr.bf16.mxu0 0
        %4717 = vmatpush1.bf16.msra.mxu0 %v3468
        %4718 = vmatprep.subr.bf16.mxu0 0
        %4719 = vmatpush1.bf16.msra.mxu0 %v3469
        %4720 = vmatprep.subr.bf16.mxu0 0
        %4721 = vmatpush1.bf16.msra.mxu0 %v3470
        %4722 = vmatprep.subr.bf16.mxu0 0
        %4723 = vmatpush1.bf16.msra.mxu0 %v3471
        %4724 = vmatprep.subr.bf16.mxu0 0
        %4725 = vmatpush1.bf16.msra.mxu0 %v3472
        %4726 = vmatprep.subr.bf16.mxu0 0
        %4727 = vmatpush1.bf16.msra.mxu0 %v3473
        %4728 = vmatprep.subr.bf16.mxu0 0
        %4729 = vmatpush1.bf16.msra.mxu0 %v3474
        %4730 = vmatprep.subr.bf16.mxu0 0
        %4731 = vmatpush1.bf16.msra.mxu0 %v3475
        %4732 = vmatprep.mubr.bf16.mxu0 %v1397
        %4733 = vmatmul.mubr.bf16.gmra.mrb[0].mxu0 %v1395
        %v4734 = vpop.f32.mrb[0].mxu0
        %v4735 = vadd.f32 %v4695, %v4734
        %v4736 = vpop.f32.mrb[0].mxu0
        %v4737 = vpop.f32.mrb[0].mxu0
        %v4738 = vpop.f32.mrb[0].mxu0
        %4739 = vdwg.mxu0
        %4740 = vmatprep.subr.bf16.mxu0 0
        %4741 = vmatpush1.bf16.msra.mxu0 %v3476
        %4742 = vmatprep.subr.bf16.mxu0 0
        %4743 = vmatpush1.bf16.msra.mxu0 %v3477
        %4744 = vmatprep.subr.bf16.mxu0 0
        %4745 = vmatpush1.bf16.msra.mxu0 %v3478
        %4746 = vmatprep.subr.bf16.mxu0 0
        %4747 = vmatpush1.bf16.msra.mxu0 %v3479
        %4748 = vmatprep.subr.bf16.mxu0 0
        %4749 = vmatpush1.bf16.msra.mxu0 %v3480
        %4750 = vmatprep.subr.bf16.mxu0 0
        %4751 = vmatpush1.bf16.msra.mxu0 %v3481
        %4752 = vmatprep.subr.bf16.mxu0 0
        %4753 = vmatpush1.bf16.msra.mxu0 %v3482
        %4754 = vmatprep.subr.bf16.mxu0 0
        %4755 = vmatpush1.bf16.msra.mxu0 %v3483
        %4756 = vmatprep.subr.bf16.mxu0 0
        %4757 = vmatpush1.bf16.msra.mxu0 %v3484
        %4758 = vmatprep.subr.bf16.mxu0 0
        %4759 = vmatpush1.bf16.msra.mxu0 %v3485
        %4760 = vmatprep.subr.bf16.mxu0 0
        %4761 = vmatpush1.bf16.msra.mxu0 %v3486
        %4762 = vmatprep.subr.bf16.mxu0 0
        %4763 = vmatpush1.bf16.msra.mxu0 %v3487
        %4764 = vmatprep.subr.bf16.mxu0 0
        %4765 = vmatpush1.bf16.msra.mxu0 %v3488
        %4766 = vmatprep.subr.bf16.mxu0 0
        %4767 = vmatpush1.bf16.msra.mxu0 %v3489
        %4768 = vmatprep.subr.bf16.mxu0 0
        %4769 = vmatpush1.bf16.msra.mxu0 %v3490
        %4770 = vmatprep.subr.bf16.mxu0 0
        %4771 = vmatpush1.bf16.msra.mxu0 %v3491
        %4772 = vmatprep.mubr.bf16.mxu0 %v1394
        %4773 = vmatmul.mubr.bf16.gmra.mrb[0].mxu0 %v1380
        %v4774 = vpop.f32.mrb[0].mxu0
        %v4775 = vadd.f32 %v4735, %v4774
        %v4776 = vpop.f32.mrb[0].mxu0
        %v4777 = vpop.f32.mrb[0].mxu0
        %v4778 = vpop.f32.mrb[0].mxu0
        %4779 = vdwg.mxu0
        %4780 = vmatprep.subr.bf16.mxu0 0
        %4781 = vmatpush1.bf16.msra.mxu0 %v3492
        %4782 = vmatprep.subr.bf16.mxu0 0
        %4783 = vmatpush1.bf16.msra.mxu0 %v3493
        %4784 = vmatprep.subr.bf16.mxu0 0
        %4785 = vmatpush1.bf16.msra.mxu0 %v3494
        %4786 = vmatprep.subr.bf16.mxu0 0
        %4787 = vmatpush1.bf16.msra.mxu0 %v3495
        %4788 = vmatprep.subr.bf16.mxu0 0
        %4789 = vmatpush1.bf16.msra.mxu0 %v3496
        %4790 = vmatprep.subr.bf16.mxu0 0
        %4791 = vmatpush1.bf16.msra.mxu0 %v3497
        %4792 = vmatprep.subr.bf16.mxu0 0
        %4793 = vmatpush1.bf16.msra.mxu0 %v3498
        %4794 = vmatprep.subr.bf16.mxu0 0
        %4795 = vmatpush1.bf16.msra.mxu0 %v3499
        %4796 = vmatprep.subr.bf16.mxu0 0
        %4797 = vmatpush1.bf16.msra.mxu0 %v3500
        %4798 = vmatprep.subr.bf16.mxu0 0
        %4799 = vmatpush1.bf16.msra.mxu0 %v3501
        %4800 = vmatprep.subr.bf16.mxu0 0
        %4801 = vmatpush1.bf16.msra.mxu0 %v3502
        %4802 = vmatprep.subr.bf16.mxu0 0
        %4803 = vmatpush1.bf16.msra.mxu0 %v3503
        %4804 = vmatprep.subr.bf16.mxu0 0
        %4805 = vmatpush1.bf16.msra.mxu0 %v3504
        %4806 = vmatprep.subr.bf16.mxu0 0
        %4807 = vmatpush1.bf16.msra.mxu0 %v3505
        %4808 = vmatprep.subr.bf16.mxu0 0
        %4809 = vmatpush1.bf16.msra.mxu0 %v3506
        %4810 = vmatprep.subr.bf16.mxu0 0
        %4811 = vmatpush1.bf16.msra.mxu0 %v3507
        %4812 = vmatprep.mubr.bf16.mxu0 %v1398
        %4813 = vmatmul.mubr.bf16.gmra.mrb[0].mxu0 %v1396
        %v4814 = vpop.f32.mrb[0].mxu0
        %v4815 = vadd.f32 %v4775, %v4814
        %v4816 = vpop.f32.mrb[0].mxu0
        %v4817 = vpop.f32.mrb[0].mxu0
        %v4818 = vpop.f32.mrb[0].mxu0
        %4819 = vdwg.mxu0
        %4820 = vmatprep.subr.bf16.mxu0 0
        %4821 = vmatpush1.bf16.msra.mxu0 %v3508
        %4822 = vmatprep.subr.bf16.mxu0 0
        %4823 = vmatpush1.bf16.msra.mxu0 %v3509
        %4824 = vmatprep.subr.bf16.mxu0 0
        %4825 = vmatpush1.bf16.msra.mxu0 %v3510
        %4826 = vmatprep.subr.bf16.mxu0 0
        %4827 = vmatpush1.bf16.msra.mxu0 %v3511
        %4828 = vmatprep.subr.bf16.mxu0 0
        %4829 = vmatpush1.bf16.msra.mxu0 %v3512
        %4830 = vmatprep.subr.bf16.mxu0 0
        %4831 = vmatpush1.bf16.msra.mxu0 %v3513
        %4832 = vmatprep.subr.bf16.mxu0 0
        %4833 = vmatpush1.bf16.msra.mxu0 %v3514
        %4834 = vmatprep.subr.bf16.mxu0 0
        %4835 = vmatpush1.bf16.msra.mxu0 %v3515
        %4836 = vmatprep.subr.bf16.mxu0 0
        %4837 = vmatpush1.bf16.msra.mxu0 %v3516
        %4838 = vmatprep.subr.bf16.mxu0 0
        %4839 = vmatpush1.bf16.msra.mxu0 %v3517
        %4840 = vmatprep.subr.bf16.mxu0 0
        %4841 = vmatpush1.bf16.msra.mxu0 %v3518
        %4842 = vmatprep.subr.bf16.mxu0 0
        %4843 = vmatpush1.bf16.msra.mxu0 %v3519
        %4844 = vmatprep.subr.bf16.mxu0 0
        %4845 = vmatpush1.bf16.msra.mxu0 %v3520
        %4846 = vmatprep.subr.bf16.mxu0 0
        %4847 = vmatpush1.bf16.msra.mxu0 %v3521
        %4848 = vmatprep.subr.bf16.mxu0 0
        %4849 = vmatpush1.bf16.msra.mxu0 %v3522
        %4850 = vmatprep.subr.bf16.mxu0 0
        %4851 = vmatpush1.bf16.msra.mxu0 %v3523
        %4852 = vmatprep.mubr.bf16.mxu0 %v1436
        %4853 = vmatmul.mubr.bf16.gmra.mrb[0].mxu0 %v1422
        %v4854 = vpop.f32.mrb[0].mxu0
        %v4855 = vadd.f32 %v4815, %v4854
        %v4856 = vpop.f32.mrb[0].mxu0
        %v4857 = vpop.f32.mrb[0].mxu0
        %v4858 = vpop.f32.mrb[0].mxu0
        %4859 = vdwg.mxu0
        %4860 = vmatprep.subr.bf16.mxu0 0
        %4861 = vmatpush1.bf16.msra.mxu0 %v3524
        %4862 = vmatprep.subr.bf16.mxu0 0
        %4863 = vmatpush1.bf16.msra.mxu0 %v3525
        %4864 = vmatprep.subr.bf16.mxu0 0
        %4865 = vmatpush1.bf16.msra.mxu0 %v3526
        %4866 = vmatprep.subr.bf16.mxu0 0
        %4867 = vmatpush1.bf16.msra.mxu0 %v3527
        %4868 = vmatprep.subr.bf16.mxu0 0
        %4869 = vmatpush1.bf16.msra.mxu0 %v3528
        %4870 = vmatprep.subr.bf16.mxu0 0
        %4871 = vmatpush1.bf16.msra.mxu0 %v3529
        %4872 = vmatprep.subr.bf16.mxu0 0
        %4873 = vmatpush1.bf16.msra.mxu0 %v3530
        %4874 = vmatprep.subr.bf16.mxu0 0
        %4875 = vmatpush1.bf16.msra.mxu0 %v3531
        %4876 = vmatprep.subr.bf16.mxu0 0
        %4877 = vmatpush1.bf16.msra.mxu0 %v3532
        %4878 = vmatprep.subr.bf16.mxu0 0
        %4879 = vmatpush1.bf16.msra.mxu0 %v3533
        %4880 = vmatprep.subr.bf16.mxu0 0
        %4881 = vmatpush1.bf16.msra.mxu0 %v3534
        %4882 = vmatprep.subr.bf16.mxu0 0
        %4883 = vmatpush1.bf16.msra.mxu0 %v3535
        %4884 = vmatprep.subr.bf16.mxu0 0
        %4885 = vmatpush1.bf16.msra.mxu0 %v3536
        %4886 = vmatprep.subr.bf16.mxu0 0
        %4887 = vmatpush1.bf16.msra.mxu0 %v3537
        %4888 = vmatprep.subr.bf16.mxu0 0
        %4889 = vmatpush1.bf16.msra.mxu0 %v3538
        %4890 = vmatprep.subr.bf16.mxu0 0
        %4891 = vmatpush1.bf16.msra.mxu0 %v3539
        %4892 = vmatprep.mubr.bf16.mxu0 %v1446
        %4893 = vmatmul.mubr.bf16.gmra.mrb[0].mxu0 %v1444
        %v4894 = vpop.f32.mrb[0].mxu0
        %v4895 = vadd.f32 %v4855, %v4894
        %v4896 = vpop.f32.mrb[0].mxu0
        %v4897 = vpop.f32.mrb[0].mxu0
        %v4898 = vpop.f32.mrb[0].mxu0
        %4899 = vdwg.mxu0
        %4900 = vmatprep.subr.bf16.mxu0 0
        %4901 = vmatpush1.bf16.msra.mxu0 %v3540
        %4902 = vmatprep.subr.bf16.mxu0 0
        %4903 = vmatpush1.bf16.msra.mxu0 %v3541
        %4904 = vmatprep.subr.bf16.mxu0 0
        %4905 = vmatpush1.bf16.msra.mxu0 %v3542
        %4906 = vmatprep.subr.bf16.mxu0 0
        %4907 = vmatpush1.bf16.msra.mxu0 %v3543
        %4908 = vmatprep.subr.bf16.mxu0 0
        %4909 = vmatpush1.bf16.msra.mxu0 %v3544
        %4910 = vmatprep.subr.bf16.mxu0 0
        %4911 = vmatpush1.bf16.msra.mxu0 %v3545
        %4912 = vmatprep.subr.bf16.mxu0 0
        %4913 = vmatpush1.bf16.msra.mxu0 %v3546
        %4914 = vmatprep.subr.bf16.mxu0 0
        %4915 = vmatpush1.bf16.msra.mxu0 %v3547
        %4916 = vmatprep.subr.bf16.mxu0 0
        %4917 = vmatpush1.bf16.msra.mxu0 %v3548
        %4918 = vmatprep.subr.bf16.mxu0 0
        %4919 = vmatpush1.bf16.msra.mxu0 %v3549
        %4920 = vmatprep.subr.bf16.mxu0 0
        %4921 = vmatpush1.bf16.msra.mxu0 %v3550
        %4922 = vmatprep.subr.bf16.mxu0 0
        %4923 = vmatpush1.bf16.msra.mxu0 %v3551
        %4924 = vmatprep.subr.bf16.mxu0 0
        %4925 = vmatpush1.bf16.msra.mxu0 %v3552
        %4926 = vmatprep.subr.bf16.mxu0 0
        %4927 = vmatpush1.bf16.msra.mxu0 %v3553
        %4928 = vmatprep.subr.bf16.mxu0 0
        %4929 = vmatpush1.bf16.msra.mxu0 %v3554
        %4930 = vmatprep.subr.bf16.mxu0 0
        %4931 = vmatpush1.bf16.msra.mxu0 %v3555
        %4932 = vmatprep.mubr.bf16.mxu0 %v1443
        %4933 = vmatmul.mubr.bf16.gmra.mrb[0].mxu0 %v1429
        %v4934 = vpop.f32.mrb[0].mxu0
        %v4935 = vadd.f32 %v4895, %v4934
        %v4936 = vpop.f32.mrb[0].mxu0
        %v4937 = vpop.f32.mrb[0].mxu0
        %v4938 = vpop.f32.mrb[0].mxu0
        %4939 = vdwg.mxu0
        %4940 = vmatprep.subr.bf16.mxu0 0
        %4941 = vmatpush1.bf16.msra.mxu0 %v3556
        %4942 = vmatprep.subr.bf16.mxu0 0
        %4943 = vmatpush1.bf16.msra.mxu0 %v3557
        %4944 = vmatprep.subr.bf16.mxu0 0
        %4945 = vmatpush1.bf16.msra.mxu0 %v3558
        %4946 = vmatprep.subr.bf16.mxu0 0
        %4947 = vmatpush1.bf16.msra.mxu0 %v3559
        %4948 = vmatprep.subr.bf16.mxu0 0
        %4949 = vmatpush1.bf16.msra.mxu0 %v3560
        %4950 = vmatprep.subr.bf16.mxu0 0
        %4951 = vmatpush1.bf16.msra.mxu0 %v3561
        %4952 = vmatprep.subr.bf16.mxu0 0
        %4953 = vmatpush1.bf16.msra.mxu0 %v3562
        %4954 = vmatprep.subr.bf16.mxu0 0
        %4955 = vmatpush1.bf16.msra.mxu0 %v3563
        %4956 = vmatprep.subr.bf16.mxu0 0
        %4957 = vmatpush1.bf16.msra.mxu0 %v3564
        %4958 = vmatprep.subr.bf16.mxu0 0
        %4959 = vmatpush1.bf16.msra.mxu0 %v3565
        %4960 = vmatprep.subr.bf16.mxu0 0
        %4961 = vmatpush1.bf16.msra.mxu0 %v3566
        %4962 = vmatprep.subr.bf16.mxu0 0
        %4963 = vmatpush1.bf16.msra.mxu0 %v3567
        %4964 = vmatprep.subr.bf16.mxu0 0
        %4965 = vmatpush1.bf16.msra.mxu0 %v3568
        %4966 = vmatprep.subr.bf16.mxu0 0
        %4967 = vmatpush1.bf16.msra.mxu0 %v3569
        %4968 = vmatprep.subr.bf16.mxu0 0
        %4969 = vmatpush1.bf16.msra.mxu0 %v3570
        %4970 = vmatprep.subr.bf16.mxu0 0
        %4971 = vmatpush1.bf16.msra.mxu0 %v3571
        %4972 = vmatprep.mubr.bf16.mxu0 %v1447
        %4973 = vmatmul.mubr.bf16.gmra.mrb[0].mxu0 %v1445
        %v4974 = vpop.f32.mrb[0].mxu0
        %v4975 = vadd.f32 %v4935, %v4974
        %v4976 = vpop.f32.mrb[0].mxu0
        %v4977 = vpop.f32.mrb[0].mxu0
        %v4978 = vpop.f32.mrb[0].mxu0
        %4979 = vdwg.mxu0
        %4980 = vmatprep.subr.bf16.mxu0 0
        %4981 = vmatpush1.bf16.msra.mxu0 %v3572
        %4982 = vmatprep.subr.bf16.mxu0 0
        %4983 = vmatpush1.bf16.msra.mxu0 %v3573
        %4984 = vmatprep.subr.bf16.mxu0 0
        %4985 = vmatpush1.bf16.msra.mxu0 %v3574
        %4986 = vmatprep.subr.bf16.mxu0 0
        %4987 = vmatpush1.bf16.msra.mxu0 %v3575
        %4988 = vmatprep.subr.bf16.mxu0 0
        %4989 = vmatpush1.bf16.msra.mxu0 %v3576
        %4990 = vmatprep.subr.bf16.mxu0 0
        %4991 = vmatpush1.bf16.msra.mxu0 %v3577
        %4992 = vmatprep.subr.bf16.mxu0 0
        %4993 = vmatpush1.bf16.msra.mxu0 %v3578
        %4994 = vmatprep.subr.bf16.mxu0 0
        %4995 = vmatpush1.bf16.msra.mxu0 %v3579
        %4996 = vmatprep.subr.bf16.mxu0 0
        %4997 = vmatpush1.bf16.msra.mxu0 %v3580
        %4998 = vmatprep.subr.bf16.mxu0 0
        %4999 = vmatpush1.bf16.msra.mxu0 %v3581
        %5000 = vmatprep.subr.bf16.mxu0 0
        %5001 = vmatpush1.bf16.msra.mxu0 %v3582
        %5002 = vmatprep.subr.bf16.mxu0 0
        %5003 = vmatpush1.bf16.msra.mxu0 %v3583
        %5004 = vmatprep.subr.bf16.mxu0 0
        %5005 = vmatpush1.bf16.msra.mxu0 %v3584
        %5006 = vmatprep.subr.bf16.mxu0 0
        %5007 = vmatpush1.bf16.msra.mxu0 %v3585
        %5008 = vmatprep.subr.bf16.mxu0 0
        %5009 = vmatpush1.bf16.msra.mxu0 %v3586
        %5010 = vmatprep.subr.bf16.mxu0 0
        %5011 = vmatpush1.bf16.msra.mxu0 %v3587
        %5012 = vmatprep.mubr.bf16.mxu0 %v1469
        %5013 = vmatmul.mubr.bf16.gmra.mrb[0].mxu0 %v1462
        %v5014 = vpop.f32.mrb[0].mxu0
        %v5015 = vadd.f32 %v4975, %v5014
        %v5016 = vpop.f32.mrb[0].mxu0
        %v5017 = vpop.f32.mrb[0].mxu0
        %v5018 = vpop.f32.mrb[0].mxu0
        %5019 = vdwg.mxu0
        %5020 = vmatprep.subr.bf16.mxu0 0
        %5021 = vmatpush1.bf16.msra.mxu0 %v3588
        %5022 = vmatprep.subr.bf16.mxu0 0
        %5023 = vmatpush1.bf16.msra.mxu0 %v3589
        %5024 = vmatprep.subr.bf16.mxu0 0
        %5025 = vmatpush1.bf16.msra.mxu0 %v3590
        %5026 = vmatprep.subr.bf16.mxu0 0
        %5027 = vmatpush1.bf16.msra.mxu0 %v3591
        %5028 = vmatprep.subr.bf16.mxu0 0
        %5029 = vmatpush1.bf16.msra.mxu0 %v3592
        %5030 = vmatprep.subr.bf16.mxu0 0
        %5031 = vmatpush1.bf16.msra.mxu0 %v3593
        %5032 = vmatprep.subr.bf16.mxu0 0
        %5033 = vmatpush1.bf16.msra.mxu0 %v3594
        %5034 = vmatprep.subr.bf16.mxu0 0
        %5035 = vmatpush1.bf16.msra.mxu0 %v3595
        %5036 = vmatprep.subr.bf16.mxu0 0
        %5037 = vmatpush1.bf16.msra.mxu0 %v3596
        %5038 = vmatprep.subr.bf16.mxu0 0
        %5039 = vmatpush1.bf16.msra.mxu0 %v3597
        %5040 = vmatprep.subr.bf16.mxu0 0
        %5041 = vmatpush1.bf16.msra.mxu0 %v3598
        %5042 = vmatprep.subr.bf16.mxu0 0
        %5043 = vmatpush1.bf16.msra.mxu0 %v3599
        %5044 = vmatprep.subr.bf16.mxu0 0
        %5045 = vmatpush1.bf16.msra.mxu0 %v3600
        %5046 = vmatprep.subr.bf16.mxu0 0
        %5047 = vmatpush1.bf16.msra.mxu0 %v3601
        %5048 = vmatprep.subr.bf16.mxu0 0
        %5049 = vmatpush1.bf16.msra.mxu0 %v3602
        %5050 = vmatprep.subr.bf16.mxu0 0
        %5051 = vmatpush1.bf16.msra.mxu0 %v3603
        %5052 = vmatprep.mubr.bf16.mxu0 %v1471
        %5053 = vmatmul.mubr.bf16.gmra.mrb[0].mxu0 %v1470
        %v5054 = vpop.f32.mrb[0].mxu0
        %v5055 = vadd.f32 %v5015, %v5054
        %v5056 = vpop.f32.mrb[0].mxu0
        %v5057 = vpop.f32.mrb[0].mxu0
        %v5058 = vpop.f32.mrb[0].mxu0
        %5059 = vdwg.mxu0
        %p5060 = scmp.eq.s32.totalorder %s29, 0
        // Predicated region
        $region49: #{expand_bitpackets_forward.3} parent=35 // pred_check
          %p5061 = pneg %p5060
        $region50: #{expand_bitpackets_forward.3} parent=35 // pred_check_branch
          %5063 = sbr.rel (%p5061) target = $region52
        $region51: #{expand_bitpackets_forward.3} parent=35 // pred_region
          %v5066 = vunpack.c.l.s4 1966171168
          %v5067 = vunpack.c.0.s8 %v5066
          %v5068 = vlaneseq
          %v5069 = vshrl.u32 %v5068, 7
          %v5070 = vsub.s32 %v5067, %v5069
          %v5071 = vrot.slane %v5055, %v5070
          %v5072 = vcombine.high %v5071, %v5071
          %v5074 = vunpack.c.l.s4 1966171168
          %v5075 = vunpack.c.0.s8 %v5074
          %v5076 = vlaneseq
          %v5077 = vshrl.u32 %v5076, 7
          %v5078 = vsub.s32 %v5075, %v5077
          %v5079 = vrot.slane %v5071, %v5078
          %v5081 = vunpack.c.l.s4 1966171168
          %v5082 = vunpack.c.0.s8 %v5081
          %v5083 = vlaneseq
          %v5084 = vshrl.u32 %v5083, 7
          %v5085 = vsub.s32 %v5082, %v5084
          %v5086 = vrot.slane %v5072, %v5085
          %5089 = vst [vmem:[%s301] sm:$0x1] %v5079
          %5090 = vst [vmem:[%s301 + $0x1] sm:$0x1] %v5086
        $region52: #{expand_bitpackets_forward.3} parent=35 // pred_fallthru
          _
        %p5091 = scmp.gt.s32.totalorder %s29, 0
        // Predicated region
        $region53: #{expand_bitpackets_forward.3} parent=35 // pred_check
          %p5092 = pneg %p5091
        $region54: #{expand_bitpackets_forward.3} parent=35 // pred_check_branch
          %5094 = sbr.rel (%p5092) target = $region56
        $region55: #{expand_bitpackets_forward.3} parent=35 // pred_region
          %v5095 = vld [vmem:[%s301] sm:$0x1]
          %v5096 = vld [vmem:[%s301 + $0x1] sm:$0x1]
          %v5099 = vunpack.c.l.s4 1966171168
          %v5100 = vunpack.c.0.s8 %v5099
          %v5101 = vlaneseq
          %v5102 = vshrl.u32 %v5101, 7
          %v5103 = vsub.s32 %v5100, %v5102
          %v5104 = vrot.slane %v5055, %v5103
          %v5105 = vcombine.high %v5104, %v5104
          %v5107 = vunpack.c.l.s4 1966171168
          %v5108 = vunpack.c.0.s8 %v5107
          %v5109 = vlaneseq
          %v5110 = vshrl.u32 %v5109, 7
          %v5111 = vsub.s32 %v5108, %v5110
          %v5112 = vrot.slane %v5104, %v5111
          %v5114 = vunpack.c.l.s4 1966171168
          %v5115 = vunpack.c.0.s8 %v5114
          %v5116 = vlaneseq
          %v5117 = vshrl.u32 %v5116, 7
          %v5118 = vsub.s32 %v5115, %v5117
          %v5119 = vrot.slane %v5105, %v5118
          %v5122 = vadd.f32 %v5095, %v5112
          %v5123 = vadd.f32 %v5096, %v5119
          %5124 = vst [vmem:[%s301] sm:$0x1] %v5122
          %5125 = vst [vmem:[%s301 + $0x1] sm:$0x1] %v5123
        $region56: #{expand_bitpackets_forward.3} parent=35 // pred_fallthru
          _
        // Predicated region
        $region57: #{expand_bitpackets_forward.3} parent=35 // pred_check
          %p5126 = pneg %p5060
        $region58: #{expand_bitpackets_forward.3} parent=35 // pred_check_branch
          %5128 = sbr.rel (%p5126) target = $region60
        $region59: #{expand_bitpackets_forward.3} parent=35 // pred_region
          %s5129 = smul.u32 %s28, 128
          %v5130 = vlaneseq
          %v5131 = vand.u32 %v5130, 127
          %v5132 = vstv %s5129
          %v5133 = vadd.s32 %v5132, %v5131
          %v5134 = vld [vmem:[%s301] sm:$0x1]
          %v5135 = vld [vmem:[%s301 + $0x1] sm:$0x1]
          %v5136 = vld [vmem:[%s259] sm:$0x1]
          %v5138 = vlaneseq
          %v5139 = vshrl.u32 %v5138, 7
          %v5140 = vsub.s32 0, %v5139
          %v5141 = vrot.slane %v5136, %v5140
          %v5143 = vunpack.c.l.s4 1966171168
          %v5144 = vunpack.c.0.s8 %v5143
          %v5145 = vlaneseq
          %v5146 = vshrl.u32 %v5145, 7
          %v5147 = vsub.s32 %v5144, %v5146
          %v5148 = vrot.slane %v5141, %v5147
          %v5149 = vcombine.high %v5148, %v5148
          %v5151 = vunpack.c.l.s4 1966171168
          %v5152 = vunpack.c.0.s8 %v5151
          %v5153 = vlaneseq
          %v5154 = vshrl.u32 %v5153, 7
          %v5155 = vsub.s32 %v5152, %v5154
          %v5156 = vrot.slane %v5148, %v5155
          %v5158 = vunpack.c.l.s4 1966171168
          %v5159 = vunpack.c.0.s8 %v5158
          %v5160 = vlaneseq
          %v5161 = vshrl.u32 %v5160, 7
          %v5162 = vsub.s32 %v5159, %v5161
          %v5163 = vrot.slane %v5149, %v5162
          %v5166 = vadd.f32 %v5134, %v5156
          %v5167 = vadd.f32 %v5135, %v5163
          %vm5168 = vcmp.lt.s32.totalorder %v5133, 256
          %v5169 = vld [vmem:[%s268] sm:$0x1]
          %v5170 = vld [vmem:[%s268 + $0x1] sm:$0x1]
          %v5173 = vcombine.low %v5166, %v5167
          %v5175 = vunpack.c.l.s4 1966171168
          %v5176 = vunpack.c.0.s8 %v5175
          %v5177 = vlaneseq
          %v5178 = vshrl.u32 %v5177, 7
          %v5179 = vsub.s32 %v5176, %v5178
          %v5180 = vrot.slane %v5173, %v5179
          %v5182 = vunpack.c.l.s4 1966171168
          %v5183 = vunpack.c.0.s8 %v5182
          %v5184 = vlaneseq
          %v5185 = vshrl.u32 %v5184, 7
          %v5186 = vsub.s32 %v5183, %v5185
          %v5187 = vrot.slane %v5180, %v5186
          %v5191 = vcombine.low %v5169, %v5170
          %v5193 = vunpack.c.l.s4 1966171168
          %v5194 = vunpack.c.0.s8 %v5193
          %v5195 = vlaneseq
          %v5196 = vshrl.u32 %v5195, 7
          %v5197 = vsub.s32 %v5194, %v5196
          %v5198 = vrot.slane %v5191, %v5197
          %v5200 = vunpack.c.l.s4 1966171168
          %v5201 = vunpack.c.0.s8 %v5200
          %v5202 = vlaneseq
          %v5203 = vshrl.u32 %v5202, 7
          %v5204 = vsub.s32 %v5201, %v5203
          %v5205 = vrot.slane %v5198, %v5204
          %v5207 = vsel %vm5168, %v5187, %v5205
          %v5210 = vunpack.c.l.s4 1966171168
          %v5211 = vunpack.c.0.s8 %v5210
          %v5212 = vlaneseq
          %v5213 = vshrl.u32 %v5212, 7
          %v5214 = vsub.s32 %v5211, %v5213
          %v5215 = vrot.slane %v5207, %v5214
          %v5216 = vcombine.high %v5215, %v5215
          %v5218 = vunpack.c.l.s4 1966171168
          %v5219 = vunpack.c.0.s8 %v5218
          %v5220 = vlaneseq
          %v5221 = vshrl.u32 %v5220, 7
          %v5222 = vsub.s32 %v5219, %v5221
          %v5223 = vrot.slane %v5215, %v5222
          %v5225 = vunpack.c.l.s4 1966171168
          %v5226 = vunpack.c.0.s8 %v5225
          %v5227 = vlaneseq
          %v5228 = vshrl.u32 %v5227, 7
          %v5229 = vsub.s32 %v5226, %v5228
          %v5230 = vrot.slane %v5216, %v5229
          %5233 = vst [vmem:[%s301] sm:$0x1] %v5223
          %5234 = vst [vmem:[%s301 + $0x1] sm:$0x1] %v5230
        $region60: #{expand_bitpackets_forward.3} parent=35 // pred_fallthru
          _
        %s5235 = sand.u32 %s145, 1
        %s5236 = scalar_lea.sflag [#allocation4], %s5235
        %s5237 = sand.u32 %s145, 1
        %s5238 = smul.addr %s5237, 2
        %s5239 = scalar_lea.vmem [#allocation8], %s5238
        // Predicated region
        $region61: #{expand_bitpackets_forward.3} parent=35 // pred_check
          %p5240 = pneg %p155
        $region62: #{expand_bitpackets_forward.3} parent=35 // pred_check_branch
          %5242 = sbr.rel (%p5240) target = $region64
        $region63: #{expand_bitpackets_forward.3} parent=35 // pred_region
          %s5244 = ssub.s32 32, 32
          %5245 = vsyncadd %s5236, %s5244
          %s5246 = smul.addr %s28, 16
          %s5247 = scalar_lea.hbm %s4, %s5246
          %s5248 = sshll.u32 %s5239, 4
          %s5249 = int_to_ptr.vmem [resolvable:$true] %s5248
          %5254 = dma.vmem_to_hbm [thread:$0]  %s5249, 32, %s5247, %s5236, 16, 48, 1
        $region64: #{expand_bitpackets_forward.3} parent=35 // pred_fallthru
          _
      $region36: #{expand_bitpackets_forward.3} parent=5 // pred_fallthru
        _
      %p5255 = scmp.le.s32.totalorder 2, %s19
      // Predicated region
      $region65: #{expand_bitpackets_forward.3} parent=5 // pred_check
        %p5256 = pneg %p5255
      $region66: #{expand_bitpackets_forward.3} parent=5 // pred_check_branch
        %5258 = sbr.rel (%p5256) target = $region68
      $region67: #{expand_bitpackets_forward.3} parent=5 // pred_region
        %s5259 = ssub.s32 %s19, 2
        // Predicated region
        $region69: #{expand_bitpackets_forward.3} parent=67 // pred_check
          %p5260 = pneg %p161
        $region70: #{expand_bitpackets_forward.3} parent=67 // pred_check_branch
          %5262 = sbr.rel (%p5260) target = $region72
        $region71: #{expand_bitpackets_forward.3} parent=67 // pred_region
          %s5263 = sand.u32 %s146, 1
          %s5264 = scalar_lea.sflag [#allocation4], %s5263
          %s5265 = sand.u32 %s146, 1
          %s5266 = smul.addr %s5265, 2
          %s5267 = scalar_lea.vmem [#allocation8], %s5266
          %5268 = dma.done %s5264, 32
        $region72: #{expand_bitpackets_forward.3} parent=67 // pred_fallthru
          _
      $region68: #{expand_bitpackets_forward.3} parent=5 // pred_fallthru
        _
    $region6: #{expand_bitpackets_forward.3} parent=1 // loop_footer
      %s23 = sadd.s32 1, %s19
    $region7: #{expand_bitpackets_forward.3} parent=1 // loop_footer_branch
      %18 = sbr.rel target = $region3
    $region8: #{expand_bitpackets_forward.3} parent=1 // loop_exit
      _
    %5269 = vsyncpa [#allocation3], 1
    %s5270 = scalar_lea.sflag [#allocation3], 1
    %5271 = vsyncpa %s5270, 1
    %5272 = vsyncpa [#allocation6], 1
    %s5273 = scalar_lea.sflag [#allocation6], 1
    %5274 = vsyncpa %s5273, 1
    %5275 = vsyncpa [#allocation4], 1
    %s5276 = scalar_lea.sflag [#allocation4], 1
    %5277 = vsyncpa %s5276, 1

</llo_original>
